<compile_context>
chip_gen: v6e
topology: v6e:2x2x1
jax: 0.10.0
libtpu: 0.0.40
codegen_flags: <defaults>
</compile_context>

<pallas_src>
import math
import functools

import jax
import jax.numpy as jnp
from jax.experimental import pallas as pl
from jax.experimental.pallas import tpu as pltpu


# -----------------------------------------------------------------------------
# In-kernel math
# -----------------------------------------------------------------------------
def _encoder_layer(x, src, mask, L, wq, wkv, wm, g1, b1, w1, w2, g2, b2, mxu_dtype):
    """One LoFTR EncoderLayer (linear attention) on BOTH streams stacked along rows.

    x, src: (2L, C) f32 — rows [0, L) = stream 0, rows [L, 2L) = stream 1.
    Weights are pre-transposed (y = x @ Wt); `wkv` is the fused [Wk^T | Wv^T] (C, 2C).
    Per-head attention is expressed with full-width matmuls and a constant
    block-diagonal head mask.
    """
    C = x.shape[-1]
    eps = 1e-6

    def mm(a, b):
        return jnp.dot(a.astype(mxu_dtype), b.astype(mxu_dtype),
                       preferred_element_type=jnp.float32)

    # Projections: batched over both streams (widened M), fused K|V (widened N).
    q = mm(x, wq)                      # (2L, C)
    kv = mm(src, wkv)                  # (2L, 2C)
    k = kv[:, :C]
    v = kv[:, C:]

    # feature map elu(x)+1 == x+1 (x>0) else exp(x), one pass over the stacked tensors
    Qf = jnp.where(q > 0, q + 1.0, jnp.exp(q))
    Kf = jnp.where(k > 0, k + 1.0, jnp.exp(k))
    # NOTE: the reference's v/L pre-scale and msg*L post-scale cancel exactly -> dropped.

    def stream_msg(sl):
        Qs, Ks, Vs = Qf[sl], Kf[sl], v[sl]
        # per-head KV = Kf_h^T @ V_h packed into a masked block-diagonal (C, C)
        KV = jax.lax.dot_general(
            Ks.astype(mxu_dtype), Vs.astype(mxu_dtype),
            (((0,), (0,)), ((), ())),
            preferred_element_type=jnp.float32) * mask
        ksum = jnp.sum(Ks, axis=0, keepdims=True)          # (1, C)
        num = mm(Qs, KV)                                    # (L, C)
        den = mm(Qs * ksum, mask) + eps                     # per-head denom, replicated per channel
        # TODO(synk): at C=256 compute `den` off the MXU (per-head lane reduce) per review.
        return num * pl.reciprocal(den, approx=True)        # EUP reciprocal -> VALU stays free

    msg = jnp.concatenate([stream_msg(slice(0, L)), stream_msg(slice(L, 2 * L))], axis=0)

    # merge heads + LayerNorm1
    msg = mm(msg, wm)
    mu1 = jnp.mean(msg, axis=-1, keepdims=True)
    var1 = jnp.mean((msg - mu1) ** 2, axis=-1, keepdims=True)
    msg = (msg - mu1) * jax.lax.rsqrt(var1 + 1e-5) * g1 + b1

    # MLP on cat([x, msg], -1): single fused K=2C matmul
    h1 = jnp.maximum(mm(jnp.concatenate([x, msg], axis=-1), w1), 0.0)
    h2 = mm(h1, w2)                                         # (2L, C)

    # LayerNorm2 + residual
    mu2 = jnp.mean(h2, axis=-1, keepdims=True)
    var2 = jnp.mean((h2 - mu2) ** 2, axis=-1, keepdims=True)
    h2 = (h2 - mu2) * jax.lax.rsqrt(var2 + 1e-5) * g2 + b2
    return x + h2


def transformer_pair_kernel(x_ref, mask_ref,
                            wq_ref, wkv_ref, wm_ref,
                            g1_ref, b1_ref, w1_ref, w2_ref, g2_ref, b2_ref,
                            o_ref, *, seq_len, mxu_dtype):
    """Grid = (batch, layer_pair).  Both streams of one batch element are resident in
    o_ref (stacked along rows) and carried across the layer-pair axis; each grid step
    statically applies one 'self' layer then one 'cross' layer (no runtime blend)."""
    pair = pl.program_id(1)
    L = seq_len

    @pl.when(pair == 0)
    def _():                 # bring the (1, 2L, C) block into the resident output once
        o_ref[...] = x_ref[...]

    mask = mask_ref[...]                               # loop-invariant, DMA'd once
    x2 = o_ref[0].astype(jnp.float32)                  # (2L, C)

    def layer(i, xx, src):                              # i is a static Python int (0=self, 1=cross)
        return _encoder_layer(xx, src, mask, L,
                              wq_ref[i], wkv_ref[i], wm_ref[i],
                              g1_ref[i], b1_ref[i], w1_ref[i], w2_ref[i],
                              g2_ref[i], b2_ref[i], mxu_dtype)

    # 'self' layer: each stream attends to itself
    y2 = layer(0, x2, x2)
    # 'cross' layer: each stream attends to the other; both outputs use the post-self
    # (pre-cross) values, matching the PyTorch tuple assignment semantics.
    src2 = jnp.concatenate([y2[L:], y2[:L]], axis=0)   # swap the two L-row halves
    z2 = layer(1, y2, src2)

    o_ref[0] = z2.astype(o_ref.dtype)


# -----------------------------------------------------------------------------
# Wrapper (NCHW in / NCHW out, like the nn.Module)
# -----------------------------------------------------------------------------
def make_pos_encoding(d_model, h, w):
    """Equivalent to PositionEncodingSine.pe[:, :, :h, :w] (positions are 1-based)."""
    y_pos = jnp.broadcast_to(jnp.arange(1, h + 1, dtype=jnp.float32)[:, None], (h, w))
    x_pos = jnp.broadcast_to(jnp.arange(1, w + 1, dtype=jnp.float32)[None, :], (h, w))
    div_term = jnp.exp(jnp.arange(0, d_model // 2, 2, dtype=jnp.float32)
                       * (-math.log(10000.0) / (d_model // 2)))
    div_term = div_term[:, None, None]
    pe = jnp.zeros((d_model, h, w), jnp.float32)
    pe = pe.at[0::4].set(jnp.sin(x_pos[None] * div_term))
    pe = pe.at[1::4].set(jnp.cos(x_pos[None] * div_term))
    pe = pe.at[2::4].set(jnp.sin(y_pos[None] * div_term))
    pe = pe.at[3::4].set(jnp.cos(y_pos[None] * div_term))
    return pe[None]                                   # (1, C, h, w)


def _default_vmem_limit():
    """Explicit VMEM budget (review): leave headroom below physical capacity."""
    try:
        cap = pltpu.get_tpu_info().vmem_capacity_bytes
        return int(min(100 * 1024 * 1024, cap - 8 * 1024 * 1024))
    except Exception:
        return None      # fall back to the Mosaic default scoped limit


def transformer_att_pallas(feats0, feats1, params, nheads, add_posEnc,
                           mxu_dtype=jnp.bfloat16):
    """Mirrors Transformer_att.forward; one fused pallas_call for the whole stack.

    mxu_dtype: MXU operand dtype (accumulation is always f32).  bf16 is the default
    (2-3x MXU throughput on v6e/v7x); pass jnp.float32 for strict reference numerics.
    """
    b, c, h, w = feats0.shape
    L = h * w
    n_total = len(params)
    assert n_total % 2 == 0, "layer_names is ['self', 'cross'] * num_layers"
    n_pairs = n_total // 2

    if add_posEnc:
        pe = make_pos_encoding(c, h, w)
        feats0 = feats0 + pe
        feats1 = feats1 + pe

    # 'n c h w -> n (h w) c'; both streams stacked along rows: (N, 2L, C)
    f0 = jnp.transpose(feats0, (0, 2, 3, 1)).reshape(b, L, c)
    f1 = jnp.transpose(feats1, (0, 2, 3, 1)).reshape(b, L, c)
    x = jnp.concatenate([f0, f1], axis=1)

    # loop-invariant block-diagonal head mask, built once outside the kernel
    d = c // nheads
    hid = jnp.arange(c, dtype=jnp.int32) // d
    mask = (hid[:, None] == hid[None, :]).astype(jnp.float32)

    # One-time wrapper cost: pre-transpose, fuse K|V, and stack weights per layer.
    Wq = jnp.stack([p['wq'].T for p in params])                        # (2P, C, C)
    Wkv = jnp.stack([jnp.concatenate([p['wk'].T, p['wv'].T], axis=1)
                     for p in params])                                 # (2P, C, 2C)
    Wm = jnp.stack([p['wm'].T for p in params])                        # (2P, C, C)
    W1 = jnp.stack([p['w1'].T for p in params])                        # (2P, 2C, 2C)
    W2 = jnp.stack([p['w2'].T for p in params])                        # (2P, 2C, C)
    G1 = jnp.stack([p['g1'].reshape(1, c) for p in params])            # (2P, 1, C)
    B1 = jnp.stack([p['b1'].reshape(1, c) for p in params])
    G2 = jnp.stack([p['g2'].reshape(1, c) for p in params])
    B2 = jnp.stack([p['b2'].reshape(1, c) for p in params])

    # features: index_map ignores the layer axis -> DMA'd once per batch element only
    feat_spec = pl.BlockSpec((1, 2 * L, c), lambda bb, ll: (bb, 0, 0))
    mask_spec = pl.BlockSpec((c, c), lambda bb, ll: (0, 0))
    # weights: one (self, cross) pair per grid step along the layer-pair axis
    wcc_spec = pl.BlockSpec((2, c, c), lambda bb, ll: (ll, 0, 0))
    wkv_spec = pl.BlockSpec((2, c, 2 * c), lambda bb, ll: (ll, 0, 0))
    w1_spec = pl.BlockSpec((2, 2 * c, 2 * c), lambda bb, ll: (ll, 0, 0))
    w2_spec = pl.BlockSpec((2, 2 * c, c), lambda bb, ll: (ll, 0, 0))
    vec_spec = pl.BlockSpec((2, 1, c), lambda bb, ll: (ll, 0, 0))

    # advisory cost estimate so XLA overlaps the surrounding transposes / pos-enc add
    macs = 13 * L * c * c * 2 * n_total * b        # ~13 CxC-class matmuls per (L,C) stream-layer
    cost = pl.CostEstimate(
        flops=2 * macs,
        transcendentals=3 * L * c * 2 * n_total * b,
        bytes_accessed=4 * (2 * b * 2 * L * c + n_total * (10 * c * c + 4 * c) + c * c))

    out = pl.pallas_call(
        functools.partial(transformer_pair_kernel, seq_len=L, mxu_dtype=mxu_dtype),
        out_shape=jax.ShapeDtypeStruct((b, 2 * L, c), feats0.dtype),
        grid=(b, n_pairs),
        in_specs=[feat_spec, mask_spec, wcc_spec, wkv_spec, wcc_spec,
                  vec_spec, vec_spec, w1_spec, w2_spec, vec_spec, vec_spec],
        out_specs=feat_spec,
        compiler_params=pltpu.CompilerParams(
            dimension_semantics=("parallel", "arbitrary"),
            vmem_limit_bytes=_default_vmem_limit()),
        cost_estimate=cost,
    )(x, mask, Wq, Wkv, Wm, G1, B1, W1, W2, G2, B2)

    out0 = jnp.transpose(out[:, :L], (0, 2, 1)).reshape(b, c, h, w)
    out1 = jnp.transpose(out[:, L:], (0, 2, 1)).reshape(b, c, h, w)
    return out0, out1


# -----------------------------------------------------------------------------
# Param init (mirrors the PyTorch module: xavier_uniform on >1-dim params)
# -----------------------------------------------------------------------------
def xavier_uniform(key, shape):
    fan_out, fan_in = shape
    limit = math.sqrt(6.0 / (fan_in + fan_out))
    return jax.random.uniform(key, shape, jnp.float32, -limit, limit)


def init_transformer_params(key, d_model, num_layers):
    """One param dict per layer; layer_names = ['self','cross'] * num_layers."""
    C = d_model
    n_layers = 2 * num_layers
    params = []
    keys = jax.random.split(key, n_layers)
    for lk in keys:
        k = jax.random.split(lk, 6)
        params.append(dict(
            wq=xavier_uniform(k[0], (C, C)),
            wk=xavier_uniform(k[1], (C, C)),
            wv=xavier_uniform(k[2], (C, C)),
            wm=xavier_uniform(k[3], (C, C)),
            w1=xavier_uniform(k[4], (2 * C, 2 * C)),
            w2=xavier_uniform(k[5], (C, 2 * C)),
            g1=jnp.ones((C,), jnp.float32), b1=jnp.zeros((C,), jnp.float32),
            g2=jnp.ones((C,), jnp.float32), b2=jnp.zeros((C,), jnp.float32),
        ))
    return params


# -----------------------------------------------------------------------------
# Pure-JAX reference (numerical check of the Pallas kernel)
# -----------------------------------------------------------------------------
def encoder_layer_ref(x, s, p, nheads):
    N, L, C = x.shape
    H, D = nheads, C // nheads
    q = (x @ p['wq'].T).reshape(N, L, H, D)
    k = (s @ p['wk'].T).reshape(N, L, H, D)
    v = (s @ p['wv'].T).reshape(N, L, H, D)
    Q = jnp.where(q > 0, q + 1.0, jnp.exp(q))
    K = jnp.where(k > 0, k + 1.0, jnp.exp(k))
    v = v / L
    KV = jnp.einsum('nshd,nshv->nhdv', K, v)
    Z = 1.0 / (jnp.einsum('nlhd,nhd->nlh', Q, K.sum(axis=1)) + 1e-6)
    msg = jnp.einsum('nlhd,nhdv,nlh->nlhv', Q, KV, Z) * L
    msg = msg.reshape(N, L, C) @ p['wm'].T
    mu = msg.mean(-1, keepdims=True)
    var = ((msg - mu) ** 2).mean(-1, keepdims=True)
    msg = (msg - mu) / jnp.sqrt(var + 1e-5) * p['g1'] + p['b1']
    h1 = jnp.maximum(jnp.concatenate([x, msg], -1) @ p['w1'].T, 0.0)
    h2 = h1 @ p['w2'].T
    mu = h2.mean(-1, keepdims=True)
    var = ((h2 - mu) ** 2).mean(-1, keepdims=True)
    h2 = (h2 - mu) / jnp.sqrt(var + 1e-5) * p['g2'] + p['b2']
    return x + h2


def transformer_att_ref(feats0, feats1, params, nheads, add_posEnc):
    b, c, h, w = feats0.shape
    if add_posEnc:
        pe = make_pos_encoding(c, h, w)
        feats0 = feats0 + pe
        feats1 = feats1 + pe
    f0 = jnp.transpose(feats0, (0, 2, 3, 1)).reshape(b, h * w, c)
    f1 = jnp.transpose(feats1, (0, 2, 3, 1)).reshape(b, h * w, c)
    names = ['self', 'cross'] * (len(params) // 2)
    for p, name in zip(params, names):
        if name == 'self':
            f0 = encoder_layer_ref(f0, f0, p, nheads)
            f1 = encoder_layer_ref(f1, f1, p, nheads)
        else:
            f0, f1 = (encoder_layer_ref(f0, f1, p, nheads),
                      encoder_layer_ref(f1, f0, p, nheads))
    return (jnp.transpose(f0, (0, 2, 1)).reshape(b, c, h, w),
            jnp.transpose(f1, (0, 2, 1)).reshape(b, c, h, w))


if __name__ == "__main__":
    key = jax.random.PRNGKey(0)
    B, C, Himg, Wimg = 2, 32, 8, 8      # d_model=32, seq len L = 64
    num_layers = 1                      # -> layer_names = ['self', 'cross']
    nheads = 8
    add_posEnc = True

    k0, k1, kp = jax.random.split(key, 3)
    feats0 = jax.random.normal(k0, (B, C, Himg, Wimg), jnp.float32)
    feats1 = jax.random.normal(k1, (B, C, Himg, Wimg), jnp.float32)
    params = init_transformer_params(kp, C, num_layers)

    # pure-JAX reference of the PyTorch forward
    with jax.default_matmul_precision("float32"):
        ref0, ref1 = transformer_att_ref(feats0, feats1, params, nheads, add_posEnc)

    # strict-numerics path: f32 MXU operands
    out0, out1 = transformer_att_pallas(feats0, feats1, params, nheads, add_posEnc,
                                        mxu_dtype=jnp.float32)
    jax.block_until_ready((out0, out1))
    assert out0.shape == (B, C, Himg, Wimg) and out1.shape == (B, C, Himg, Wimg)
    assert jnp.allclose(out0, ref0, atol=5e-2, rtol=5e-2)
    assert jnp.allclose(out1, ref1, atol=5e-2, rtol=5e-2)

    # default fast path: bf16 MXU operands, f32 accumulation (looser tolerance)
    bo0, bo1 = transformer_att_pallas(feats0, feats1, params, nheads, add_posEnc)
    jax.block_until_ready((bo0, bo1))
    assert bo0.shape == (B, C, Himg, Wimg) and bo1.shape == (B, C, Himg, Wimg)
    assert jnp.allclose(bo0, ref0, atol=1.5e-1, rtol=1.5e-1)
    assert jnp.allclose(bo1, ref1, atol=1.5e-1, rtol=1.5e-1)

    print("KERNEL_OK")
</pallas_src>

<mosaic_0001>
module attributes {stable_mosaic.version = 11 : i64} {
  func.func @transformer_pair_kernel(%arg0: i32, %arg1: i32, %arg2: memref<1x128x32xf32, #tpu.memory_space<vmem>>, %arg3: memref<32x32xf32, #tpu.memory_space<vmem>>, %arg4: memref<2x32x32xf32, #tpu.memory_space<vmem>>, %arg5: memref<2x32x64xf32, #tpu.memory_space<vmem>>, %arg6: memref<2x32x32xf32, #tpu.memory_space<vmem>>, %arg7: memref<2x1x32xf32, #tpu.memory_space<vmem>>, %arg8: memref<2x1x32xf32, #tpu.memory_space<vmem>>, %arg9: memref<2x64x64xf32, #tpu.memory_space<vmem>>, %arg10: memref<2x64x32xf32, #tpu.memory_space<vmem>>, %arg11: memref<2x1x32xf32, #tpu.memory_space<vmem>>, %arg12: memref<2x1x32xf32, #tpu.memory_space<vmem>>, %arg13: memref<1x128x32xf32, #tpu.memory_space<vmem>>) attributes {dimension_semantics = [#tpu.dimension_semantics<parallel>, #tpu.dimension_semantics<arbitrary>], iteration_bounds = array<i64: 2, 1>, scalar_prefetch = 0 : i64, scratch_operands = 0 : i64, tpu.core_type = #tpu.core_type<tc>, window_params = [{transform_indices = @transform_0, window_bounds = array<i64: 1, 128, 32>}, {pipeline_mode = #tpu.pipeline_mode<synchronous>, transform_indices = @transform_1, window_bounds = array<i64: 32, 32>}, {transform_indices = @transform_2, window_bounds = array<i64: 2, 32, 32>}, {transform_indices = @transform_3, window_bounds = array<i64: 2, 32, 64>}, {transform_indices = @transform_4, window_bounds = array<i64: 2, 32, 32>}, {transform_indices = @transform_5, window_bounds = array<i64: 2, 1, 32>}, {transform_indices = @transform_6, window_bounds = array<i64: 2, 1, 32>}, {transform_indices = @transform_7, window_bounds = array<i64: 2, 64, 64>}, {transform_indices = @transform_8, window_bounds = array<i64: 2, 64, 32>}, {transform_indices = @transform_9, window_bounds = array<i64: 2, 1, 32>}, {transform_indices = @transform_10, window_bounds = array<i64: 2, 1, 32>}, {transform_indices = @transform_11, window_bounds = array<i64: 1, 128, 32>}]} {
    %c0_i32 = arith.constant 0 : i32
    %0 = arith.cmpi eq, %arg1, %c0_i32 : i32
    %1 = arith.extui %0 : i1 to i32
    %c0_i32_0 = arith.constant 0 : i32
    %2 = arith.cmpi ne, %1, %c0_i32_0 : i32
    scf.if %2 {
      %c0_120 = arith.constant 0 : index
      %c0_121 = arith.constant 0 : index
      %c0_122 = arith.constant 0 : index
      %244 = vector.load %arg2[%c0_120, %c0_121, %c0_122] : memref<1x128x32xf32, #tpu.memory_space<vmem>>, vector<1x128x32xf32>
      %c0_123 = arith.constant 0 : index
      %c0_124 = arith.constant 0 : index
      %c0_125 = arith.constant 0 : index
      %245 = vector.load %arg13[%c0_123, %c0_124, %c0_125] : memref<1x128x32xf32, #tpu.memory_space<vmem>>, vector<1x128x32xf32>
      tpu.vector_store %arg13[%c0_123, %c0_124, %c0_125], %244 {strides = array<i32>} : memref<1x128x32xf32, #tpu.memory_space<vmem>>, vector<1x128x32xf32>,
    } else {
    }
    %c0 = arith.constant 0 : index
    %c0_1 = arith.constant 0 : index
    %3 = vector.load %arg3[%c0, %c0_1] : memref<32x32xf32, #tpu.memory_space<vmem>>, vector<32x32xf32>
    %c0_2 = arith.constant 0 : index
    %c0_3 = arith.constant 0 : index
    %c0_4 = arith.constant 0 : index
    %4 = vector.load %arg13[%c0_2, %c0_3, %c0_4] : memref<1x128x32xf32, #tpu.memory_space<vmem>>, vector<1x128x32xf32>
    %5 = vector.shape_cast %4 : vector<1x128x32xf32> to vector<128x32xf32>
    %c0_5 = arith.constant 0 : index
    %c0_6 = arith.constant 0 : index
    %c0_7 = arith.constant 0 : index
    %6 = vector.load %arg4[%c0_5, %c0_6, %c0_7] : memref<2x32x32xf32, #tpu.memory_space<vmem>>, vector<1x32x32xf32>
    %7 = vector.shape_cast %6 : vector<1x32x32xf32> to vector<32x32xf32>
    %c0_8 = arith.constant 0 : index
    %c0_9 = arith.constant 0 : index
    %c0_10 = arith.constant 0 : index
    %8 = vector.load %arg5[%c0_8, %c0_9, %c0_10] : memref<2x32x64xf32, #tpu.memory_space<vmem>>, vector<1x32x64xf32>
    %9 = vector.shape_cast %8 : vector<1x32x64xf32> to vector<32x64xf32>
    %c0_11 = arith.constant 0 : index
    %c0_12 = arith.constant 0 : index
    %c0_13 = arith.constant 0 : index
    %10 = vector.load %arg6[%c0_11, %c0_12, %c0_13] : memref<2x32x32xf32, #tpu.memory_space<vmem>>, vector<1x32x32xf32>
    %11 = vector.shape_cast %10 : vector<1x32x32xf32> to vector<32x32xf32>
    %c0_14 = arith.constant 0 : index
    %c0_15 = arith.constant 0 : index
    %c0_16 = arith.constant 0 : index
    %12 = vector.load %arg7[%c0_14, %c0_15, %c0_16] : memref<2x1x32xf32, #tpu.memory_space<vmem>>, vector<1x1x32xf32>
    %13 = vector.shape_cast %12 : vector<1x1x32xf32> to vector<1x32xf32>
    %c0_17 = arith.constant 0 : index
    %c0_18 = arith.constant 0 : index
    %c0_19 = arith.constant 0 : index
    %14 = vector.load %arg8[%c0_17, %c0_18, %c0_19] : memref<2x1x32xf32, #tpu.memory_space<vmem>>, vector<1x1x32xf32>
    %15 = vector.shape_cast %14 : vector<1x1x32xf32> to vector<1x32xf32>
    %c0_20 = arith.constant 0 : index
    %c0_21 = arith.constant 0 : index
    %c0_22 = arith.constant 0 : index
    %16 = vector.load %arg9[%c0_20, %c0_21, %c0_22] : memref<2x64x64xf32, #tpu.memory_space<vmem>>, vector<1x64x64xf32>
    %17 = vector.shape_cast %16 : vector<1x64x64xf32> to vector<64x64xf32>
    %c0_23 = arith.constant 0 : index
    %c0_24 = arith.constant 0 : index
    %c0_25 = arith.constant 0 : index
    %18 = vector.load %arg10[%c0_23, %c0_24, %c0_25] : memref<2x64x32xf32, #tpu.memory_space<vmem>>, vector<1x64x32xf32>
    %19 = vector.shape_cast %18 : vector<1x64x32xf32> to vector<64x32xf32>
    %c0_26 = arith.constant 0 : index
    %c0_27 = arith.constant 0 : index
    %c0_28 = arith.constant 0 : index
    %20 = vector.load %arg11[%c0_26, %c0_27, %c0_28] : memref<2x1x32xf32, #tpu.memory_space<vmem>>, vector<1x1x32xf32>
    %21 = vector.shape_cast %20 : vector<1x1x32xf32> to vector<1x32xf32>
    %c0_29 = arith.constant 0 : index
    %c0_30 = arith.constant 0 : index
    %c0_31 = arith.constant 0 : index
    %22 = vector.load %arg12[%c0_29, %c0_30, %c0_31] : memref<2x1x32xf32, #tpu.memory_space<vmem>>, vector<1x1x32xf32>
    %23 = vector.shape_cast %22 : vector<1x1x32xf32> to vector<1x32xf32>
    %cst = arith.constant dense<0.000000e+00> : vector<128x32xf32>
    %24 = tpu.matmul %5, %7, %cst {dimension_numbers = #tpu.dot_dimension_numbers<[1], [0], [0], [1], [0, 0, 1, 1], [], []>} : vector<128x32xf32>, vector<32x32xf32>, vector<128x32xf32> -> vector<128x32xf32>
    %cst_32 = arith.constant dense<0.000000e+00> : vector<128x64xf32>
    %25 = tpu.matmul %5, %9, %cst_32 {dimension_numbers = #tpu.dot_dimension_numbers<[1], [0], [0], [1], [0, 0, 1, 1], [], []>} : vector<128x32xf32>, vector<32x64xf32>, vector<128x64xf32> -> vector<128x64xf32>
    %26 = vector.extract_strided_slice %25 {offsets = [0, 0], sizes = [128, 32], strides = [1, 1]} : vector<128x64xf32> to vector<128x32xf32>
    %27 = vector.extract_strided_slice %25 {offsets = [0, 32], sizes = [128, 32], strides = [1, 1]} : vector<128x64xf32> to vector<128x32xf32>
    %cst_33 = arith.constant 0.000000e+00 : f32
    %28 = vector.broadcast %cst_33 : f32 to vector<128x32xf32>
    %29 = arith.cmpf ogt, %24, %28 : vector<128x32xf32>
    %cst_34 = arith.constant 1.000000e+00 : f32
    %30 = vector.broadcast %cst_34 : f32 to vector<128x32xf32>
    %31 = arith.addf %24, %30 : vector<128x32xf32>
    %32 = math.exp %24 : vector<128x32xf32>
    %33 = arith.select %29, %31, %32 : vector<128x32xi1>, vector<128x32xf32>
    %cst_35 = arith.constant 0.000000e+00 : f32
    %34 = vector.broadcast %cst_35 : f32 to vector<128x32xf32>
    %35 = arith.cmpf ogt, %26, %34 : vector<128x32xf32>
    %cst_36 = arith.constant 1.000000e+00 : f32
    %36 = vector.broadcast %cst_36 : f32 to vector<128x32xf32>
    %37 = arith.addf %26, %36 : vector<128x32xf32>
    %38 = math.exp %26 : vector<128x32xf32>
    %39 = arith.select %35, %37, %38 : vector<128x32xi1>, vector<128x32xf32>
    %40 = vector.extract_strided_slice %33 {offsets = [0, 0], sizes = [64, 32], strides = [1, 1]} : vector<128x32xf32> to vector<64x32xf32>
    %41 = vector.extract_strided_slice %39 {offsets = [0, 0], sizes = [64, 32], strides = [1, 1]} : vector<128x32xf32> to vector<64x32xf32>
    %42 = vector.extract_strided_slice %27 {offsets = [0, 0], sizes = [64, 32], strides = [1, 1]} : vector<128x32xf32> to vector<64x32xf32>
    %cst_37 = arith.constant dense<0.000000e+00> : vector<32x32xf32>
    %43 = tpu.matmul %41, %42, %cst_37 {dimension_numbers = #tpu.dot_dimension_numbers<[0], [0], [1], [1], [0, 1, 1, 1], [], []>} : vector<64x32xf32>, vector<64x32xf32>, vector<32x32xf32> -> vector<32x32xf32>
    %44 = arith.mulf %43, %3 : vector<32x32xf32>
    %cst_38 = arith.constant dense<0.000000e+00> : vector<32xf32>
    %45 = vector.multi_reduction <add>, %41, %cst_38 [0] : vector<64x32xf32> to vector<32xf32>
    %46 = vector.shape_cast %45 : vector<32xf32> to vector<1x32xf32>
    %cst_39 = arith.constant dense<0.000000e+00> : vector<64x32xf32>
    %47 = tpu.matmul %40, %44, %cst_39 {dimension_numbers = #tpu.dot_dimension_numbers<[1], [0], [0], [1], [0, 0, 1, 1], [], []>} : vector<64x32xf32>, vector<32x32xf32>, vector<64x32xf32> -> vector<64x32xf32>
    %48 = vector.broadcast %46 : vector<1x32xf32> to vector<64x32xf32>
    %49 = arith.mulf %40, %48 : vector<64x32xf32>
    %cst_40 = arith.constant dense<0.000000e+00> : vector<64x32xf32>
    %50 = tpu.matmul %49, %3, %cst_40 {dimension_numbers = #tpu.dot_dimension_numbers<[1], [0], [0], [1], [0, 0, 1, 1], [], []>} : vector<64x32xf32>, vector<32x32xf32>, vector<64x32xf32> -> vector<64x32xf32>
    %cst_41 = arith.constant 9.99999997E-7 : f32
    %51 = vector.broadcast %cst_41 : f32 to vector<64x32xf32>
    %52 = arith.addf %50, %51 : vector<64x32xf32>
    %53 = tpu.reciprocal %52 {approx = true} : vector<64x32xf32> -> vector<64x32xf32>
    %54 = arith.mulf %47, %53 : vector<64x32xf32>
    %55 = vector.extract_strided_slice %33 {offsets = [64, 0], sizes = [64, 32], strides = [1, 1]} : vector<128x32xf32> to vector<64x32xf32>
    %56 = vector.extract_strided_slice %39 {offsets = [64, 0], sizes = [64, 32], strides = [1, 1]} : vector<128x32xf32> to vector<64x32xf32>
    %57 = vector.extract_strided_slice %27 {offsets = [64, 0], sizes = [64, 32], strides = [1, 1]} : vector<128x32xf32> to vector<64x32xf32>
    %cst_42 = arith.constant dense<0.000000e+00> : vector<32x32xf32>
    %58 = tpu.matmul %56, %57, %cst_42 {dimension_numbers = #tpu.dot_dimension_numbers<[0], [0], [1], [1], [0, 1, 1, 1], [], []>} : vector<64x32xf32>, vector<64x32xf32>, vector<32x32xf32> -> vector<32x32xf32>
    %59 = arith.mulf %58, %3 : vector<32x32xf32>
    %cst_43 = arith.constant dense<0.000000e+00> : vector<32xf32>
    %60 = vector.multi_reduction <add>, %56, %cst_43 [0] : vector<64x32xf32> to vector<32xf32>
    %61 = vector.shape_cast %60 : vector<32xf32> to vector<1x32xf32>
    %cst_44 = arith.constant dense<0.000000e+00> : vector<64x32xf32>
    %62 = tpu.matmul %55, %59, %cst_44 {dimension_numbers = #tpu.dot_dimension_numbers<[1], [0], [0], [1], [0, 0, 1, 1], [], []>} : vector<64x32xf32>, vector<32x32xf32>, vector<64x32xf32> -> vector<64x32xf32>
    %63 = vector.broadcast %61 : vector<1x32xf32> to vector<64x32xf32>
    %64 = arith.mulf %55, %63 : vector<64x32xf32>
    %cst_45 = arith.constant dense<0.000000e+00> : vector<64x32xf32>
    %65 = tpu.matmul %64, %3, %cst_45 {dimension_numbers = #tpu.dot_dimension_numbers<[1], [0], [0], [1], [0, 0, 1, 1], [], []>} : vector<64x32xf32>, vector<32x32xf32>, vector<64x32xf32> -> vector<64x32xf32>
    %cst_46 = arith.constant 9.99999997E-7 : f32
    %66 = vector.broadcast %cst_46 : f32 to vector<64x32xf32>
    %67 = arith.addf %65, %66 : vector<64x32xf32>
    %68 = tpu.reciprocal %67 {approx = true} : vector<64x32xf32> -> vector<64x32xf32>
    %69 = arith.mulf %62, %68 : vector<64x32xf32>
    %70 = tpu.concatenate %54, %69 in 0 : vector<64x32xf32>, vector<64x32xf32> -> vector<128x32xf32>
    %cst_47 = arith.constant dense<0.000000e+00> : vector<128x32xf32>
    %71 = tpu.matmul %70, %11, %cst_47 {dimension_numbers = #tpu.dot_dimension_numbers<[1], [0], [0], [1], [0, 0, 1, 1], [], []>} : vector<128x32xf32>, vector<32x32xf32>, vector<128x32xf32> -> vector<128x32xf32>
    %cst_48 = arith.constant dense<0.000000e+00> : vector<128xf32>
    %72 = vector.multi_reduction <add>, %71, %cst_48 [1] : vector<128x32xf32> to vector<128xf32>
    %73 = vector.shape_cast %72 : vector<128xf32> to vector<128x1xf32>
    %cst_49 = arith.constant 3.200000e+01 : f32
    %74 = vector.broadcast %cst_49 : f32 to vector<128x1xf32>
    %75 = arith.divf %73, %74 : vector<128x1xf32>
    %76 = vector.broadcast %75 : vector<128x1xf32> to vector<128x32xf32>
    %77 = arith.subf %71, %76 : vector<128x32xf32>
    %78 = arith.mulf %77, %77 : vector<128x32xf32>
    %cst_50 = arith.constant dense<0.000000e+00> : vector<128xf32>
    %79 = vector.multi_reduction <add>, %78, %cst_50 [1] : vector<128x32xf32> to vector<128xf32>
    %80 = vector.shape_cast %79 : vector<128xf32> to vector<128x1xf32>
    %cst_51 = arith.constant 3.200000e+01 : f32
    %81 = vector.broadcast %cst_51 : f32 to vector<128x1xf32>
    %82 = arith.divf %80, %81 : vector<128x1xf32>
    %83 = vector.broadcast %75 : vector<128x1xf32> to vector<128x32xf32>
    %84 = arith.subf %71, %83 : vector<128x32xf32>
    %cst_52 = arith.constant 9.99999974E-6 : f32
    %85 = vector.broadcast %cst_52 : f32 to vector<128x1xf32>
    %86 = arith.addf %82, %85 : vector<128x1xf32>
    %87 = math.rsqrt %86 : vector<128x1xf32>
    %88 = vector.broadcast %87 : vector<128x1xf32> to vector<128x32xf32>
    %89 = arith.mulf %84, %88 : vector<128x32xf32>
    %90 = vector.broadcast %13 : vector<1x32xf32> to vector<128x32xf32>
    %91 = arith.mulf %89, %90 : vector<128x32xf32>
    %92 = vector.broadcast %15 : vector<1x32xf32> to vector<128x32xf32>
    %93 = arith.addf %91, %92 : vector<128x32xf32>
    %94 = tpu.concatenate %5, %93 in 1 : vector<128x32xf32>, vector<128x32xf32> -> vector<128x64xf32>
    %cst_53 = arith.constant dense<0.000000e+00> : vector<128x64xf32>
    %95 = tpu.matmul %94, %17, %cst_53 {dimension_numbers = #tpu.dot_dimension_numbers<[1], [0], [0], [1], [0, 0, 1, 1], [], []>} : vector<128x64xf32>, vector<64x64xf32>, vector<128x64xf32> -> vector<128x64xf32>
    %cst_54 = arith.constant 0.000000e+00 : f32
    %96 = vector.broadcast %cst_54 : f32 to vector<128x64xf32>
    %97 = arith.maximumf %95, %96 : vector<128x64xf32>
    %cst_55 = arith.constant dense<0.000000e+00> : vector<128x32xf32>
    %98 = tpu.matmul %97, %19, %cst_55 {dimension_numbers = #tpu.dot_dimension_numbers<[1], [0], [0], [1], [0, 0, 1, 1], [], []>} : vector<128x64xf32>, vector<64x32xf32>, vector<128x32xf32> -> vector<128x32xf32>
    %cst_56 = arith.constant dense<0.000000e+00> : vector<128xf32>
    %99 = vector.multi_reduction <add>, %98, %cst_56 [1] : vector<128x32xf32> to vector<128xf32>
    %100 = vector.shape_cast %99 : vector<128xf32> to vector<128x1xf32>
    %cst_57 = arith.constant 3.200000e+01 : f32
    %101 = vector.broadcast %cst_57 : f32 to vector<128x1xf32>
    %102 = arith.divf %100, %101 : vector<128x1xf32>
    %103 = vector.broadcast %102 : vector<128x1xf32> to vector<128x32xf32>
    %104 = arith.subf %98, %103 : vector<128x32xf32>
    %105 = arith.mulf %104, %104 : vector<128x32xf32>
    %cst_58 = arith.constant dense<0.000000e+00> : vector<128xf32>
    %106 = vector.multi_reduction <add>, %105, %cst_58 [1] : vector<128x32xf32> to vector<128xf32>
    %107 = vector.shape_cast %106 : vector<128xf32> to vector<128x1xf32>
    %cst_59 = arith.constant 3.200000e+01 : f32
    %108 = vector.broadcast %cst_59 : f32 to vector<128x1xf32>
    %109 = arith.divf %107, %108 : vector<128x1xf32>
    %110 = vector.broadcast %102 : vector<128x1xf32> to vector<128x32xf32>
    %111 = arith.subf %98, %110 : vector<128x32xf32>
    %cst_60 = arith.constant 9.99999974E-6 : f32
    %112 = vector.broadcast %cst_60 : f32 to vector<128x1xf32>
    %113 = arith.addf %109, %112 : vector<128x1xf32>
    %114 = math.rsqrt %113 : vector<128x1xf32>
    %115 = vector.broadcast %114 : vector<128x1xf32> to vector<128x32xf32>
    %116 = arith.mulf %111, %115 : vector<128x32xf32>
    %117 = vector.broadcast %21 : vector<1x32xf32> to vector<128x32xf32>
    %118 = arith.mulf %116, %117 : vector<128x32xf32>
    %119 = vector.broadcast %23 : vector<1x32xf32> to vector<128x32xf32>
    %120 = arith.addf %118, %119 : vector<128x32xf32>
    %121 = arith.addf %5, %120 : vector<128x32xf32>
    %122 = vector.extract_strided_slice %121 {offsets = [64, 0], sizes = [64, 32], strides = [1, 1]} : vector<128x32xf32> to vector<64x32xf32>
    %123 = vector.extract_strided_slice %121 {offsets = [0, 0], sizes = [64, 32], strides = [1, 1]} : vector<128x32xf32> to vector<64x32xf32>
    %124 = tpu.concatenate %122, %123 in 0 : vector<64x32xf32>, vector<64x32xf32> -> vector<128x32xf32>
    %c1 = arith.constant 1 : index
    %c0_61 = arith.constant 0 : index
    %c0_62 = arith.constant 0 : index
    %125 = vector.load %arg4[%c1, %c0_61, %c0_62] : memref<2x32x32xf32, #tpu.memory_space<vmem>>, vector<1x32x32xf32>
    %126 = vector.shape_cast %125 : vector<1x32x32xf32> to vector<32x32xf32>
    %c1_63 = arith.constant 1 : index
    %c0_64 = arith.constant 0 : index
    %c0_65 = arith.constant 0 : index
    %127 = vector.load %arg5[%c1_63, %c0_64, %c0_65] : memref<2x32x64xf32, #tpu.memory_space<vmem>>, vector<1x32x64xf32>
    %128 = vector.shape_cast %127 : vector<1x32x64xf32> to vector<32x64xf32>
    %c1_66 = arith.constant 1 : index
    %c0_67 = arith.constant 0 : index
    %c0_68 = arith.constant 0 : index
    %129 = vector.load %arg6[%c1_66, %c0_67, %c0_68] : memref<2x32x32xf32, #tpu.memory_space<vmem>>, vector<1x32x32xf32>
    %130 = vector.shape_cast %129 : vector<1x32x32xf32> to vector<32x32xf32>
    %c1_69 = arith.constant 1 : index
    %c0_70 = arith.constant 0 : index
    %c0_71 = arith.constant 0 : index
    %131 = vector.load %arg7[%c1_69, %c0_70, %c0_71] : memref<2x1x32xf32, #tpu.memory_space<vmem>>, vector<1x1x32xf32>
    %132 = vector.shape_cast %131 : vector<1x1x32xf32> to vector<1x32xf32>
    %c1_72 = arith.constant 1 : index
    %c0_73 = arith.constant 0 : index
    %c0_74 = arith.constant 0 : index
    %133 = vector.load %arg8[%c1_72, %c0_73, %c0_74] : memref<2x1x32xf32, #tpu.memory_space<vmem>>, vector<1x1x32xf32>
    %134 = vector.shape_cast %133 : vector<1x1x32xf32> to vector<1x32xf32>
    %c1_75 = arith.constant 1 : index
    %c0_76 = arith.constant 0 : index
    %c0_77 = arith.constant 0 : index
    %135 = vector.load %arg9[%c1_75, %c0_76, %c0_77] : memref<2x64x64xf32, #tpu.memory_space<vmem>>, vector<1x64x64xf32>
    %136 = vector.shape_cast %135 : vector<1x64x64xf32> to vector<64x64xf32>
    %c1_78 = arith.constant 1 : index
    %c0_79 = arith.constant 0 : index
    %c0_80 = arith.constant 0 : index
    %137 = vector.load %arg10[%c1_78, %c0_79, %c0_80] : memref<2x64x32xf32, #tpu.memory_space<vmem>>, vector<1x64x32xf32>
    %138 = vector.shape_cast %137 : vector<1x64x32xf32> to vector<64x32xf32>
    %c1_81 = arith.constant 1 : index
    %c0_82 = arith.constant 0 : index
    %c0_83 = arith.constant 0 : index
    %139 = vector.load %arg11[%c1_81, %c0_82, %c0_83] : memref<2x1x32xf32, #tpu.memory_space<vmem>>, vector<1x1x32xf32>
    %140 = vector.shape_cast %139 : vector<1x1x32xf32> to vector<1x32xf32>
    %c1_84 = arith.constant 1 : index
    %c0_85 = arith.constant 0 : index
    %c0_86 = arith.constant 0 : index
    %141 = vector.load %arg12[%c1_84, %c0_85, %c0_86] : memref<2x1x32xf32, #tpu.memory_space<vmem>>, vector<1x1x32xf32>
    %142 = vector.shape_cast %141 : vector<1x1x32xf32> to vector<1x32xf32>
    %cst_87 = arith.constant dense<0.000000e+00> : vector<128x32xf32>
    %143 = tpu.matmul %121, %126, %cst_87 {dimension_numbers = #tpu.dot_dimension_numbers<[1], [0], [0], [1], [0, 0, 1, 1], [], []>} : vector<128x32xf32>, vector<32x32xf32>, vector<128x32xf32> -> vector<128x32xf32>
    %cst_88 = arith.constant dense<0.000000e+00> : vector<128x64xf32>
    %144 = tpu.matmul %124, %128, %cst_88 {dimension_numbers = #tpu.dot_dimension_numbers<[1], [0], [0], [1], [0, 0, 1, 1], [], []>} : vector<128x32xf32>, vector<32x64xf32>, vector<128x64xf32> -> vector<128x64xf32>
    %145 = vector.extract_strided_slice %144 {offsets = [0, 0], sizes = [128, 32], strides = [1, 1]} : vector<128x64xf32> to vector<128x32xf32>
    %146 = vector.extract_strided_slice %144 {offsets = [0, 32], sizes = [128, 32], strides = [1, 1]} : vector<128x64xf32> to vector<128x32xf32>
    %cst_89 = arith.constant 0.000000e+00 : f32
    %147 = vector.broadcast %cst_89 : f32 to vector<128x32xf32>
    %148 = arith.cmpf ogt, %143, %147 : vector<128x32xf32>
    %cst_90 = arith.constant 1.000000e+00 : f32
    %149 = vector.broadcast %cst_90 : f32 to vector<128x32xf32>
    %150 = arith.addf %143, %149 : vector<128x32xf32>
    %151 = math.exp %143 : vector<128x32xf32>
    %152 = arith.select %148, %150, %151 : vector<128x32xi1>, vector<128x32xf32>
    %cst_91 = arith.constant 0.000000e+00 : f32
    %153 = vector.broadcast %cst_91 : f32 to vector<128x32xf32>
    %154 = arith.cmpf ogt, %145, %153 : vector<128x32xf32>
    %cst_92 = arith.constant 1.000000e+00 : f32
    %155 = vector.broadcast %cst_92 : f32 to vector<128x32xf32>
    %156 = arith.addf %145, %155 : vector<128x32xf32>
    %157 = math.exp %145 : vector<128x32xf32>
    %158 = arith.select %154, %156, %157 : vector<128x32xi1>, vector<128x32xf32>
    %159 = vector.extract_strided_slice %152 {offsets = [0, 0], sizes = [64, 32], strides = [1, 1]} : vector<128x32xf32> to vector<64x32xf32>
    %160 = vector.extract_strided_slice %158 {offsets = [0, 0], sizes = [64, 32], strides = [1, 1]} : vector<128x32xf32> to vector<64x32xf32>
    %161 = vector.extract_strided_slice %146 {offsets = [0, 0], sizes = [64, 32], strides = [1, 1]} : vector<128x32xf32> to vector<64x32xf32>
    %cst_93 = arith.constant dense<0.000000e+00> : vector<32x32xf32>
    %162 = tpu.matmul %160, %161, %cst_93 {dimension_numbers = #tpu.dot_dimension_numbers<[0], [0], [1], [1], [0, 1, 1, 1], [], []>} : vector<64x32xf32>, vector<64x32xf32>, vector<32x32xf32> -> vector<32x32xf32>
    %163 = arith.mulf %162, %3 : vector<32x32xf32>
    %cst_94 = arith.constant dense<0.000000e+00> : vector<32xf32>
    %164 = vector.multi_reduction <add>, %160, %cst_94 [0] : vector<64x32xf32> to vector<32xf32>
    %165 = vector.shape_cast %164 : vector<32xf32> to vector<1x32xf32>
    %cst_95 = arith.constant dense<0.000000e+00> : vector<64x32xf32>
    %166 = tpu.matmul %159, %163, %cst_95 {dimension_numbers = #tpu.dot_dimension_numbers<[1], [0], [0], [1], [0, 0, 1, 1], [], []>} : vector<64x32xf32>, vector<32x32xf32>, vector<64x32xf32> -> vector<64x32xf32>
    %167 = vector.broadcast %165 : vector<1x32xf32> to vector<64x32xf32>
    %168 = arith.mulf %159, %167 : vector<64x32xf32>
    %cst_96 = arith.constant dense<0.000000e+00> : vector<64x32xf32>
    %169 = tpu.matmul %168, %3, %cst_96 {dimension_numbers = #tpu.dot_dimension_numbers<[1], [0], [0], [1], [0, 0, 1, 1], [], []>} : vector<64x32xf32>, vector<32x32xf32>, vector<64x32xf32> -> vector<64x32xf32>
    %cst_97 = arith.constant 9.99999997E-7 : f32
    %170 = vector.broadcast %cst_97 : f32 to vector<64x32xf32>
    %171 = arith.addf %169, %170 : vector<64x32xf32>
    %172 = tpu.reciprocal %171 {approx = true} : vector<64x32xf32> -> vector<64x32xf32>
    %173 = arith.mulf %166, %172 : vector<64x32xf32>
    %174 = vector.extract_strided_slice %152 {offsets = [64, 0], sizes = [64, 32], strides = [1, 1]} : vector<128x32xf32> to vector<64x32xf32>
    %175 = vector.extract_strided_slice %158 {offsets = [64, 0], sizes = [64, 32], strides = [1, 1]} : vector<128x32xf32> to vector<64x32xf32>
    %176 = vector.extract_strided_slice %146 {offsets = [64, 0], sizes = [64, 32], strides = [1, 1]} : vector<128x32xf32> to vector<64x32xf32>
    %cst_98 = arith.constant dense<0.000000e+00> : vector<32x32xf32>
    %177 = tpu.matmul %175, %176, %cst_98 {dimension_numbers = #tpu.dot_dimension_numbers<[0], [0], [1], [1], [0, 1, 1, 1], [], []>} : vector<64x32xf32>, vector<64x32xf32>, vector<32x32xf32> -> vector<32x32xf32>
    %178 = arith.mulf %177, %3 : vector<32x32xf32>
    %cst_99 = arith.constant dense<0.000000e+00> : vector<32xf32>
    %179 = vector.multi_reduction <add>, %175, %cst_99 [0] : vector<64x32xf32> to vector<32xf32>
    %180 = vector.shape_cast %179 : vector<32xf32> to vector<1x32xf32>
    %cst_100 = arith.constant dense<0.000000e+00> : vector<64x32xf32>
    %181 = tpu.matmul %174, %178, %cst_100 {dimension_numbers = #tpu.dot_dimension_numbers<[1], [0], [0], [1], [0, 0, 1, 1], [], []>} : vector<64x32xf32>, vector<32x32xf32>, vector<64x32xf32> -> vector<64x32xf32>
    %182 = vector.broadcast %180 : vector<1x32xf32> to vector<64x32xf32>
    %183 = arith.mulf %174, %182 : vector<64x32xf32>
    %cst_101 = arith.constant dense<0.000000e+00> : vector<64x32xf32>
    %184 = tpu.matmul %183, %3, %cst_101 {dimension_numbers = #tpu.dot_dimension_numbers<[1], [0], [0], [1], [0, 0, 1, 1], [], []>} : vector<64x32xf32>, vector<32x32xf32>, vector<64x32xf32> -> vector<64x32xf32>
    %cst_102 = arith.constant 9.99999997E-7 : f32
    %185 = vector.broadcast %cst_102 : f32 to vector<64x32xf32>
    %186 = arith.addf %184, %185 : vector<64x32xf32>
    %187 = tpu.reciprocal %186 {approx = true} : vector<64x32xf32> -> vector<64x32xf32>
    %188 = arith.mulf %181, %187 : vector<64x32xf32>
    %189 = tpu.concatenate %173, %188 in 0 : vector<64x32xf32>, vector<64x32xf32> -> vector<128x32xf32>
    %cst_103 = arith.constant dense<0.000000e+00> : vector<128x32xf32>
    %190 = tpu.matmul %189, %130, %cst_103 {dimension_numbers = #tpu.dot_dimension_numbers<[1], [0], [0], [1], [0, 0, 1, 1], [], []>} : vector<128x32xf32>, vector<32x32xf32>, vector<128x32xf32> -> vector<128x32xf32>
    %cst_104 = arith.constant dense<0.000000e+00> : vector<128xf32>
    %191 = vector.multi_reduction <add>, %190, %cst_104 [1] : vector<128x32xf32> to vector<128xf32>
    %192 = vector.shape_cast %191 : vector<128xf32> to vector<128x1xf32>
    %cst_105 = arith.constant 3.200000e+01 : f32
    %193 = vector.broadcast %cst_105 : f32 to vector<128x1xf32>
    %194 = arith.divf %192, %193 : vector<128x1xf32>
    %195 = vector.broadcast %194 : vector<128x1xf32> to vector<128x32xf32>
    %196 = arith.subf %190, %195 : vector<128x32xf32>
    %197 = arith.mulf %196, %196 : vector<128x32xf32>
    %cst_106 = arith.constant dense<0.000000e+00> : vector<128xf32>
    %198 = vector.multi_reduction <add>, %197, %cst_106 [1] : vector<128x32xf32> to vector<128xf32>
    %199 = vector.shape_cast %198 : vector<128xf32> to vector<128x1xf32>
    %cst_107 = arith.constant 3.200000e+01 : f32
    %200 = vector.broadcast %cst_107 : f32 to vector<128x1xf32>
    %201 = arith.divf %199, %200 : vector<128x1xf32>
    %202 = vector.broadcast %194 : vector<128x1xf32> to vector<128x32xf32>
    %203 = arith.subf %190, %202 : vector<128x32xf32>
    %cst_108 = arith.constant 9.99999974E-6 : f32
    %204 = vector.broadcast %cst_108 : f32 to vector<128x1xf32>
    %205 = arith.addf %201, %204 : vector<128x1xf32>
    %206 = math.rsqrt %205 : vector<128x1xf32>
    %207 = vector.broadcast %206 : vector<128x1xf32> to vector<128x32xf32>
    %208 = arith.mulf %203, %207 : vector<128x32xf32>
    %209 = vector.broadcast %132 : vector<1x32xf32> to vector<128x32xf32>
    %210 = arith.mulf %208, %209 : vector<128x32xf32>
    %211 = vector.broadcast %134 : vector<1x32xf32> to vector<128x32xf32>
    %212 = arith.addf %210, %211 : vector<128x32xf32>
    %213 = tpu.concatenate %121, %212 in 1 : vector<128x32xf32>, vector<128x32xf32> -> vector<128x64xf32>
    %cst_109 = arith.constant dense<0.000000e+00> : vector<128x64xf32>
    %214 = tpu.matmul %213, %136, %cst_109 {dimension_numbers = #tpu.dot_dimension_numbers<[1], [0], [0], [1], [0, 0, 1, 1], [], []>} : vector<128x64xf32>, vector<64x64xf32>, vector<128x64xf32> -> vector<128x64xf32>
    %cst_110 = arith.constant 0.000000e+00 : f32
    %215 = vector.broadcast %cst_110 : f32 to vector<128x64xf32>
    %216 = arith.maximumf %214, %215 : vector<128x64xf32>
    %cst_111 = arith.constant dense<0.000000e+00> : vector<128x32xf32>
    %217 = tpu.matmul %216, %138, %cst_111 {dimension_numbers = #tpu.dot_dimension_numbers<[1], [0], [0], [1], [0, 0, 1, 1], [], []>} : vector<128x64xf32>, vector<64x32xf32>, vector<128x32xf32> -> vector<128x32xf32>
    %cst_112 = arith.constant dense<0.000000e+00> : vector<128xf32>
    %218 = vector.multi_reduction <add>, %217, %cst_112 [1] : vector<128x32xf32> to vector<128xf32>
    %219 = vector.shape_cast %218 : vector<128xf32> to vector<128x1xf32>
    %cst_113 = arith.constant 3.200000e+01 : f32
    %220 = vector.broadcast %cst_113 : f32 to vector<128x1xf32>
    %221 = arith.divf %219, %220 : vector<128x1xf32>
    %222 = vector.broadcast %221 : vector<128x1xf32> to vector<128x32xf32>
    %223 = arith.subf %217, %222 : vector<128x32xf32>
    %224 = arith.mulf %223, %223 : vector<128x32xf32>
    %cst_114 = arith.constant dense<0.000000e+00> : vector<128xf32>
    %225 = vector.multi_reduction <add>, %224, %cst_114 [1] : vector<128x32xf32> to vector<128xf32>
    %226 = vector.shape_cast %225 : vector<128xf32> to vector<128x1xf32>
    %cst_115 = arith.constant 3.200000e+01 : f32
    %227 = vector.broadcast %cst_115 : f32 to vector<128x1xf32>
    %228 = arith.divf %226, %227 : vector<128x1xf32>
    %229 = vector.broadcast %221 : vector<128x1xf32> to vector<128x32xf32>
    %230 = arith.subf %217, %229 : vector<128x32xf32>
    %cst_116 = arith.constant 9.99999974E-6 : f32
    %231 = vector.broadcast %cst_116 : f32 to vector<128x1xf32>
    %232 = arith.addf %228, %231 : vector<128x1xf32>
    %233 = math.rsqrt %232 : vector<128x1xf32>
    %234 = vector.broadcast %233 : vector<128x1xf32> to vector<128x32xf32>
    %235 = arith.mulf %230, %234 : vector<128x32xf32>
    %236 = vector.broadcast %140 : vector<1x32xf32> to vector<128x32xf32>
    %237 = arith.mulf %235, %236 : vector<128x32xf32>
    %238 = vector.broadcast %142 : vector<1x32xf32> to vector<128x32xf32>
    %239 = arith.addf %237, %238 : vector<128x32xf32>
    %240 = arith.addf %121, %239 : vector<128x32xf32>
    %c0_117 = arith.constant 0 : index
    %c0_118 = arith.constant 0 : index
    %c0_119 = arith.constant 0 : index
    %241 = vector.load %arg13[%c0_117, %c0_118, %c0_119] : memref<1x128x32xf32, #tpu.memory_space<vmem>>, vector<1x128x32xf32>
    %242 = vector.shape_cast %241 : vector<1x128x32xf32> to vector<128x32xf32>
    %243 = vector.shape_cast %240 : vector<128x32xf32> to vector<1x128x32xf32>
    tpu.vector_store %arg13[%c0_117, %c0_118, %c0_119], %243 {strides = array<i32>} : memref<1x128x32xf32, #tpu.memory_space<vmem>>, vector<1x128x32xf32>,
    return
  }
  func.func @transform_0(%arg0: i32, %arg1: i32) -> (i32, i32, i32) {
    %c0_i32 = arith.constant 0 : i32
    %c0_i32_0 = arith.constant 0 : i32
    %c0_i32_1 = arith.constant 0 : i32
    return %arg0, %c0_i32, %c0_i32_0 : i32, i32, i32
  }
  func.func @transform_1(%arg0: i32, %arg1: i32) -> (i32, i32) {
    %c0_i32 = arith.constant 0 : i32
    %c0_i32_0 = arith.constant 0 : i32
    %c0_i32_1 = arith.constant 0 : i32
    return %c0_i32, %c0_i32_0 : i32, i32
  }
  func.func @transform_2(%arg0: i32, %arg1: i32) -> (i32, i32, i32) {
    %c0_i32 = arith.constant 0 : i32
    %c0_i32_0 = arith.constant 0 : i32
    %c0_i32_1 = arith.constant 0 : i32
    return %arg1, %c0_i32, %c0_i32_0 : i32, i32, i32
  }
  func.func @transform_3(%arg0: i32, %arg1: i32) -> (i32, i32, i32) {
    %c0_i32 = arith.constant 0 : i32
    %c0_i32_0 = arith.constant 0 : i32
    %c0_i32_1 = arith.constant 0 : i32
    return %arg1, %c0_i32, %c0_i32_0 : i32, i32, i32
  }
  func.func @transform_4(%arg0: i32, %arg1: i32) -> (i32, i32, i32) {
    %c0_i32 = arith.constant 0 : i32
    %c0_i32_0 = arith.constant 0 : i32
    %c0_i32_1 = arith.constant 0 : i32
    return %arg1, %c0_i32, %c0_i32_0 : i32, i32, i32
  }
  func.func @transform_5(%arg0: i32, %arg1: i32) -> (i32, i32, i32) {
    %c0_i32 = arith.constant 0 : i32
    %c0_i32_0 = arith.constant 0 : i32
    %c0_i32_1 = arith.constant 0 : i32
    return %arg1, %c0_i32, %c0_i32_0 : i32, i32, i32
  }
  func.func @transform_6(%arg0: i32, %arg1: i32) -> (i32, i32, i32) {
    %c0_i32 = arith.constant 0 : i32
    %c0_i32_0 = arith.constant 0 : i32
    %c0_i32_1 = arith.constant 0 : i32
    return %arg1, %c0_i32, %c0_i32_0 : i32, i32, i32
  }
  func.func @transform_7(%arg0: i32, %arg1: i32) -> (i32, i32, i32) {
    %c0_i32 = arith.constant 0 : i32
    %c0_i32_0 = arith.constant 0 : i32
    %c0_i32_1 = arith.constant 0 : i32
    return %arg1, %c0_i32, %c0_i32_0 : i32, i32, i32
  }
  func.func @transform_8(%arg0: i32, %arg1: i32) -> (i32, i32, i32) {
    %c0_i32 = arith.constant 0 : i32
    %c0_i32_0 = arith.constant 0 : i32
    %c0_i32_1 = arith.constant 0 : i32
    return %arg1, %c0_i32, %c0_i32_0 : i32, i32, i32
  }
  func.func @transform_9(%arg0: i32, %arg1: i32) -> (i32, i32, i32) {
    %c0_i32 = arith.constant 0 : i32
    %c0_i32_0 = arith.constant 0 : i32
    %c0_i32_1 = arith.constant 0 : i32
    return %arg1, %c0_i32, %c0_i32_0 : i32, i32, i32
  }
  func.func @transform_10(%arg0: i32, %arg1: i32) -> (i32, i32, i32) {
    %c0_i32 = arith.constant 0 : i32
    %c0_i32_0 = arith.constant 0 : i32
    %c0_i32_1 = arith.constant 0 : i32
    return %arg1, %c0_i32, %c0_i32_0 : i32, i32, i32
  }
  func.func @transform_11(%arg0: i32, %arg1: i32) -> (i32, i32, i32) {
    %c0_i32 = arith.constant 0 : i32
    %c0_i32_0 = arith.constant 0 : i32
    %c0_i32_1 = arith.constant 0 : i32
    return %arg0, %c0_i32, %c0_i32_0 : i32, i32, i32
  }
}

</mosaic_0001>

<llo_original>
// kernel: tpu_custom_call.1
$region0: #{tpu_custom_call.1}
  #allocation0 [shape = 'u32[]', space=smem, size = 0x4, offset = 0x4, fixed_abs, tag = 'smem constant byte address 0x4 - core index']
  #allocation1 [shape = 'u32[144,128]{1,0:T(1,128)}', space=vmem, size = 0x12000, scoped, tag = 'internal scratch']
  %s0 = inlined_call_operand.vmem [shape: f32[2,128,32], index: 0, kind: input, shape index: {}]
  %s1 = inlined_call_operand.vmem [shape: f32[32,32], index: 1, kind: input, shape index: {}]
  %s2 = inlined_call_operand.vmem [shape: f32[2,32,32], index: 2, kind: input, shape index: {}]
  %s3 = inlined_call_operand.vmem [shape: f32[2,32,64], index: 3, kind: input, shape index: {}]
  %s4 = inlined_call_operand.vmem [shape: f32[2,32,32], index: 4, kind: input, shape index: {}]
  %s5 = inlined_call_operand.vmem [shape: f32[2,1,32], index: 5, kind: input, shape index: {}]
  %s6 = inlined_call_operand.vmem [shape: f32[2,1,32], index: 6, kind: input, shape index: {}]
  %s7 = inlined_call_operand.vmem [shape: f32[2,64,64], index: 7, kind: input, shape index: {}]
  %s8 = inlined_call_operand.vmem [shape: f32[2,64,32], index: 8, kind: input, shape index: {}]
  %s9 = inlined_call_operand.vmem [shape: f32[2,1,32], index: 9, kind: input, shape index: {}]
  %s10 = inlined_call_operand.vmem [shape: f32[2,1,32], index: 10, kind: input, shape index: {}]
  %s11 = inlined_call_operand.vmem [shape: f32[2,128,32], index: 11, kind: output, shape index: {}]
  %s12 = sld [smem:[#allocation0]]
  $region81: #{tpu_custom_call.1} parent=0
    _
  %s14 = ssub.s32 1, %s12
  %s15 = scalar_select 0, %s14, %s12
  loop: start=0, step=1, limit=4
  $region2: #{tpu_custom_call.1} parent=0 // loop_pre_header
    _
  $region3: #{tpu_custom_call.1} parent=0 // loop_header
    %s17 = sphi 0, %s21
    %p18 = scmp.ge.s32.totalorder %s17, 4
    %s24 = sphi 0, %s36
    %s25 = sphi 0, %s32
    %s26 = sphi 0, %s24
    %s27 = sphi 0, %s25
    %s28 = sphi 0, %s26
    %s29 = sphi 0, %s27
    %s39 = sphi 0, %s41
    %s42 = sphi 0, %s39
    %s43 = sphi 0, %s42
    %s59 = sphi 0, %s43
    %s63 = sphi 0, %s63
    %s65 = sphi 0, %s63
    %s66 = sphi 0, %s65
    %s80 = sphi 0, %s66
    %s86 = sphi 0, %s88
    %s89 = sphi 0, %s86
    %s90 = sphi 0, %s89
    %s106 = sphi 0, %s90
    %s112 = sphi 0, %s114
    %s115 = sphi 0, %s112
    %s116 = sphi 0, %s115
    %s132 = sphi 0, %s116
    %s138 = sphi 0, %s140
    %s141 = sphi 0, %s138
    %s142 = sphi 0, %s141
    %s158 = sphi 0, %s142
    %s164 = sphi 0, %s166
    %s167 = sphi 0, %s164
    %s168 = sphi 0, %s167
    %s184 = sphi 0, %s168
    %s190 = sphi 0, %s192
    %s193 = sphi 0, %s190
    %s194 = sphi 0, %s193
    %s210 = sphi 0, %s194
    %s216 = sphi 0, %s218
    %s219 = sphi 0, %s216
    %s220 = sphi 0, %s219
    %s236 = sphi 0, %s220
    %s242 = sphi 0, %s244
    %s245 = sphi 0, %s242
    %s246 = sphi 0, %s245
    %s262 = sphi 0, %s246
    %s268 = sphi 0, %s270
    %s271 = sphi 0, %s268
    %s272 = sphi 0, %s271
    %s288 = sphi 0, %s272
    %s294 = sphi 0, %s296
    %s297 = sphi 0, %s294
    %s298 = sphi 0, %s297
    %s314 = sphi 0, %s298
    %s320 = sphi 0, %s322
    %s323 = sphi 0, %s320
    %s324 = sphi 0, %s323
    %s340 = sphi 0, %s324
  $region4: #{tpu_custom_call.1} parent=0 // loop_header_branch
    %20 = sbr.rel (%p18) target = $region8
  $region5: #{tpu_custom_call.1} parent=0 // loop_body
    %s22 = ssub.s32 %s17, 1
    %s23 = ssub.s32 %s17, 2
    %s30 = sadd.s32 1, %s25
    %p31 = scmp.ge.s32.totalorder %s30, 1
    %s32 = scalar_select %p31, 0, %s30
    %s33 = sadd.s32 1, %s24
    %s34 = scalar_select %p31, %s33, %s24
    %p35 = scmp.ge.s32.totalorder %s34, 2
    %s36 = scalar_select %p35, 0, %s34
    %s37 = ssub.s32 %s24, %s36
    %p38 = scmp.eq.s32.totalorder %s37, 0
    %s40 = sadd.s32 %s39, 1
    %s41 = scalar_select %p38, %s39, %s40
    %p44 = pneg %p38
    %p45 = scmp.eq.s32.totalorder %s17, 1
    %p46 = por %p44, %p45
    %p47 = scmp.ne.s32.totalorder %s39, %s42
    %p48 = scmp.eq.s32.totalorder %s17, 0
    %p49 = por %p47, %p48
    %p50 = scmp.ne.s32.totalorder %s39, %s42
    %p51 = scmp.eq.s32.totalorder %s22, 1
    %p52 = por %p50, %p51
    %p53 = scmp.ne.s32.totalorder %s42, %s43
    %p54 = scmp.eq.s32.totalorder %s22, 0
    %p55 = por %p53, %p54
    %p56 = scmp.ne.s32.totalorder %s42, %s43
    %p57 = scmp.eq.s32.totalorder %s23, 1
    %p58 = por %p56, %p57
    %p60 = scmp.ne.s32.totalorder %s43, %s59
    %p61 = scmp.eq.s32.totalorder %s23, 0
    %p62 = por %p60, %p61
    %s64 = sadd.s32 %s63, 1
    %p67 = scmp.eq.s32.totalorder %s17, 1
    %p68 = scmp.ne.s32.totalorder %s63, %s65
    %p69 = scmp.eq.s32.totalorder %s17, 0
    %p70 = por %p68, %p69
    %p71 = scmp.ne.s32.totalorder %s63, %s65
    %p72 = scmp.eq.s32.totalorder %s22, 1
    %p73 = por %p71, %p72
    %p74 = scmp.ne.s32.totalorder %s65, %s66
    %p75 = scmp.eq.s32.totalorder %s22, 0
    %p76 = por %p74, %p75
    %p77 = scmp.ne.s32.totalorder %s65, %s66
    %p78 = scmp.eq.s32.totalorder %s23, 1
    %p79 = por %p77, %p78
    %p81 = scmp.ne.s32.totalorder %s66, %s80
    %p82 = scmp.eq.s32.totalorder %s23, 0
    %p83 = por %p81, %p82
    %s84 = ssub.s32 %s25, %s32
    %p85 = scmp.eq.s32.totalorder %s84, 0
    %s87 = sadd.s32 %s86, 1
    %s88 = scalar_select %p85, %s86, %s87
    %p91 = pneg %p85
    %p92 = scmp.eq.s32.totalorder %s17, 1
    %p93 = por %p91, %p92
    %p94 = scmp.ne.s32.totalorder %s86, %s89
    %p95 = scmp.eq.s32.totalorder %s17, 0
    %p96 = por %p94, %p95
    %p97 = scmp.ne.s32.totalorder %s86, %s89
    %p98 = scmp.eq.s32.totalorder %s22, 1
    %p99 = por %p97, %p98
    %p100 = scmp.ne.s32.totalorder %s89, %s90
    %p101 = scmp.eq.s32.totalorder %s22, 0
    %p102 = por %p100, %p101
    %p103 = scmp.ne.s32.totalorder %s89, %s90
    %p104 = scmp.eq.s32.totalorder %s23, 1
    %p105 = por %p103, %p104
    %p107 = scmp.ne.s32.totalorder %s90, %s106
    %p108 = scmp.eq.s32.totalorder %s23, 0
    %p109 = por %p107, %p108
    %s110 = ssub.s32 %s25, %s32
    %p111 = scmp.eq.s32.totalorder %s110, 0
    %s113 = sadd.s32 %s112, 1
    %s114 = scalar_select %p111, %s112, %s113
    %p117 = pneg %p111
    %p118 = scmp.eq.s32.totalorder %s17, 1
    %p119 = por %p117, %p118
    %p120 = scmp.ne.s32.totalorder %s112, %s115
    %p121 = scmp.eq.s32.totalorder %s17, 0
    %p122 = por %p120, %p121
    %p123 = scmp.ne.s32.totalorder %s112, %s115
    %p124 = scmp.eq.s32.totalorder %s22, 1
    %p125 = por %p123, %p124
    %p126 = scmp.ne.s32.totalorder %s115, %s116
    %p127 = scmp.eq.s32.totalorder %s22, 0
    %p128 = por %p126, %p127
    %p129 = scmp.ne.s32.totalorder %s115, %s116
    %p130 = scmp.eq.s32.totalorder %s23, 1
    %p131 = por %p129, %p130
    %p133 = scmp.ne.s32.totalorder %s116, %s132
    %p134 = scmp.eq.s32.totalorder %s23, 0
    %p135 = por %p133, %p134
    %s136 = ssub.s32 %s25, %s32
    %p137 = scmp.eq.s32.totalorder %s136, 0
    %s139 = sadd.s32 %s138, 1
    %s140 = scalar_select %p137, %s138, %s139
    %p143 = pneg %p137
    %p144 = scmp.eq.s32.totalorder %s17, 1
    %p145 = por %p143, %p144
    %p146 = scmp.ne.s32.totalorder %s138, %s141
    %p147 = scmp.eq.s32.totalorder %s17, 0
    %p148 = por %p146, %p147
    %p149 = scmp.ne.s32.totalorder %s138, %s141
    %p150 = scmp.eq.s32.totalorder %s22, 1
    %p151 = por %p149, %p150
    %p152 = scmp.ne.s32.totalorder %s141, %s142
    %p153 = scmp.eq.s32.totalorder %s22, 0
    %p154 = por %p152, %p153
    %p155 = scmp.ne.s32.totalorder %s141, %s142
    %p156 = scmp.eq.s32.totalorder %s23, 1
    %p157 = por %p155, %p156
    %p159 = scmp.ne.s32.totalorder %s142, %s158
    %p160 = scmp.eq.s32.totalorder %s23, 0
    %p161 = por %p159, %p160
    %s162 = ssub.s32 %s25, %s32
    %p163 = scmp.eq.s32.totalorder %s162, 0
    %s165 = sadd.s32 %s164, 1
    %s166 = scalar_select %p163, %s164, %s165
    %p169 = pneg %p163
    %p170 = scmp.eq.s32.totalorder %s17, 1
    %p171 = por %p169, %p170
    %p172 = scmp.ne.s32.totalorder %s164, %s167
    %p173 = scmp.eq.s32.totalorder %s17, 0
    %p174 = por %p172, %p173
    %p175 = scmp.ne.s32.totalorder %s164, %s167
    %p176 = scmp.eq.s32.totalorder %s22, 1
    %p177 = por %p175, %p176
    %p178 = scmp.ne.s32.totalorder %s167, %s168
    %p179 = scmp.eq.s32.totalorder %s22, 0
    %p180 = por %p178, %p179
    %p181 = scmp.ne.s32.totalorder %s167, %s168
    %p182 = scmp.eq.s32.totalorder %s23, 1
    %p183 = por %p181, %p182
    %p185 = scmp.ne.s32.totalorder %s168, %s184
    %p186 = scmp.eq.s32.totalorder %s23, 0
    %p187 = por %p185, %p186
    %s188 = ssub.s32 %s25, %s32
    %p189 = scmp.eq.s32.totalorder %s188, 0
    %s191 = sadd.s32 %s190, 1
    %s192 = scalar_select %p189, %s190, %s191
    %p195 = pneg %p189
    %p196 = scmp.eq.s32.totalorder %s17, 1
    %p197 = por %p195, %p196
    %p198 = scmp.ne.s32.totalorder %s190, %s193
    %p199 = scmp.eq.s32.totalorder %s17, 0
    %p200 = por %p198, %p199
    %p201 = scmp.ne.s32.totalorder %s190, %s193
    %p202 = scmp.eq.s32.totalorder %s22, 1
    %p203 = por %p201, %p202
    %p204 = scmp.ne.s32.totalorder %s193, %s194
    %p205 = scmp.eq.s32.totalorder %s22, 0
    %p206 = por %p204, %p205
    %p207 = scmp.ne.s32.totalorder %s193, %s194
    %p208 = scmp.eq.s32.totalorder %s23, 1
    %p209 = por %p207, %p208
    %p211 = scmp.ne.s32.totalorder %s194, %s210
    %p212 = scmp.eq.s32.totalorder %s23, 0
    %p213 = por %p211, %p212
    %s214 = ssub.s32 %s25, %s32
    %p215 = scmp.eq.s32.totalorder %s214, 0
    %s217 = sadd.s32 %s216, 1
    %s218 = scalar_select %p215, %s216, %s217
    %p221 = pneg %p215
    %p222 = scmp.eq.s32.totalorder %s17, 1
    %p223 = por %p221, %p222
    %p224 = scmp.ne.s32.totalorder %s216, %s219
    %p225 = scmp.eq.s32.totalorder %s17, 0
    %p226 = por %p224, %p225
    %p227 = scmp.ne.s32.totalorder %s216, %s219
    %p228 = scmp.eq.s32.totalorder %s22, 1
    %p229 = por %p227, %p228
    %p230 = scmp.ne.s32.totalorder %s219, %s220
    %p231 = scmp.eq.s32.totalorder %s22, 0
    %p232 = por %p230, %p231
    %p233 = scmp.ne.s32.totalorder %s219, %s220
    %p234 = scmp.eq.s32.totalorder %s23, 1
    %p235 = por %p233, %p234
    %p237 = scmp.ne.s32.totalorder %s220, %s236
    %p238 = scmp.eq.s32.totalorder %s23, 0
    %p239 = por %p237, %p238
    %s240 = ssub.s32 %s25, %s32
    %p241 = scmp.eq.s32.totalorder %s240, 0
    %s243 = sadd.s32 %s242, 1
    %s244 = scalar_select %p241, %s242, %s243
    %p247 = pneg %p241
    %p248 = scmp.eq.s32.totalorder %s17, 1
    %p249 = por %p247, %p248
    %p250 = scmp.ne.s32.totalorder %s242, %s245
    %p251 = scmp.eq.s32.totalorder %s17, 0
    %p252 = por %p250, %p251
    %p253 = scmp.ne.s32.totalorder %s242, %s245
    %p254 = scmp.eq.s32.totalorder %s22, 1
    %p255 = por %p253, %p254
    %p256 = scmp.ne.s32.totalorder %s245, %s246
    %p257 = scmp.eq.s32.totalorder %s22, 0
    %p258 = por %p256, %p257
    %p259 = scmp.ne.s32.totalorder %s245, %s246
    %p260 = scmp.eq.s32.totalorder %s23, 1
    %p261 = por %p259, %p260
    %p263 = scmp.ne.s32.totalorder %s246, %s262
    %p264 = scmp.eq.s32.totalorder %s23, 0
    %p265 = por %p263, %p264
    %s266 = ssub.s32 %s25, %s32
    %p267 = scmp.eq.s32.totalorder %s266, 0
    %s269 = sadd.s32 %s268, 1
    %s270 = scalar_select %p267, %s268, %s269
    %p273 = pneg %p267
    %p274 = scmp.eq.s32.totalorder %s17, 1
    %p275 = por %p273, %p274
    %p276 = scmp.ne.s32.totalorder %s268, %s271
    %p277 = scmp.eq.s32.totalorder %s17, 0
    %p278 = por %p276, %p277
    %p279 = scmp.ne.s32.totalorder %s268, %s271
    %p280 = scmp.eq.s32.totalorder %s22, 1
    %p281 = por %p279, %p280
    %p282 = scmp.ne.s32.totalorder %s271, %s272
    %p283 = scmp.eq.s32.totalorder %s22, 0
    %p284 = por %p282, %p283
    %p285 = scmp.ne.s32.totalorder %s271, %s272
    %p286 = scmp.eq.s32.totalorder %s23, 1
    %p287 = por %p285, %p286
    %p289 = scmp.ne.s32.totalorder %s272, %s288
    %p290 = scmp.eq.s32.totalorder %s23, 0
    %p291 = por %p289, %p290
    %s292 = ssub.s32 %s25, %s32
    %p293 = scmp.eq.s32.totalorder %s292, 0
    %s295 = sadd.s32 %s294, 1
    %s296 = scalar_select %p293, %s294, %s295
    %p299 = pneg %p293
    %p300 = scmp.eq.s32.totalorder %s17, 1
    %p301 = por %p299, %p300
    %p302 = scmp.ne.s32.totalorder %s294, %s297
    %p303 = scmp.eq.s32.totalorder %s17, 0
    %p304 = por %p302, %p303
    %p305 = scmp.ne.s32.totalorder %s294, %s297
    %p306 = scmp.eq.s32.totalorder %s22, 1
    %p307 = por %p305, %p306
    %p308 = scmp.ne.s32.totalorder %s297, %s298
    %p309 = scmp.eq.s32.totalorder %s22, 0
    %p310 = por %p308, %p309
    %p311 = scmp.ne.s32.totalorder %s297, %s298
    %p312 = scmp.eq.s32.totalorder %s23, 1
    %p313 = por %p311, %p312
    %p315 = scmp.ne.s32.totalorder %s298, %s314
    %p316 = scmp.eq.s32.totalorder %s23, 0
    %p317 = por %p315, %p316
    %s318 = ssub.s32 %s24, %s36
    %p319 = scmp.eq.s32.totalorder %s318, 0
    %s321 = sadd.s32 %s320, 1
    %s322 = scalar_select %p319, %s320, %s321
    %p325 = pneg %p319
    %p326 = scmp.eq.s32.totalorder %s17, 1
    %p327 = por %p325, %p326
    %p328 = scmp.ne.s32.totalorder %s320, %s323
    %p329 = scmp.eq.s32.totalorder %s17, 0
    %p330 = por %p328, %p329
    %p331 = scmp.ne.s32.totalorder %s320, %s323
    %p332 = scmp.eq.s32.totalorder %s22, 1
    %p333 = por %p331, %p332
    %p334 = scmp.ne.s32.totalorder %s323, %s324
    %p335 = scmp.eq.s32.totalorder %s22, 0
    %p336 = por %p334, %p335
    %p337 = scmp.ne.s32.totalorder %s323, %s324
    %p338 = scmp.eq.s32.totalorder %s23, 1
    %p339 = por %p337, %p338
    %p341 = scmp.ne.s32.totalorder %s324, %s340
    %p342 = scmp.eq.s32.totalorder %s23, 0
    %p343 = por %p341, %p342
    %p344 = scmp.le.s32.totalorder 1, %s17
    %p345 = scmp.lt.s32.totalorder %s17, 3
    %p346 = pnand %p344, %p345
    %p347 = pneg %p346
    // Predicated region
    $region9: #{tpu_custom_call.1} parent=5 // pred_check
      _
    $region10: #{tpu_custom_call.1} parent=5 // pred_check_branch
      %349 = sbr.rel (%p346) target = $region12
    $region11: #{tpu_custom_call.1} parent=5 // pred_region
      %s350 = ssub.s32 %s17, 1
      // Predicated region
      $region13: #{tpu_custom_call.1} parent=11 // pred_check
        %p351 = pneg %p76
      $region14: #{tpu_custom_call.1} parent=11 // pred_check_branch
        %353 = sbr.rel (%p351) target = $region16
      $region15: #{tpu_custom_call.1} parent=11 // pred_region
        _
      $region16: #{tpu_custom_call.1} parent=11 // pred_fallthru
        _
      // Predicated region
      $region17: #{tpu_custom_call.1} parent=11 // pred_check
        %p354 = pneg %p102
      $region18: #{tpu_custom_call.1} parent=11 // pred_check_branch
        %356 = sbr.rel (%p354) target = $region20
      $region19: #{tpu_custom_call.1} parent=11 // pred_region
        %s357 = smul.u32 2, %s27
        %p358 = scmp.lt.s32.totalorder %s357, 1
        %s359 = scalar_select %p358, %s357, 1
        %s360 = smul.addr %s359, 4
        %s361 = smul.addr %s360, 8
        %s362 = scalar_lea.vmem %s2, %s361
        %s363 = smul.u32 2, %s27
      $region20: #{tpu_custom_call.1} parent=11 // pred_fallthru
        _
      // Predicated region
      $region21: #{tpu_custom_call.1} parent=11 // pred_check
        %p364 = pneg %p128
      $region22: #{tpu_custom_call.1} parent=11 // pred_check_branch
        %366 = sbr.rel (%p364) target = $region24
      $region23: #{tpu_custom_call.1} parent=11 // pred_region
        %s367 = smul.u32 2, %s27
        %p368 = scmp.lt.s32.totalorder %s367, 1
        %s369 = scalar_select %p368, %s367, 1
        %s370 = smul.addr %s369, 4
        %s371 = smul.addr %s370, 8
        %s372 = scalar_lea.vmem %s3, %s371
        %s373 = smul.u32 2, %s27
      $region24: #{tpu_custom_call.1} parent=11 // pred_fallthru
        _
      // Predicated region
      $region25: #{tpu_custom_call.1} parent=11 // pred_check
        %p374 = pneg %p154
      $region26: #{tpu_custom_call.1} parent=11 // pred_check_branch
        %376 = sbr.rel (%p374) target = $region28
      $region27: #{tpu_custom_call.1} parent=11 // pred_region
        %s377 = smul.u32 2, %s27
        %p378 = scmp.lt.s32.totalorder %s377, 1
        %s379 = scalar_select %p378, %s377, 1
        %s380 = smul.addr %s379, 4
        %s381 = smul.addr %s380, 8
        %s382 = scalar_lea.vmem %s4, %s381
        %s383 = smul.u32 2, %s27
      $region28: #{tpu_custom_call.1} parent=11 // pred_fallthru
        _
      // Predicated region
      $region29: #{tpu_custom_call.1} parent=11 // pred_check
        %p384 = pneg %p180
      $region30: #{tpu_custom_call.1} parent=11 // pred_check_branch
        %386 = sbr.rel (%p384) target = $region32
      $region31: #{tpu_custom_call.1} parent=11 // pred_region
        %s387 = smul.u32 2, %s27
        %p388 = scmp.lt.s32.totalorder %s387, 1
        %s389 = scalar_select %p388, %s387, 1
        %s390 = scalar_lea.vmem %s5, %s389
        %s391 = smul.u32 2, %s27
      $region32: #{tpu_custom_call.1} parent=11 // pred_fallthru
        _
      // Predicated region
      $region33: #{tpu_custom_call.1} parent=11 // pred_check
        %p392 = pneg %p206
      $region34: #{tpu_custom_call.1} parent=11 // pred_check_branch
        %394 = sbr.rel (%p392) target = $region36
      $region35: #{tpu_custom_call.1} parent=11 // pred_region
        %s395 = smul.u32 2, %s27
        %p396 = scmp.lt.s32.totalorder %s395, 1
        %s397 = scalar_select %p396, %s395, 1
        %s398 = scalar_lea.vmem %s6, %s397
        %s399 = smul.u32 2, %s27
      $region36: #{tpu_custom_call.1} parent=11 // pred_fallthru
        _
      // Predicated region
      $region37: #{tpu_custom_call.1} parent=11 // pred_check
        %p400 = pneg %p232
      $region38: #{tpu_custom_call.1} parent=11 // pred_check_branch
        %402 = sbr.rel (%p400) target = $region40
      $region39: #{tpu_custom_call.1} parent=11 // pred_region
        %s403 = smul.u32 2, %s27
        %p404 = scmp.lt.s32.totalorder %s403, 1
        %s405 = scalar_select %p404, %s403, 1
        %s406 = smul.addr %s405, 8
        %s407 = smul.addr %s406, 8
        %s408 = scalar_lea.vmem %s7, %s407
        %s409 = smul.u32 2, %s27
      $region40: #{tpu_custom_call.1} parent=11 // pred_fallthru
        _
      // Predicated region
      $region41: #{tpu_custom_call.1} parent=11 // pred_check
        %p410 = pneg %p258
      $region42: #{tpu_custom_call.1} parent=11 // pred_check_branch
        %412 = sbr.rel (%p410) target = $region44
      $region43: #{tpu_custom_call.1} parent=11 // pred_region
        %s413 = smul.u32 2, %s27
        %p414 = scmp.lt.s32.totalorder %s413, 1
        %s415 = scalar_select %p414, %s413, 1
        %s416 = smul.addr %s415, 8
        %s417 = smul.addr %s416, 8
        %s418 = scalar_lea.vmem %s8, %s417
        %s419 = smul.u32 2, %s27
      $region44: #{tpu_custom_call.1} parent=11 // pred_fallthru
        _
      // Predicated region
      $region45: #{tpu_custom_call.1} parent=11 // pred_check
        %p420 = pneg %p284
      $region46: #{tpu_custom_call.1} parent=11 // pred_check_branch
        %422 = sbr.rel (%p420) target = $region48
      $region47: #{tpu_custom_call.1} parent=11 // pred_region
        %s423 = smul.u32 2, %s27
        %p424 = scmp.lt.s32.totalorder %s423, 1
        %s425 = scalar_select %p424, %s423, 1
        %s426 = scalar_lea.vmem %s9, %s425
        %s427 = smul.u32 2, %s27
      $region48: #{tpu_custom_call.1} parent=11 // pred_fallthru
        _
      // Predicated region
      $region49: #{tpu_custom_call.1} parent=11 // pred_check
        %p428 = pneg %p310
      $region50: #{tpu_custom_call.1} parent=11 // pred_check_branch
        %430 = sbr.rel (%p428) target = $region52
      $region51: #{tpu_custom_call.1} parent=11 // pred_region
        %s431 = smul.u32 2, %s27
        %p432 = scmp.lt.s32.totalorder %s431, 1
        %s433 = scalar_select %p432, %s431, 1
        %s434 = scalar_lea.vmem %s10, %s433
        %s435 = smul.u32 2, %s27
      $region52: #{tpu_custom_call.1} parent=11 // pred_fallthru
        _
    $region12: #{tpu_custom_call.1} parent=5 // pred_fallthru
      _
    %p436 = scmp.lt.s32.totalorder %s17, 2
    // Predicated region
    $region53: #{tpu_custom_call.1} parent=5 // pred_check
      %p437 = pneg %p436
    $region54: #{tpu_custom_call.1} parent=5 // pred_check_branch
      %439 = sbr.rel (%p437) target = $region56
    $region55: #{tpu_custom_call.1} parent=5 // pred_region
      // Predicated region
      $region57: #{tpu_custom_call.1} parent=55 // pred_check
        %p440 = pneg %p49
      $region58: #{tpu_custom_call.1} parent=55 // pred_check_branch
        %442 = sbr.rel (%p440) target = $region60
      $region59: #{tpu_custom_call.1} parent=55 // pred_region
        %p443 = scmp.lt.s32.totalorder %s24, 1
        %s444 = scalar_select %p443, %s24, 1
        %s445 = smul.addr %s444, 16
        %s446 = smul.addr %s445, 8
        %s447 = scalar_lea.vmem %s0, %s446
      $region60: #{tpu_custom_call.1} parent=55 // pred_fallthru
        _
    $region56: #{tpu_custom_call.1} parent=5 // pred_fallthru
      _
    %p448 = scmp.le.s32.totalorder 1, %s17
    %p449 = scmp.lt.s32.totalorder %s17, 3
    %p450 = pnand %p448, %p449
    %p451 = pneg %p450
    // Predicated region
    $region61: #{tpu_custom_call.1} parent=5 // pred_check
      _
    $region62: #{tpu_custom_call.1} parent=5 // pred_check_branch
      %453 = sbr.rel (%p450) target = $region64
    $region63: #{tpu_custom_call.1} parent=5 // pred_region
      %s454 = ssub.s32 %s17, 1
      %p455 = scmp.lt.s32.totalorder %s26, 1
      %s456 = scalar_select %p455, %s26, 1
      %s457 = smul.addr %s456, 16
      %s458 = smul.addr %s457, 8
      %s459 = scalar_lea.vmem %s0, %s458
      %p460 = pneg %p55
      %p461 = pneg %p52
      %p462 = pneg %p76
      %p463 = pneg %p73
      %s464 = smul.u32 2, %s27
      %p465 = scmp.lt.s32.totalorder %s464, 1
      %s466 = scalar_select %p465, %s464, 1
      %s467 = smul.addr %s466, 4
      %s468 = smul.addr %s467, 8
      %s469 = scalar_lea.vmem %s2, %s468
      %p470 = pneg %p102
      %p471 = pneg %p99
      %s472 = smul.u32 2, %s27
      %p473 = scmp.lt.s32.totalorder %s472, 1
      %s474 = scalar_select %p473, %s472, 1
      %s475 = smul.addr %s474, 4
      %s476 = smul.addr %s475, 8
      %s477 = scalar_lea.vmem %s3, %s476
      %p478 = pneg %p128
      %p479 = pneg %p125
      %s480 = smul.u32 2, %s27
      %p481 = scmp.lt.s32.totalorder %s480, 1
      %s482 = scalar_select %p481, %s480, 1
      %s483 = smul.addr %s482, 4
      %s484 = smul.addr %s483, 8
      %s485 = scalar_lea.vmem %s4, %s484
      %p486 = pneg %p154
      %p487 = pneg %p151
      %s488 = smul.u32 2, %s27
      %p489 = scmp.lt.s32.totalorder %s488, 1
      %s490 = scalar_select %p489, %s488, 1
      %s491 = scalar_lea.vmem %s5, %s490
      %p492 = pneg %p180
      %p493 = pneg %p177
      %s494 = smul.u32 2, %s27
      %p495 = scmp.lt.s32.totalorder %s494, 1
      %s496 = scalar_select %p495, %s494, 1
      %s497 = scalar_lea.vmem %s6, %s496
      %p498 = pneg %p206
      %p499 = pneg %p203
      %s500 = smul.u32 2, %s27
      %p501 = scmp.lt.s32.totalorder %s500, 1
      %s502 = scalar_select %p501, %s500, 1
      %s503 = smul.addr %s502, 8
      %s504 = smul.addr %s503, 8
      %s505 = scalar_lea.vmem %s7, %s504
      %p506 = pneg %p232
      %p507 = pneg %p229
      %s508 = smul.u32 2, %s27
      %p509 = scmp.lt.s32.totalorder %s508, 1
      %s510 = scalar_select %p509, %s508, 1
      %s511 = smul.addr %s510, 8
      %s512 = smul.addr %s511, 8
      %s513 = scalar_lea.vmem %s8, %s512
      %p514 = pneg %p258
      %p515 = pneg %p255
      %s516 = smul.u32 2, %s27
      %p517 = scmp.lt.s32.totalorder %s516, 1
      %s518 = scalar_select %p517, %s516, 1
      %s519 = scalar_lea.vmem %s9, %s518
      %p520 = pneg %p284
      %p521 = pneg %p281
      %s522 = smul.u32 2, %s27
      %p523 = scmp.lt.s32.totalorder %s522, 1
      %s524 = scalar_select %p523, %s522, 1
      %s525 = scalar_lea.vmem %s10, %s524
      %p526 = pneg %p310
      %p527 = pneg %p307
      %p528 = pneg %p336
      %p529 = pneg %p333
      %p530 = scmp.lt.s32.totalorder %s26, 1
      %s531 = scalar_select %p530, %s26, 1
      %s532 = smul.addr %s531, 16
      %s533 = smul.addr %s532, 8
      %s534 = scalar_lea.vmem %s11, %s533
      %p535 = scmp.lt.s32.totalorder %s26, 1
      %s536 = scalar_select %p535, %s26, 1
      %s537 = smul.addr %s536, 16
      %s538 = smul.addr %s537, 8
      %s539 = scalar_lea.vmem %s0, %s538
      %s540 = smul.u32 2, %s27
      %p541 = scmp.lt.s32.totalorder %s540, 1
      %s542 = scalar_select %p541, %s540, 1
      %s543 = smul.addr %s542, 4
      %s544 = smul.addr %s543, 8
      %s545 = scalar_lea.vmem %s2, %s544
      %s546 = smul.u32 2, %s27
      %s547 = smul.u32 2, %s27
      %p548 = scmp.lt.s32.totalorder %s547, 1
      %s549 = scalar_select %p548, %s547, 1
      %s550 = smul.addr %s549, 4
      %s551 = smul.addr %s550, 8
      %s552 = scalar_lea.vmem %s3, %s551
      %s553 = smul.u32 2, %s27
      %s554 = smul.u32 2, %s27
      %p555 = scmp.lt.s32.totalorder %s554, 1
      %s556 = scalar_select %p555, %s554, 1
      %s557 = smul.addr %s556, 4
      %s558 = smul.addr %s557, 8
      %s559 = scalar_lea.vmem %s4, %s558
      %s560 = smul.u32 2, %s27
      %s561 = smul.u32 2, %s27
      %p562 = scmp.lt.s32.totalorder %s561, 1
      %s563 = scalar_select %p562, %s561, 1
      %s564 = scalar_lea.vmem %s5, %s563
      %s565 = smul.u32 2, %s27
      %s566 = smul.u32 2, %s27
      %p567 = scmp.lt.s32.totalorder %s566, 1
      %s568 = scalar_select %p567, %s566, 1
      %s569 = scalar_lea.vmem %s6, %s568
      %s570 = smul.u32 2, %s27
      %s571 = smul.u32 2, %s27
      %p572 = scmp.lt.s32.totalorder %s571, 1
      %s573 = scalar_select %p572, %s571, 1
      %s574 = smul.addr %s573, 8
      %s575 = smul.addr %s574, 8
      %s576 = scalar_lea.vmem %s7, %s575
      %s577 = smul.u32 2, %s27
      %s578 = smul.u32 2, %s27
      %p579 = scmp.lt.s32.totalorder %s578, 1
      %s580 = scalar_select %p579, %s578, 1
      %s581 = smul.addr %s580, 8
      %s582 = smul.addr %s581, 8
      %s583 = scalar_lea.vmem %s8, %s582
      %s584 = smul.u32 2, %s27
      %s585 = smul.u32 2, %s27
      %p586 = scmp.lt.s32.totalorder %s585, 1
      %s587 = scalar_select %p586, %s585, 1
      %s588 = scalar_lea.vmem %s9, %s587
      %s589 = smul.u32 2, %s27
      %s590 = smul.u32 2, %s27
      %p591 = scmp.lt.s32.totalorder %s590, 1
      %s592 = scalar_select %p591, %s590, 1
      %s593 = scalar_lea.vmem %s10, %s592
      %s594 = smul.u32 2, %s27
      %p595 = scmp.lt.s32.totalorder %s26, 1
      %s596 = scalar_select %p595, %s26, 1
      %s597 = smul.addr %s596, 16
      %s598 = smul.addr %s597, 8
      %s599 = scalar_lea.vmem %s11, %s598
      %p600 = scmp.eq.s32.totalorder %s27, 0
      // Predicated region
      $region65: #{tpu_custom_call.1} parent=63 // pred_check
        %p601 = pneg %p600
      $region66: #{tpu_custom_call.1} parent=63 // pred_check_branch
        %603 = sbr.rel (%p601) target = $region68
      $region67: #{tpu_custom_call.1} parent=63 // pred_region
        %v604 = vld [vmem:[%s539] sm:$0xff]
        %v605 = vld [vmem:[%s539 + $0x8] sm:$0xff]
        %v606 = vld [vmem:[%s539 + $0x10] sm:$0xff]
        %v607 = vld [vmem:[%s539 + $0x18] sm:$0xff]
        %v608 = vld [vmem:[%s539 + $0x20] sm:$0xff]
        %v609 = vld [vmem:[%s539 + $0x28] sm:$0xff]
        %v610 = vld [vmem:[%s539 + $0x30] sm:$0xff]
        %v611 = vld [vmem:[%s539 + $0x38] sm:$0xff]
        %v612 = vld [vmem:[%s539 + $0x40] sm:$0xff]
        %v613 = vld [vmem:[%s539 + $0x48] sm:$0xff]
        %v614 = vld [vmem:[%s539 + $0x50] sm:$0xff]
        %v615 = vld [vmem:[%s539 + $0x58] sm:$0xff]
        %v616 = vld [vmem:[%s539 + $0x60] sm:$0xff]
        %v617 = vld [vmem:[%s539 + $0x68] sm:$0xff]
        %v618 = vld [vmem:[%s539 + $0x70] sm:$0xff]
        %v619 = vld [vmem:[%s539 + $0x78] sm:$0xff]
        %vm620 = vcmask 261120
        %621 = vst.msk [vmem:[%s599] sm:$0xff] %vm620, %v604
        %622 = vst.msk [vmem:[%s599 + $0x8] sm:$0xff] %vm620, %v605
        %623 = vst.msk [vmem:[%s599 + $0x10] sm:$0xff] %vm620, %v606
        %624 = vst.msk [vmem:[%s599 + $0x18] sm:$0xff] %vm620, %v607
        %625 = vst.msk [vmem:[%s599 + $0x20] sm:$0xff] %vm620, %v608
        %626 = vst.msk [vmem:[%s599 + $0x28] sm:$0xff] %vm620, %v609
        %627 = vst.msk [vmem:[%s599 + $0x30] sm:$0xff] %vm620, %v610
        %628 = vst.msk [vmem:[%s599 + $0x38] sm:$0xff] %vm620, %v611
        %629 = vst.msk [vmem:[%s599 + $0x40] sm:$0xff] %vm620, %v612
        %630 = vst.msk [vmem:[%s599 + $0x48] sm:$0xff] %vm620, %v613
        %631 = vst.msk [vmem:[%s599 + $0x50] sm:$0xff] %vm620, %v614
        %632 = vst.msk [vmem:[%s599 + $0x58] sm:$0xff] %vm620, %v615
        %633 = vst.msk [vmem:[%s599 + $0x60] sm:$0xff] %vm620, %v616
        %634 = vst.msk [vmem:[%s599 + $0x68] sm:$0xff] %vm620, %v617
        %635 = vst.msk [vmem:[%s599 + $0x70] sm:$0xff] %vm620, %v618
        %636 = vst.msk [vmem:[%s599 + $0x78] sm:$0xff] %vm620, %v619
      $region68: #{tpu_custom_call.1} parent=63 // pred_fallthru
        _
      %v637 = vld [vmem:[%s1] sm:$0xff]
      %v638 = vld [vmem:[%s1 + $0x8] sm:$0xff]
      %v639 = vld [vmem:[%s1 + $0x10] sm:$0xff]
      %v640 = vld [vmem:[%s1 + $0x18] sm:$0xff]
      %v641 = vld [vmem:[%s599] sm:$0xff]
      %v642 = vld [vmem:[%s599 + $0x8] sm:$0xff]
      %v643 = vld [vmem:[%s599 + $0x10] sm:$0xff]
      %v644 = vld [vmem:[%s599 + $0x18] sm:$0xff]
      %v645 = vld [vmem:[%s599 + $0x20] sm:$0xff]
      %v646 = vld [vmem:[%s599 + $0x28] sm:$0xff]
      %v647 = vld [vmem:[%s599 + $0x30] sm:$0xff]
      %v648 = vld [vmem:[%s599 + $0x38] sm:$0xff]
      %v649 = vld [vmem:[%s599 + $0x40] sm:$0xff]
      %v650 = vld [vmem:[%s599 + $0x48] sm:$0xff]
      %v651 = vld [vmem:[%s599 + $0x50] sm:$0xff]
      %v652 = vld [vmem:[%s599 + $0x58] sm:$0xff]
      %v653 = vld [vmem:[%s599 + $0x60] sm:$0xff]
      %v654 = vld [vmem:[%s599 + $0x68] sm:$0xff]
      %v655 = vld [vmem:[%s599 + $0x70] sm:$0xff]
      %v656 = vld [vmem:[%s599 + $0x78] sm:$0xff]
      %v657 = vld [vmem:[%s545] sm:$0xff]
      %v658 = vld [vmem:[%s545 + $0x8] sm:$0xff]
      %v659 = vld [vmem:[%s545 + $0x10] sm:$0xff]
      %v660 = vld [vmem:[%s545 + $0x18] sm:$0xff]
      %v661 = vld [vmem:[%s552] sm:$0xff]
      %v662 = vld [vmem:[%s552 + $0x8] sm:$0xff]
      %v663 = vld [vmem:[%s552 + $0x10] sm:$0xff]
      %v664 = vld [vmem:[%s552 + $0x18] sm:$0xff]
      %v665 = vld [vmem:[%s559] sm:$0xff]
      %v666 = vld [vmem:[%s559 + $0x8] sm:$0xff]
      %v667 = vld [vmem:[%s559 + $0x10] sm:$0xff]
      %v668 = vld [vmem:[%s559 + $0x18] sm:$0xff]
      %v669 = vld [vmem:[%s564] sm:$0x1]
      %v670 = vld [vmem:[%s569] sm:$0x1]
      %v671 = vld [vmem:[%s576] sm:$0xff]
      %v672 = vld [vmem:[%s576 + $0x8] sm:$0xff]
      %v673 = vld [vmem:[%s576 + $0x10] sm:$0xff]
      %v674 = vld [vmem:[%s576 + $0x18] sm:$0xff]
      %v675 = vld [vmem:[%s576 + $0x20] sm:$0xff]
      %v676 = vld [vmem:[%s576 + $0x28] sm:$0xff]
      %v677 = vld [vmem:[%s576 + $0x30] sm:$0xff]
      %v678 = vld [vmem:[%s576 + $0x38] sm:$0xff]
      %v679 = vld [vmem:[%s583] sm:$0xff]
      %v680 = vld [vmem:[%s583 + $0x8] sm:$0xff]
      %v681 = vld [vmem:[%s583 + $0x10] sm:$0xff]
      %v682 = vld [vmem:[%s583 + $0x18] sm:$0xff]
      %v683 = vld [vmem:[%s583 + $0x20] sm:$0xff]
      %v684 = vld [vmem:[%s583 + $0x28] sm:$0xff]
      %v685 = vld [vmem:[%s583 + $0x30] sm:$0xff]
      %v686 = vld [vmem:[%s583 + $0x38] sm:$0xff]
      %v687 = vld [vmem:[%s588] sm:$0x1]
      %v688 = vld [vmem:[%s593] sm:$0x1]
      %vm689 = vcmask 261120
      %v691 = vsel %vm689, %v641, 0
      %v694 = vsel %vm689, %v642, 0
      %v697 = vsel %vm689, %v643, 0
      %v700 = vsel %vm689, %v644, 0
      %v703 = vsel %vm689, %v645, 0
      %v706 = vsel %vm689, %v646, 0
      %v709 = vsel %vm689, %v647, 0
      %v712 = vsel %vm689, %v648, 0
      %v715 = vsel %vm689, %v649, 0
      %v718 = vsel %vm689, %v650, 0
      %v721 = vsel %vm689, %v651, 0
      %v724 = vsel %vm689, %v652, 0
      %v727 = vsel %vm689, %v653, 0
      %v730 = vsel %vm689, %v654, 0
      %v733 = vsel %vm689, %v655, 0
      %v736 = vsel %vm689, %v656, 0
      %738 = vmatprep.subr.mxu0 0.0
      %739 = vmatpush1.msra.mxu0 0.0
      %740 = vmatprep.subr.mxu0 0.0
      %741 = vmatpush1.msra.mxu0 0.0
      %742 = vmatprep.subr.mxu0 0.0
      %743 = vmatpush1.msra.mxu0 0.0
      %744 = vmatprep.subr.mxu0 0.0
      %745 = vmatpush1.msra.mxu0 0.0
      %746 = vmatprep.subr.mxu0 0.0
      %747 = vmatpush1.msra.mxu0 0.0
      %748 = vmatprep.subr.mxu0 0.0
      %749 = vmatpush1.msra.mxu0 0.0
      %750 = vmatprep.subr.mxu0 0.0
      %751 = vmatpush1.msra.mxu0 0.0
      %752 = vmatprep.subr.mxu0 0.0
      %753 = vmatpush1.msra.mxu0 0.0
      %754 = vmatprep.subr.mxu0 0.0
      %755 = vmatpush1.msra.mxu0 0.0
      %756 = vmatprep.subr.mxu0 0.0
      %757 = vmatpush1.msra.mxu0 0.0
      %758 = vmatprep.subr.mxu0 0.0
      %759 = vmatpush1.msra.mxu0 0.0
      %760 = vmatprep.subr.mxu0 0.0
      %761 = vmatpush1.msra.mxu0 0.0
      %762 = vmatprep.subr.mxu0 0.0
      %763 = vmatpush1.msra.mxu0 %v660
      %764 = vmatprep.subr.mxu0 0.0
      %765 = vmatpush1.msra.mxu0 %v659
      %766 = vmatprep.subr.mxu0 0.0
      %767 = vmatpush1.msra.mxu0 %v658
      %768 = vmatprep.subr.mxu0 0.0
      %769 = vmatpush1.msra.mxu0 %v657
      %770 = vmatprep.subr.mxu0 0.0
      %771 = vmatpush2.msra.mxu0 0.0
      %772 = vmatprep.subr.mxu0 0.0
      %773 = vmatpush2.msra.mxu0 0.0
      %774 = vmatprep.subr.mxu0 0.0
      %775 = vmatpush2.msra.mxu0 0.0
      %776 = vmatprep.subr.mxu0 0.0
      %777 = vmatpush2.msra.mxu0 0.0
      %778 = vmatprep.subr.mxu0 0.0
      %779 = vmatpush2.msra.mxu0 0.0
      %780 = vmatprep.subr.mxu0 0.0
      %781 = vmatpush2.msra.mxu0 0.0
      %782 = vmatprep.subr.mxu0 0.0
      %783 = vmatpush2.msra.mxu0 0.0
      %784 = vmatprep.subr.mxu0 0.0
      %785 = vmatpush2.msra.mxu0 0.0
      %786 = vmatprep.subr.mxu0 0.0
      %787 = vmatpush2.msra.mxu0 0.0
      %788 = vmatprep.subr.mxu0 0.0
      %789 = vmatpush2.msra.mxu0 0.0
      %790 = vmatprep.subr.mxu0 0.0
      %791 = vmatpush2.msra.mxu0 0.0
      %792 = vmatprep.subr.mxu0 0.0
      %793 = vmatpush2.msra.mxu0 0.0
      %794 = vmatprep.subr.mxu0 0.0
      %795 = vmatpush2.msra.mxu0 0.0
      %796 = vmatprep.subr.mxu0 0.0
      %797 = vmatpush2.msra.mxu0 0.0
      %798 = vmatprep.subr.mxu0 0.0
      %799 = vmatpush2.msra.mxu0 0.0
      %800 = vmatprep.subr.mxu0 0.0
      %801 = vmatpush2.msra.mxu0 0.0
      %802 = vmatprep.mubr.f32.mxu0 0.0
      %803 = vmatmul.mubr.f32.gmra.mxu0 %v691
      %v804 = vpop.f32.mrf.mxu0
      %v805 = vadd.f32 0.0, %v804
      %v806 = vpop.f32.mrf.mxu0
      %807 = vmatprep.mubr.f32.mxu0 0.0
      %808 = vmatmul.mubr.f32.gmra.mxu0 %v694
      %v809 = vpop.f32.mrf.mxu0
      %v810 = vadd.f32 0.0, %v809
      %v811 = vpop.f32.mrf.mxu0
      %812 = vmatprep.mubr.f32.mxu0 0.0
      %813 = vmatmul.mubr.f32.gmra.mxu0 %v697
      %v814 = vpop.f32.mrf.mxu0
      %v815 = vadd.f32 0.0, %v814
      %v816 = vpop.f32.mrf.mxu0
      %817 = vmatprep.mubr.f32.mxu0 0.0
      %818 = vmatmul.mubr.f32.gmra.mxu0 %v700
      %v819 = vpop.f32.mrf.mxu0
      %v820 = vadd.f32 0.0, %v819
      %v821 = vpop.f32.mrf.mxu0
      %822 = vmatprep.mubr.f32.mxu0 0.0
      %823 = vmatmul.mubr.f32.gmra.mxu0 %v703
      %v824 = vpop.f32.mrf.mxu0
      %v825 = vadd.f32 0.0, %v824
      %v826 = vpop.f32.mrf.mxu0
      %827 = vmatprep.mubr.f32.mxu0 0.0
      %828 = vmatmul.mubr.f32.gmra.mxu0 %v706
      %v829 = vpop.f32.mrf.mxu0
      %v830 = vadd.f32 0.0, %v829
      %v831 = vpop.f32.mrf.mxu0
      %832 = vmatprep.mubr.f32.mxu0 0.0
      %833 = vmatmul.mubr.f32.gmra.mxu0 %v709
      %v834 = vpop.f32.mrf.mxu0
      %v835 = vadd.f32 0.0, %v834
      %v836 = vpop.f32.mrf.mxu0
      %837 = vmatprep.mubr.f32.mxu0 0.0
      %838 = vmatmul.mubr.f32.gmra.mxu0 %v712
      %v839 = vpop.f32.mrf.mxu0
      %v840 = vadd.f32 0.0, %v839
      %v841 = vpop.f32.mrf.mxu0
      %842 = vmatprep.mubr.f32.mxu0 0.0
      %843 = vmatmul.mubr.f32.gmra.mxu0 %v715
      %v844 = vpop.f32.mrf.mxu0
      %v845 = vadd.f32 0.0, %v844
      %v846 = vpop.f32.mrf.mxu0
      %847 = vmatprep.mubr.f32.mxu0 0.0
      %848 = vmatmul.mubr.f32.gmra.mxu0 %v718
      %v849 = vpop.f32.mrf.mxu0
      %v850 = vadd.f32 0.0, %v849
      %v851 = vpop.f32.mrf.mxu0
      %852 = vmatprep.mubr.f32.mxu0 0.0
      %853 = vmatmul.mubr.f32.gmra.mxu0 %v721
      %v854 = vpop.f32.mrf.mxu0
      %v855 = vadd.f32 0.0, %v854
      %v856 = vpop.f32.mrf.mxu0
      %857 = vmatprep.mubr.f32.mxu0 0.0
      %858 = vmatmul.mubr.f32.gmra.mxu0 %v724
      %v859 = vpop.f32.mrf.mxu0
      %v860 = vadd.f32 0.0, %v859
      %v861 = vpop.f32.mrf.mxu0
      %862 = vmatprep.mubr.f32.mxu0 0.0
      %863 = vmatmul.mubr.f32.gmra.mxu0 %v727
      %v864 = vpop.f32.mrf.mxu0
      %v865 = vadd.f32 0.0, %v864
      %v866 = vpop.f32.mrf.mxu0
      %867 = vmatprep.mubr.f32.mxu0 0.0
      %868 = vmatmul.mubr.f32.gmra.mxu0 %v730
      %v869 = vpop.f32.mrf.mxu0
      %v870 = vadd.f32 0.0, %v869
      %v871 = vpop.f32.mrf.mxu0
      %872 = vmatprep.mubr.f32.mxu0 0.0
      %873 = vmatmul.mubr.f32.gmra.mxu0 %v733
      %v874 = vpop.f32.mrf.mxu0
      %v875 = vadd.f32 0.0, %v874
      %v876 = vpop.f32.mrf.mxu0
      %877 = vmatprep.mubr.f32.mxu0 0.0
      %878 = vmatmul.mubr.f32.gmra.mxu0 %v736
      %v879 = vpop.f32.mrf.mxu0
      %v880 = vadd.f32 0.0, %v879
      %v881 = vpop.f32.mrf.mxu0
      %882 = vdwg.mxu0
      %883 = vmatprep.subr.mxu0 0.0
      %884 = vmatpush1.msra.mxu0 0.0
      %885 = vmatprep.subr.mxu0 0.0
      %886 = vmatpush1.msra.mxu0 0.0
      %887 = vmatprep.subr.mxu0 0.0
      %888 = vmatpush1.msra.mxu0 0.0
      %889 = vmatprep.subr.mxu0 0.0
      %890 = vmatpush1.msra.mxu0 0.0
      %891 = vmatprep.subr.mxu0 0.0
      %892 = vmatpush1.msra.mxu0 0.0
      %893 = vmatprep.subr.mxu0 0.0
      %894 = vmatpush1.msra.mxu0 0.0
      %895 = vmatprep.subr.mxu0 0.0
      %896 = vmatpush1.msra.mxu0 0.0
      %897 = vmatprep.subr.mxu0 0.0
      %898 = vmatpush1.msra.mxu0 0.0
      %899 = vmatprep.subr.mxu0 0.0
      %900 = vmatpush1.msra.mxu0 0.0
      %901 = vmatprep.subr.mxu0 0.0
      %902 = vmatpush1.msra.mxu0 0.0
      %903 = vmatprep.subr.mxu0 0.0
      %904 = vmatpush1.msra.mxu0 0.0
      %905 = vmatprep.subr.mxu0 0.0
      %906 = vmatpush1.msra.mxu0 0.0
      %907 = vmatprep.subr.mxu0 0.0
      %908 = vmatpush1.msra.mxu0 %v664
      %909 = vmatprep.subr.mxu0 0.0
      %910 = vmatpush1.msra.mxu0 %v663
      %911 = vmatprep.subr.mxu0 0.0
      %912 = vmatpush1.msra.mxu0 %v662
      %913 = vmatprep.subr.mxu0 0.0
      %914 = vmatpush1.msra.mxu0 %v661
      %915 = vmatprep.subr.mxu0 0.0
      %916 = vmatpush2.msra.mxu0 0.0
      %917 = vmatprep.subr.mxu0 0.0
      %918 = vmatpush2.msra.mxu0 0.0
      %919 = vmatprep.subr.mxu0 0.0
      %920 = vmatpush2.msra.mxu0 0.0
      %921 = vmatprep.subr.mxu0 0.0
      %922 = vmatpush2.msra.mxu0 0.0
      %923 = vmatprep.subr.mxu0 0.0
      %924 = vmatpush2.msra.mxu0 0.0
      %925 = vmatprep.subr.mxu0 0.0
      %926 = vmatpush2.msra.mxu0 0.0
      %927 = vmatprep.subr.mxu0 0.0
      %928 = vmatpush2.msra.mxu0 0.0
      %929 = vmatprep.subr.mxu0 0.0
      %930 = vmatpush2.msra.mxu0 0.0
      %931 = vmatprep.subr.mxu0 0.0
      %932 = vmatpush2.msra.mxu0 0.0
      %933 = vmatprep.subr.mxu0 0.0
      %934 = vmatpush2.msra.mxu0 0.0
      %935 = vmatprep.subr.mxu0 0.0
      %936 = vmatpush2.msra.mxu0 0.0
      %937 = vmatprep.subr.mxu0 0.0
      %938 = vmatpush2.msra.mxu0 0.0
      %939 = vmatprep.subr.mxu0 0.0
      %940 = vmatpush2.msra.mxu0 0.0
      %941 = vmatprep.subr.mxu0 0.0
      %942 = vmatpush2.msra.mxu0 0.0
      %943 = vmatprep.subr.mxu0 0.0
      %944 = vmatpush2.msra.mxu0 0.0
      %945 = vmatprep.subr.mxu0 0.0
      %946 = vmatpush2.msra.mxu0 0.0
      %947 = vmatprep.mubr.f32.mxu0 0.0
      %948 = vmatmul.mubr.f32.gmra.mxu0 %v691
      %v949 = vpop.f32.mrf.mxu0
      %v950 = vadd.f32 0.0, %v949
      %v951 = vpop.f32.mrf.mxu0
      %952 = vmatprep.mubr.f32.mxu0 0.0
      %953 = vmatmul.mubr.f32.gmra.mxu0 %v694
      %v954 = vpop.f32.mrf.mxu0
      %v955 = vadd.f32 0.0, %v954
      %v956 = vpop.f32.mrf.mxu0
      %957 = vmatprep.mubr.f32.mxu0 0.0
      %958 = vmatmul.mubr.f32.gmra.mxu0 %v697
      %v959 = vpop.f32.mrf.mxu0
      %v960 = vadd.f32 0.0, %v959
      %v961 = vpop.f32.mrf.mxu0
      %962 = vmatprep.mubr.f32.mxu0 0.0
      %963 = vmatmul.mubr.f32.gmra.mxu0 %v700
      %v964 = vpop.f32.mrf.mxu0
      %v965 = vadd.f32 0.0, %v964
      %v966 = vpop.f32.mrf.mxu0
      %967 = vmatprep.mubr.f32.mxu0 0.0
      %968 = vmatmul.mubr.f32.gmra.mxu0 %v703
      %v969 = vpop.f32.mrf.mxu0
      %v970 = vadd.f32 0.0, %v969
      %v971 = vpop.f32.mrf.mxu0
      %972 = vmatprep.mubr.f32.mxu0 0.0
      %973 = vmatmul.mubr.f32.gmra.mxu0 %v706
      %v974 = vpop.f32.mrf.mxu0
      %v975 = vadd.f32 0.0, %v974
      %v976 = vpop.f32.mrf.mxu0
      %977 = vmatprep.mubr.f32.mxu0 0.0
      %978 = vmatmul.mubr.f32.gmra.mxu0 %v709
      %v979 = vpop.f32.mrf.mxu0
      %v980 = vadd.f32 0.0, %v979
      %v981 = vpop.f32.mrf.mxu0
      %982 = vmatprep.mubr.f32.mxu0 0.0
      %983 = vmatmul.mubr.f32.gmra.mxu0 %v712
      %v984 = vpop.f32.mrf.mxu0
      %v985 = vadd.f32 0.0, %v984
      %v986 = vpop.f32.mrf.mxu0
      %987 = vmatprep.mubr.f32.mxu0 0.0
      %988 = vmatmul.mubr.f32.gmra.mxu0 %v715
      %v989 = vpop.f32.mrf.mxu0
      %v990 = vadd.f32 0.0, %v989
      %v991 = vpop.f32.mrf.mxu0
      %992 = vmatprep.mubr.f32.mxu0 0.0
      %993 = vmatmul.mubr.f32.gmra.mxu0 %v718
      %v994 = vpop.f32.mrf.mxu0
      %v995 = vadd.f32 0.0, %v994
      %v996 = vpop.f32.mrf.mxu0
      %997 = vmatprep.mubr.f32.mxu0 0.0
      %998 = vmatmul.mubr.f32.gmra.mxu0 %v721
      %v999 = vpop.f32.mrf.mxu0
      %v1000 = vadd.f32 0.0, %v999
      %v1001 = vpop.f32.mrf.mxu0
      %1002 = vmatprep.mubr.f32.mxu0 0.0
      %1003 = vmatmul.mubr.f32.gmra.mxu0 %v724
      %v1004 = vpop.f32.mrf.mxu0
      %v1005 = vadd.f32 0.0, %v1004
      %v1006 = vpop.f32.mrf.mxu0
      %1007 = vmatprep.mubr.f32.mxu0 0.0
      %1008 = vmatmul.mubr.f32.gmra.mxu0 %v727
      %v1009 = vpop.f32.mrf.mxu0
      %v1010 = vadd.f32 0.0, %v1009
      %v1011 = vpop.f32.mrf.mxu0
      %1012 = vmatprep.mubr.f32.mxu0 0.0
      %1013 = vmatmul.mubr.f32.gmra.mxu0 %v730
      %v1014 = vpop.f32.mrf.mxu0
      %v1015 = vadd.f32 0.0, %v1014
      %v1016 = vpop.f32.mrf.mxu0
      %1017 = vmatprep.mubr.f32.mxu0 0.0
      %1018 = vmatmul.mubr.f32.gmra.mxu0 %v733
      %v1019 = vpop.f32.mrf.mxu0
      %v1020 = vadd.f32 0.0, %v1019
      %v1021 = vpop.f32.mrf.mxu0
      %1022 = vmatprep.mubr.f32.mxu0 0.0
      %1023 = vmatmul.mubr.f32.gmra.mxu0 %v736
      %v1024 = vpop.f32.mrf.mxu0
      %v1025 = vadd.f32 0.0, %v1024
      %v1026 = vpop.f32.mrf.mxu0
      %1027 = vdwg.mxu0
      %vm1028 = vcmp.gt.f32.partialorder %v805, 0.0
      %vm1029 = vcmp.gt.f32.partialorder %v810, 0.0
      %vm1030 = vcmp.gt.f32.partialorder %v815, 0.0
      %vm1031 = vcmp.gt.f32.partialorder %v820, 0.0
      %vm1032 = vcmp.gt.f32.partialorder %v825, 0.0
      %vm1033 = vcmp.gt.f32.partialorder %v830, 0.0
      %vm1034 = vcmp.gt.f32.partialorder %v835, 0.0
      %vm1035 = vcmp.gt.f32.partialorder %v840, 0.0
      %vm1036 = vcmp.gt.f32.partialorder %v845, 0.0
      %vm1037 = vcmp.gt.f32.partialorder %v850, 0.0
      %vm1038 = vcmp.gt.f32.partialorder %v855, 0.0
      %vm1039 = vcmp.gt.f32.partialorder %v860, 0.0
      %vm1040 = vcmp.gt.f32.partialorder %v865, 0.0
      %vm1041 = vcmp.gt.f32.partialorder %v870, 0.0
      %vm1042 = vcmp.gt.f32.partialorder %v875, 0.0
      %vm1043 = vcmp.gt.f32.partialorder %v880, 0.0
      %v1044 = vadd.f32 %v805, 1.0
      %v1045 = vadd.f32 %v810, 1.0
      %v1046 = vadd.f32 %v815, 1.0
      %v1047 = vadd.f32 %v820, 1.0
      %v1048 = vadd.f32 %v825, 1.0
      %v1049 = vadd.f32 %v830, 1.0
      %v1050 = vadd.f32 %v835, 1.0
      %v1051 = vadd.f32 %v840, 1.0
      %v1052 = vadd.f32 %v845, 1.0
      %v1053 = vadd.f32 %v850, 1.0
      %v1054 = vadd.f32 %v855, 1.0
      %v1055 = vadd.f32 %v860, 1.0
      %v1056 = vadd.f32 %v865, 1.0
      %v1057 = vadd.f32 %v870, 1.0
      %v1058 = vadd.f32 %v875, 1.0
      %v1059 = vadd.f32 %v880, 1.0
      %v1060 = vmul.f32 %v805, 1.442695
      %v1061 = vpow.pop %v1060
      %v1062 = vmul.f32 %v810, 1.442695
      %v1063 = vpow.pop %v1062
      %v1064 = vmul.f32 %v815, 1.442695
      %v1065 = vpow.pop %v1064
      %v1066 = vmul.f32 %v820, 1.442695
      %v1067 = vpow.pop %v1066
      %v1068 = vmul.f32 %v825, 1.442695
      %v1069 = vpow.pop %v1068
      %v1070 = vmul.f32 %v830, 1.442695
      %v1071 = vpow.pop %v1070
      %v1072 = vmul.f32 %v835, 1.442695
      %v1073 = vpow.pop %v1072
      %v1074 = vmul.f32 %v840, 1.442695
      %v1075 = vpow.pop %v1074
      %v1076 = vmul.f32 %v845, 1.442695
      %v1077 = vpow.pop %v1076
      %v1078 = vmul.f32 %v850, 1.442695
      %v1079 = vpow.pop %v1078
      %v1080 = vmul.f32 %v855, 1.442695
      %v1081 = vpow.pop %v1080
      %v1082 = vmul.f32 %v860, 1.442695
      %v1083 = vpow.pop %v1082
      %v1084 = vmul.f32 %v865, 1.442695
      %v1085 = vpow.pop %v1084
      %v1086 = vmul.f32 %v870, 1.442695
      %v1087 = vpow.pop %v1086
      %v1088 = vmul.f32 %v875, 1.442695
      %v1089 = vpow.pop %v1088
      %v1090 = vmul.f32 %v880, 1.442695
      %v1091 = vpow.pop %v1090
      %v1092 = vsel %vm1028, %v1044, %v1061
      %v1093 = vsel %vm1029, %v1045, %v1063
      %v1094 = vsel %vm1030, %v1046, %v1065
      %v1095 = vsel %vm1031, %v1047, %v1067
      %v1096 = vsel %vm1032, %v1048, %v1069
      %v1097 = vsel %vm1033, %v1049, %v1071
      %v1098 = vsel %vm1034, %v1050, %v1073
      %v1099 = vsel %vm1035, %v1051, %v1075
      %v1100 = vsel %vm1036, %v1052, %v1077
      %v1101 = vsel %vm1037, %v1053, %v1079
      %v1102 = vsel %vm1038, %v1054, %v1081
      %v1103 = vsel %vm1039, %v1055, %v1083
      %v1104 = vsel %vm1040, %v1056, %v1085
      %v1105 = vsel %vm1041, %v1057, %v1087
      %v1106 = vsel %vm1042, %v1058, %v1089
      %v1107 = vsel %vm1043, %v1059, %v1091
      %vm1108 = vcmp.gt.f32.partialorder %v950, 0.0
      %vm1109 = vcmp.gt.f32.partialorder %v955, 0.0
      %vm1110 = vcmp.gt.f32.partialorder %v960, 0.0
      %vm1111 = vcmp.gt.f32.partialorder %v965, 0.0
      %vm1112 = vcmp.gt.f32.partialorder %v970, 0.0
      %vm1113 = vcmp.gt.f32.partialorder %v975, 0.0
      %vm1114 = vcmp.gt.f32.partialorder %v980, 0.0
      %vm1115 = vcmp.gt.f32.partialorder %v985, 0.0
      %vm1116 = vcmp.gt.f32.partialorder %v990, 0.0
      %vm1117 = vcmp.gt.f32.partialorder %v995, 0.0
      %vm1118 = vcmp.gt.f32.partialorder %v1000, 0.0
      %vm1119 = vcmp.gt.f32.partialorder %v1005, 0.0
      %vm1120 = vcmp.gt.f32.partialorder %v1010, 0.0
      %vm1121 = vcmp.gt.f32.partialorder %v1015, 0.0
      %vm1122 = vcmp.gt.f32.partialorder %v1020, 0.0
      %vm1123 = vcmp.gt.f32.partialorder %v1025, 0.0
      %v1124 = vadd.f32 %v950, 1.0
      %v1125 = vadd.f32 %v955, 1.0
      %v1126 = vadd.f32 %v960, 1.0
      %v1127 = vadd.f32 %v965, 1.0
      %v1128 = vadd.f32 %v970, 1.0
      %v1129 = vadd.f32 %v975, 1.0
      %v1130 = vadd.f32 %v980, 1.0
      %v1131 = vadd.f32 %v985, 1.0
      %v1132 = vadd.f32 %v990, 1.0
      %v1133 = vadd.f32 %v995, 1.0
      %v1134 = vadd.f32 %v1000, 1.0
      %v1135 = vadd.f32 %v1005, 1.0
      %v1136 = vadd.f32 %v1010, 1.0
      %v1137 = vadd.f32 %v1015, 1.0
      %v1138 = vadd.f32 %v1020, 1.0
      %v1139 = vadd.f32 %v1025, 1.0
      %v1140 = vmul.f32 %v950, 1.442695
      %v1141 = vpow.pop %v1140
      %v1142 = vmul.f32 %v955, 1.442695
      %v1143 = vpow.pop %v1142
      %v1144 = vmul.f32 %v960, 1.442695
      %v1145 = vpow.pop %v1144
      %v1146 = vmul.f32 %v965, 1.442695
      %v1147 = vpow.pop %v1146
      %v1148 = vmul.f32 %v970, 1.442695
      %v1149 = vpow.pop %v1148
      %v1150 = vmul.f32 %v975, 1.442695
      %v1151 = vpow.pop %v1150
      %v1152 = vmul.f32 %v980, 1.442695
      %v1153 = vpow.pop %v1152
      %v1154 = vmul.f32 %v985, 1.442695
      %v1155 = vpow.pop %v1154
      %v1156 = vmul.f32 %v990, 1.442695
      %v1157 = vpow.pop %v1156
      %v1158 = vmul.f32 %v995, 1.442695
      %v1159 = vpow.pop %v1158
      %v1160 = vmul.f32 %v1000, 1.442695
      %v1161 = vpow.pop %v1160
      %v1162 = vmul.f32 %v1005, 1.442695
      %v1163 = vpow.pop %v1162
      %v1164 = vmul.f32 %v1010, 1.442695
      %v1165 = vpow.pop %v1164
      %v1166 = vmul.f32 %v1015, 1.442695
      %v1167 = vpow.pop %v1166
      %v1168 = vmul.f32 %v1020, 1.442695
      %v1169 = vpow.pop %v1168
      %v1170 = vmul.f32 %v1025, 1.442695
      %v1171 = vpow.pop %v1170
      %v1172 = vsel %vm1108, %v1124, %v1141
      %v1173 = vsel %vm1109, %v1125, %v1143
      %v1174 = vsel %vm1110, %v1126, %v1145
      %v1175 = vsel %vm1111, %v1127, %v1147
      %v1176 = vsel %vm1112, %v1128, %v1149
      %v1177 = vsel %vm1113, %v1129, %v1151
      %v1178 = vsel %vm1114, %v1130, %v1153
      %v1179 = vsel %vm1115, %v1131, %v1155
      %v1180 = vsel %vm1116, %v1132, %v1157
      %v1181 = vsel %vm1117, %v1133, %v1159
      %v1182 = vsel %vm1118, %v1134, %v1161
      %v1183 = vsel %vm1119, %v1135, %v1163
      %v1184 = vsel %vm1120, %v1136, %v1165
      %v1185 = vsel %vm1121, %v1137, %v1167
      %v1186 = vsel %vm1122, %v1138, %v1169
      %v1187 = vsel %vm1123, %v1139, %v1171
      %1188 = vxpose.xlu0.b32.start [1/16] %v1172, 128
      %1189 = vxpose.xlu0.b32.cont [2/16] %v1173, 128
      %1190 = vxpose.xlu0.b32.cont [3/16] %v1174, 128
      %1191 = vxpose.xlu0.b32.cont [4/16] %v1175, 128
      %1192 = vxpose.xlu0.b32.cont [5/16] %v1176, 128
      %1193 = vxpose.xlu0.b32.cont [6/16] %v1177, 128
      %1194 = vxpose.xlu0.b32.cont [7/16] %v1178, 128
      %1195 = vxpose.xlu0.b32.cont [8/16] %v1179, 128
      %1196 = vxpose.xlu0.b32.cont [9/16] 0.0, 128
      %1197 = vxpose.xlu0.b32.cont [10/16] 0.0, 128
      %1198 = vxpose.xlu0.b32.cont [11/16] 0.0, 128
      %1199 = vxpose.xlu0.b32.cont [12/16] 0.0, 128
      %1200 = vxpose.xlu0.b32.cont [13/16] 0.0, 128
      %1201 = vxpose.xlu0.b32.cont [14/16] 0.0, 128
      %1202 = vxpose.xlu0.b32.cont [15/16] 0.0, 128
      %1203 = vxpose.xlu0.b32.end [16/16] 0.0, 128
      %v1204 = vpop.trf.xlu0
      %v1205 = vpop.trf.xlu0
      %v1206 = vpop.trf.xlu0
      %v1207 = vpop.trf.xlu0
      %v1208 = vpop.trf.xlu0
      %v1209 = vpop.trf.xlu0
      %v1210 = vpop.trf.xlu0
      %v1211 = vpop.trf.xlu0
      %v1212 = vpop.trf.xlu0
      %v1213 = vpop.trf.xlu0
      %v1214 = vpop.trf.xlu0
      %v1215 = vpop.trf.xlu0
      %v1216 = vpop.trf.xlu0
      %v1217 = vpop.trf.xlu0
      %v1218 = vpop.trf.xlu0
      %v1219 = vpop.trf.xlu0
      %1228 = vrot.lane.b32.xlu0 %v950, 96
      %v1229 = vpop.permute.xlu0 %1228
      %1230 = vrot.lane.b32.xlu0 %v955, 96
      %v1231 = vpop.permute.xlu0 %1230
      %1232 = vrot.lane.b32.xlu0 %v960, 96
      %v1233 = vpop.permute.xlu0 %1232
      %1234 = vrot.lane.b32.xlu0 %v965, 96
      %v1235 = vpop.permute.xlu0 %1234
      %1236 = vrot.lane.b32.xlu0 %v970, 96
      %v1237 = vpop.permute.xlu0 %1236
      %1238 = vrot.lane.b32.xlu0 %v975, 96
      %v1239 = vpop.permute.xlu0 %1238
      %1240 = vrot.lane.b32.xlu0 %v980, 96
      %v1241 = vpop.permute.xlu0 %1240
      %1242 = vrot.lane.b32.xlu0 %v985, 96
      %v1243 = vpop.permute.xlu0 %1242
      %vm1252 = vcmask 523264
      %v1254 = vsel %vm1252, %v1204, 0
      %v1257 = vsel %vm1252, %v1205, 0
      %v1260 = vsel %vm1252, %v1206, 0
      %v1263 = vsel %vm1252, %v1207, 0
      %1265 = vmatprep.subr.mxu0 0.0
      %1266 = vmatpush1.msra.mxu0 0.0
      %1267 = vmatprep.subr.mxu0 0.0
      %1268 = vmatpush1.msra.mxu0 0.0
      %1269 = vmatprep.subr.mxu0 0.0
      %1270 = vmatpush1.msra.mxu0 0.0
      %1271 = vmatprep.subr.mxu0 0.0
      %1272 = vmatpush1.msra.mxu0 0.0
      %1273 = vmatprep.subr.mxu0 0.0
      %1274 = vmatpush1.msra.mxu0 0.0
      %1275 = vmatprep.subr.mxu0 0.0
      %1276 = vmatpush1.msra.mxu0 0.0
      %1277 = vmatprep.subr.mxu0 0.0
      %1278 = vmatpush1.msra.mxu0 0.0
      %1279 = vmatprep.subr.mxu0 0.0
      %1280 = vmatpush1.msra.mxu0 0.0
      %1281 = vmatprep.subr.mxu0 0.0
      %1282 = vmatpush1.msra.mxu0 %v1243
      %1283 = vmatprep.subr.mxu0 0.0
      %1284 = vmatpush1.msra.mxu0 %v1241
      %1285 = vmatprep.subr.mxu0 0.0
      %1286 = vmatpush1.msra.mxu0 %v1239
      %1287 = vmatprep.subr.mxu0 0.0
      %1288 = vmatpush1.msra.mxu0 %v1237
      %1289 = vmatprep.subr.mxu0 0.0
      %1290 = vmatpush1.msra.mxu0 %v1235
      %1291 = vmatprep.subr.mxu0 0.0
      %1292 = vmatpush1.msra.mxu0 %v1233
      %1293 = vmatprep.subr.mxu0 0.0
      %1294 = vmatpush1.msra.mxu0 %v1231
      %1295 = vmatprep.subr.mxu0 0.0
      %1296 = vmatpush1.msra.mxu0 %v1229
      %1297 = vmatprep.subr.mxu0 0.0
      %1298 = vmatpush2.msra.mxu0 0.0
      %1299 = vmatprep.subr.mxu0 0.0
      %1300 = vmatpush2.msra.mxu0 0.0
      %1301 = vmatprep.subr.mxu0 0.0
      %1302 = vmatpush2.msra.mxu0 0.0
      %1303 = vmatprep.subr.mxu0 0.0
      %1304 = vmatpush2.msra.mxu0 0.0
      %1305 = vmatprep.subr.mxu0 0.0
      %1306 = vmatpush2.msra.mxu0 0.0
      %1307 = vmatprep.subr.mxu0 0.0
      %1308 = vmatpush2.msra.mxu0 0.0
      %1309 = vmatprep.subr.mxu0 0.0
      %1310 = vmatpush2.msra.mxu0 0.0
      %1311 = vmatprep.subr.mxu0 0.0
      %1312 = vmatpush2.msra.mxu0 0.0
      %1313 = vmatprep.subr.mxu0 0.0
      %1314 = vmatpush2.msra.mxu0 0.0
      %1315 = vmatprep.subr.mxu0 0.0
      %1316 = vmatpush2.msra.mxu0 0.0
      %1317 = vmatprep.subr.mxu0 0.0
      %1318 = vmatpush2.msra.mxu0 0.0
      %1319 = vmatprep.subr.mxu0 0.0
      %1320 = vmatpush2.msra.mxu0 0.0
      %1321 = vmatprep.subr.mxu0 0.0
      %1322 = vmatpush2.msra.mxu0 0.0
      %1323 = vmatprep.subr.mxu0 0.0
      %1324 = vmatpush2.msra.mxu0 0.0
      %1325 = vmatprep.subr.mxu0 0.0
      %1326 = vmatpush2.msra.mxu0 0.0
      %1327 = vmatprep.subr.mxu0 0.0
      %1328 = vmatpush2.msra.mxu0 0.0
      %1329 = vmatprep.mubr.f32.mxu0 0.0
      %1330 = vmatmul.mubr.f32.gmra.mxu0 %v1254
      %v1331 = vpop.f32.mrf.mxu0
      %v1332 = vadd.f32 0.0, %v1331
      %v1333 = vpop.f32.mrf.mxu0
      %1334 = vmatprep.mubr.f32.mxu0 0.0
      %1335 = vmatmul.mubr.f32.gmra.mxu0 %v1257
      %v1336 = vpop.f32.mrf.mxu0
      %v1337 = vadd.f32 0.0, %v1336
      %v1338 = vpop.f32.mrf.mxu0
      %1339 = vmatprep.mubr.f32.mxu0 0.0
      %1340 = vmatmul.mubr.f32.gmra.mxu0 %v1260
      %v1341 = vpop.f32.mrf.mxu0
      %v1342 = vadd.f32 0.0, %v1341
      %v1343 = vpop.f32.mrf.mxu0
      %1344 = vmatprep.mubr.f32.mxu0 0.0
      %1345 = vmatmul.mubr.f32.gmra.mxu0 %v1263
      %v1346 = vpop.f32.mrf.mxu0
      %v1347 = vadd.f32 0.0, %v1346
      %v1348 = vpop.f32.mrf.mxu0
      %1349 = vdwg.mxu0
      %v1350 = vmul.f32 %v1332, %v637
      %v1351 = vmul.f32 %v1337, %v638
      %v1352 = vmul.f32 %v1342, %v639
      %v1353 = vmul.f32 %v1347, %v640
      %v1354 = vsel %vm689, %v1172, 0.0
      %v1355 = vsel %vm689, %v1173, 0.0
      %v1356 = vadd.f32 %v1354, %v1355
      %v1357 = vsel %vm689, %v1174, 0.0
      %v1358 = vadd.f32 %v1356, %v1357
      %v1359 = vsel %vm689, %v1175, 0.0
      %v1360 = vadd.f32 %v1358, %v1359
      %v1361 = vsel %vm689, %v1176, 0.0
      %v1362 = vadd.f32 %v1360, %v1361
      %v1363 = vsel %vm689, %v1177, 0.0
      %v1364 = vadd.f32 %v1362, %v1363
      %v1365 = vsel %vm689, %v1178, 0.0
      %v1366 = vadd.f32 %v1364, %v1365
      %v1367 = vsel %vm689, %v1179, 0.0
      %v1368 = vadd.f32 %v1366, %v1367
      %v1369 = vrot.slane %v1368, 4
      %v1370 = vadd.f32 %v1368, %v1369
      %v1371 = vrot.slane %v1370, 2
      %v1372 = vadd.f32 %v1370, %v1371
      %v1373 = vrot.slane %v1372, 1
      %v1374 = vadd.f32 %v1372, %v1373
      %v1376 = vsel %vm689, %v1092, 0
      %v1379 = vsel %vm689, %v1093, 0
      %v1382 = vsel %vm689, %v1094, 0
      %v1385 = vsel %vm689, %v1095, 0
      %v1388 = vsel %vm689, %v1096, 0
      %v1391 = vsel %vm689, %v1097, 0
      %v1394 = vsel %vm689, %v1098, 0
      %v1397 = vsel %vm689, %v1099, 0
      %1399 = vmatprep.subr.mxu0 0.0
      %1400 = vmatpush1.msra.mxu0 0.0
      %1401 = vmatprep.subr.mxu0 0.0
      %1402 = vmatpush1.msra.mxu0 0.0
      %1403 = vmatprep.subr.mxu0 0.0
      %1404 = vmatpush1.msra.mxu0 0.0
      %1405 = vmatprep.subr.mxu0 0.0
      %1406 = vmatpush1.msra.mxu0 0.0
      %1407 = vmatprep.subr.mxu0 0.0
      %1408 = vmatpush1.msra.mxu0 0.0
      %1409 = vmatprep.subr.mxu0 0.0
      %1410 = vmatpush1.msra.mxu0 0.0
      %1411 = vmatprep.subr.mxu0 0.0
      %1412 = vmatpush1.msra.mxu0 0.0
      %1413 = vmatprep.subr.mxu0 0.0
      %1414 = vmatpush1.msra.mxu0 0.0
      %1415 = vmatprep.subr.mxu0 0.0
      %1416 = vmatpush1.msra.mxu0 0.0
      %1417 = vmatprep.subr.mxu0 0.0
      %1418 = vmatpush1.msra.mxu0 0.0
      %1419 = vmatprep.subr.mxu0 0.0
      %1420 = vmatpush1.msra.mxu0 0.0
      %1421 = vmatprep.subr.mxu0 0.0
      %1422 = vmatpush1.msra.mxu0 0.0
      %1423 = vmatprep.subr.mxu0 0.0
      %1424 = vmatpush1.msra.mxu0 %v1353
      %1425 = vmatprep.subr.mxu0 0.0
      %1426 = vmatpush1.msra.mxu0 %v1352
      %1427 = vmatprep.subr.mxu0 0.0
      %1428 = vmatpush1.msra.mxu0 %v1351
      %1429 = vmatprep.subr.mxu0 0.0
      %1430 = vmatpush1.msra.mxu0 %v1350
      %1431 = vmatprep.subr.mxu0 0.0
      %1432 = vmatpush2.msra.mxu0 0.0
      %1433 = vmatprep.subr.mxu0 0.0
      %1434 = vmatpush2.msra.mxu0 0.0
      %1435 = vmatprep.subr.mxu0 0.0
      %1436 = vmatpush2.msra.mxu0 0.0
      %1437 = vmatprep.subr.mxu0 0.0
      %1438 = vmatpush2.msra.mxu0 0.0
      %1439 = vmatprep.subr.mxu0 0.0
      %1440 = vmatpush2.msra.mxu0 0.0
      %1441 = vmatprep.subr.mxu0 0.0
      %1442 = vmatpush2.msra.mxu0 0.0
      %1443 = vmatprep.subr.mxu0 0.0
      %1444 = vmatpush2.msra.mxu0 0.0
      %1445 = vmatprep.subr.mxu0 0.0
      %1446 = vmatpush2.msra.mxu0 0.0
      %1447 = vmatprep.subr.mxu0 0.0
      %1448 = vmatpush2.msra.mxu0 0.0
      %1449 = vmatprep.subr.mxu0 0.0
      %1450 = vmatpush2.msra.mxu0 0.0
      %1451 = vmatprep.subr.mxu0 0.0
      %1452 = vmatpush2.msra.mxu0 0.0
      %1453 = vmatprep.subr.mxu0 0.0
      %1454 = vmatpush2.msra.mxu0 0.0
      %1455 = vmatprep.subr.mxu0 0.0
      %1456 = vmatpush2.msra.mxu0 0.0
      %1457 = vmatprep.subr.mxu0 0.0
      %1458 = vmatpush2.msra.mxu0 0.0
      %1459 = vmatprep.subr.mxu0 0.0
      %1460 = vmatpush2.msra.mxu0 0.0
      %1461 = vmatprep.subr.mxu0 0.0
      %1462 = vmatpush2.msra.mxu0 0.0
      %1463 = vmatprep.mubr.f32.mxu0 0.0
      %1464 = vmatmul.mubr.f32.gmra.mxu0 %v1376
      %v1465 = vpop.f32.mrf.mxu0
      %v1466 = vadd.f32 0.0, %v1465
      %v1467 = vpop.f32.mrf.mxu0
      %1468 = vmatprep.mubr.f32.mxu0 0.0
      %1469 = vmatmul.mubr.f32.gmra.mxu0 %v1379
      %v1470 = vpop.f32.mrf.mxu0
      %v1471 = vadd.f32 0.0, %v1470
      %v1472 = vpop.f32.mrf.mxu0
      %1473 = vmatprep.mubr.f32.mxu0 0.0
      %1474 = vmatmul.mubr.f32.gmra.mxu0 %v1382
      %v1475 = vpop.f32.mrf.mxu0
      %v1476 = vadd.f32 0.0, %v1475
      %v1477 = vpop.f32.mrf.mxu0
      %1478 = vmatprep.mubr.f32.mxu0 0.0
      %1479 = vmatmul.mubr.f32.gmra.mxu0 %v1385
      %v1480 = vpop.f32.mrf.mxu0
      %v1481 = vadd.f32 0.0, %v1480
      %v1482 = vpop.f32.mrf.mxu0
      %1483 = vmatprep.mubr.f32.mxu0 0.0
      %1484 = vmatmul.mubr.f32.gmra.mxu0 %v1388
      %v1485 = vpop.f32.mrf.mxu0
      %v1486 = vadd.f32 0.0, %v1485
      %v1487 = vpop.f32.mrf.mxu0
      %1488 = vmatprep.mubr.f32.mxu0 0.0
      %1489 = vmatmul.mubr.f32.gmra.mxu0 %v1391
      %v1490 = vpop.f32.mrf.mxu0
      %v1491 = vadd.f32 0.0, %v1490
      %v1492 = vpop.f32.mrf.mxu0
      %1493 = vmatprep.mubr.f32.mxu0 0.0
      %1494 = vmatmul.mubr.f32.gmra.mxu0 %v1394
      %v1495 = vpop.f32.mrf.mxu0
      %v1496 = vadd.f32 0.0, %v1495
      %v1497 = vpop.f32.mrf.mxu0
      %1498 = vmatprep.mubr.f32.mxu0 0.0
      %1499 = vmatmul.mubr.f32.gmra.mxu0 %v1397
      %v1500 = vpop.f32.mrf.mxu0
      %v1501 = vadd.f32 0.0, %v1500
      %v1502 = vpop.f32.mrf.mxu0
      %1503 = vdwg.mxu0
      %v1504 = vmul.f32 %v1092, %v1374
      %v1505 = vmul.f32 %v1093, %v1374
      %v1506 = vmul.f32 %v1094, %v1374
      %v1507 = vmul.f32 %v1095, %v1374
      %v1508 = vmul.f32 %v1096, %v1374
      %v1509 = vmul.f32 %v1097, %v1374
      %v1510 = vmul.f32 %v1098, %v1374
      %v1511 = vmul.f32 %v1099, %v1374
      %v1513 = vsel %vm689, %v1504, 0
      %v1516 = vsel %vm689, %v1505, 0
      %v1519 = vsel %vm689, %v1506, 0
      %v1522 = vsel %vm689, %v1507, 0
      %v1525 = vsel %vm689, %v1508, 0
      %v1528 = vsel %vm689, %v1509, 0
      %v1531 = vsel %vm689, %v1510, 0
      %v1534 = vsel %vm689, %v1511, 0
      %1536 = vmatprep.subr.mxu0 0.0
      %1537 = vmatpush1.msra.mxu0 0.0
      %1538 = vmatprep.subr.mxu0 0.0
      %1539 = vmatpush1.msra.mxu0 0.0
      %1540 = vmatprep.subr.mxu0 0.0
      %1541 = vmatpush1.msra.mxu0 0.0
      %1542 = vmatprep.subr.mxu0 0.0
      %1543 = vmatpush1.msra.mxu0 0.0
      %1544 = vmatprep.subr.mxu0 0.0
      %1545 = vmatpush1.msra.mxu0 0.0
      %1546 = vmatprep.subr.mxu0 0.0
      %1547 = vmatpush1.msra.mxu0 0.0
      %1548 = vmatprep.subr.mxu0 0.0
      %1549 = vmatpush1.msra.mxu0 0.0
      %1550 = vmatprep.subr.mxu0 0.0
      %1551 = vmatpush1.msra.mxu0 0.0
      %1552 = vmatprep.subr.mxu0 0.0
      %1553 = vmatpush1.msra.mxu0 0.0
      %1554 = vmatprep.subr.mxu0 0.0
      %1555 = vmatpush1.msra.mxu0 0.0
      %1556 = vmatprep.subr.mxu0 0.0
      %1557 = vmatpush1.msra.mxu0 0.0
      %1558 = vmatprep.subr.mxu0 0.0
      %1559 = vmatpush1.msra.mxu0 0.0
      %1560 = vmatprep.subr.mxu0 0.0
      %1561 = vmatpush1.msra.mxu0 %v640
      %1562 = vmatprep.subr.mxu0 0.0
      %1563 = vmatpush1.msra.mxu0 %v639
      %1564 = vmatprep.subr.mxu0 0.0
      %1565 = vmatpush1.msra.mxu0 %v638
      %1566 = vmatprep.subr.mxu0 0.0
      %1567 = vmatpush1.msra.mxu0 %v637
      %1568 = vmatprep.subr.mxu0 0.0
      %1569 = vmatpush2.msra.mxu0 0.0
      %1570 = vmatprep.subr.mxu0 0.0
      %1571 = vmatpush2.msra.mxu0 0.0
      %1572 = vmatprep.subr.mxu0 0.0
      %1573 = vmatpush2.msra.mxu0 0.0
      %1574 = vmatprep.subr.mxu0 0.0
      %1575 = vmatpush2.msra.mxu0 0.0
      %1576 = vmatprep.subr.mxu0 0.0
      %1577 = vmatpush2.msra.mxu0 0.0
      %1578 = vmatprep.subr.mxu0 0.0
      %1579 = vmatpush2.msra.mxu0 0.0
      %1580 = vmatprep.subr.mxu0 0.0
      %1581 = vmatpush2.msra.mxu0 0.0
      %1582 = vmatprep.subr.mxu0 0.0
      %1583 = vmatpush2.msra.mxu0 0.0
      %1584 = vmatprep.subr.mxu0 0.0
      %1585 = vmatpush2.msra.mxu0 0.0
      %1586 = vmatprep.subr.mxu0 0.0
      %1587 = vmatpush2.msra.mxu0 0.0
      %1588 = vmatprep.subr.mxu0 0.0
      %1589 = vmatpush2.msra.mxu0 0.0
      %1590 = vmatprep.subr.mxu0 0.0
      %1591 = vmatpush2.msra.mxu0 0.0
      %1592 = vmatprep.subr.mxu0 0.0
      %1593 = vmatpush2.msra.mxu0 0.0
      %1594 = vmatprep.subr.mxu0 0.0
      %1595 = vmatpush2.msra.mxu0 0.0
      %1596 = vmatprep.subr.mxu0 0.0
      %1597 = vmatpush2.msra.mxu0 0.0
      %1598 = vmatprep.subr.mxu0 0.0
      %1599 = vmatpush2.msra.mxu0 0.0
      %1600 = vmatprep.mubr.f32.mxu0 0.0
      %1601 = vmatmul.mubr.f32.gmra.mxu0 %v1513
      %v1602 = vpop.f32.mrf.mxu0
      %v1603 = vadd.f32 1e-06, %v1602
      %v1604 = vpop.f32.mrf.mxu0
      %1605 = vmatprep.mubr.f32.mxu0 0.0
      %1606 = vmatmul.mubr.f32.gmra.mxu0 %v1516
      %v1607 = vpop.f32.mrf.mxu0
      %v1608 = vadd.f32 1e-06, %v1607
      %v1609 = vpop.f32.mrf.mxu0
      %1610 = vmatprep.mubr.f32.mxu0 0.0
      %1611 = vmatmul.mubr.f32.gmra.mxu0 %v1519
      %v1612 = vpop.f32.mrf.mxu0
      %v1613 = vadd.f32 1e-06, %v1612
      %v1614 = vpop.f32.mrf.mxu0
      %1615 = vmatprep.mubr.f32.mxu0 0.0
      %1616 = vmatmul.mubr.f32.gmra.mxu0 %v1522
      %v1617 = vpop.f32.mrf.mxu0
      %v1618 = vadd.f32 1e-06, %v1617
      %v1619 = vpop.f32.mrf.mxu0
      %1620 = vmatprep.mubr.f32.mxu0 0.0
      %1621 = vmatmul.mubr.f32.gmra.mxu0 %v1525
      %v1622 = vpop.f32.mrf.mxu0
      %v1623 = vadd.f32 1e-06, %v1622
      %v1624 = vpop.f32.mrf.mxu0
      %1625 = vmatprep.mubr.f32.mxu0 0.0
      %1626 = vmatmul.mubr.f32.gmra.mxu0 %v1528
      %v1627 = vpop.f32.mrf.mxu0
      %v1628 = vadd.f32 1e-06, %v1627
      %v1629 = vpop.f32.mrf.mxu0
      %1630 = vmatprep.mubr.f32.mxu0 0.0
      %1631 = vmatmul.mubr.f32.gmra.mxu0 %v1531
      %v1632 = vpop.f32.mrf.mxu0
      %v1633 = vadd.f32 1e-06, %v1632
      %v1634 = vpop.f32.mrf.mxu0
      %1635 = vmatprep.mubr.f32.mxu0 0.0
      %1636 = vmatmul.mubr.f32.gmra.mxu0 %v1534
      %v1637 = vpop.f32.mrf.mxu0
      %v1638 = vadd.f32 1e-06, %v1637
      %v1639 = vpop.f32.mrf.mxu0
      %1640 = vdwg.mxu0
      %v1641 = vrcp.pop %v1603
      %v1642 = vrcp.pop %v1608
      %v1643 = vrcp.pop %v1613
      %v1644 = vrcp.pop %v1618
      %v1645 = vrcp.pop %v1623
      %v1646 = vrcp.pop %v1628
      %v1647 = vrcp.pop %v1633
      %v1648 = vrcp.pop %v1638
      %v1649 = vmul.f32 %v1466, %v1641
      %v1650 = vmul.f32 %v1471, %v1642
      %v1651 = vmul.f32 %v1476, %v1643
      %v1652 = vmul.f32 %v1481, %v1644
      %v1653 = vmul.f32 %v1486, %v1645
      %v1654 = vmul.f32 %v1491, %v1646
      %v1655 = vmul.f32 %v1496, %v1647
      %v1656 = vmul.f32 %v1501, %v1648
      %1657 = vxpose.xlu0.b32.start [1/16] %v1180, 128
      %1658 = vxpose.xlu0.b32.cont [2/16] %v1181, 128
      %1659 = vxpose.xlu0.b32.cont [3/16] %v1182, 128
      %1660 = vxpose.xlu0.b32.cont [4/16] %v1183, 128
      %1661 = vxpose.xlu0.b32.cont [5/16] %v1184, 128
      %1662 = vxpose.xlu0.b32.cont [6/16] %v1185, 128
      %1663 = vxpose.xlu0.b32.cont [7/16] %v1186, 128
      %1664 = vxpose.xlu0.b32.cont [8/16] %v1187, 128
      %1665 = vxpose.xlu0.b32.cont [9/16] 0.0, 128
      %1666 = vxpose.xlu0.b32.cont [10/16] 0.0, 128
      %1667 = vxpose.xlu0.b32.cont [11/16] 0.0, 128
      %1668 = vxpose.xlu0.b32.cont [12/16] 0.0, 128
      %1669 = vxpose.xlu0.b32.cont [13/16] 0.0, 128
      %1670 = vxpose.xlu0.b32.cont [14/16] 0.0, 128
      %1671 = vxpose.xlu0.b32.cont [15/16] 0.0, 128
      %1672 = vxpose.xlu0.b32.end [16/16] 0.0, 128
      %v1673 = vpop.trf.xlu0
      %v1674 = vpop.trf.xlu0
      %v1675 = vpop.trf.xlu0
      %v1676 = vpop.trf.xlu0
      %v1677 = vpop.trf.xlu0
      %v1678 = vpop.trf.xlu0
      %v1679 = vpop.trf.xlu0
      %v1680 = vpop.trf.xlu0
      %v1681 = vpop.trf.xlu0
      %v1682 = vpop.trf.xlu0
      %v1683 = vpop.trf.xlu0
      %v1684 = vpop.trf.xlu0
      %v1685 = vpop.trf.xlu0
      %v1686 = vpop.trf.xlu0
      %v1687 = vpop.trf.xlu0
      %v1688 = vpop.trf.xlu0
      %1697 = vrot.lane.b32.xlu0 %v990, 96
      %v1698 = vpop.permute.xlu0 %1697
      %1699 = vrot.lane.b32.xlu0 %v995, 96
      %v1700 = vpop.permute.xlu0 %1699
      %1701 = vrot.lane.b32.xlu0 %v1000, 96
      %v1702 = vpop.permute.xlu0 %1701
      %1703 = vrot.lane.b32.xlu0 %v1005, 96
      %v1704 = vpop.permute.xlu0 %1703
      %1705 = vrot.lane.b32.xlu0 %v1010, 96
      %v1706 = vpop.permute.xlu0 %1705
      %1707 = vrot.lane.b32.xlu0 %v1015, 96
      %v1708 = vpop.permute.xlu0 %1707
      %1709 = vrot.lane.b32.xlu0 %v1020, 96
      %v1710 = vpop.permute.xlu0 %1709
      %1711 = vrot.lane.b32.xlu0 %v1025, 96
      %v1712 = vpop.permute.xlu0 %1711
      %v1722 = vsel %vm1252, %v1673, 0
      %v1725 = vsel %vm1252, %v1674, 0
      %v1728 = vsel %vm1252, %v1675, 0
      %v1731 = vsel %vm1252, %v1676, 0
      %1733 = vmatprep.subr.mxu0 0.0
      %1734 = vmatpush1.msra.mxu0 0.0
      %1735 = vmatprep.subr.mxu0 0.0
      %1736 = vmatpush1.msra.mxu0 0.0
      %1737 = vmatprep.subr.mxu0 0.0
      %1738 = vmatpush1.msra.mxu0 0.0
      %1739 = vmatprep.subr.mxu0 0.0
      %1740 = vmatpush1.msra.mxu0 0.0
      %1741 = vmatprep.subr.mxu0 0.0
      %1742 = vmatpush1.msra.mxu0 0.0
      %1743 = vmatprep.subr.mxu0 0.0
      %1744 = vmatpush1.msra.mxu0 0.0
      %1745 = vmatprep.subr.mxu0 0.0
      %1746 = vmatpush1.msra.mxu0 0.0
      %1747 = vmatprep.subr.mxu0 0.0
      %1748 = vmatpush1.msra.mxu0 0.0
      %1749 = vmatprep.subr.mxu0 0.0
      %1750 = vmatpush1.msra.mxu0 %v1712
      %1751 = vmatprep.subr.mxu0 0.0
      %1752 = vmatpush1.msra.mxu0 %v1710
      %1753 = vmatprep.subr.mxu0 0.0
      %1754 = vmatpush1.msra.mxu0 %v1708
      %1755 = vmatprep.subr.mxu0 0.0
      %1756 = vmatpush1.msra.mxu0 %v1706
      %1757 = vmatprep.subr.mxu0 0.0
      %1758 = vmatpush1.msra.mxu0 %v1704
      %1759 = vmatprep.subr.mxu0 0.0
      %1760 = vmatpush1.msra.mxu0 %v1702
      %1761 = vmatprep.subr.mxu0 0.0
      %1762 = vmatpush1.msra.mxu0 %v1700
      %1763 = vmatprep.subr.mxu0 0.0
      %1764 = vmatpush1.msra.mxu0 %v1698
      %1765 = vmatprep.subr.mxu0 0.0
      %1766 = vmatpush2.msra.mxu0 0.0
      %1767 = vmatprep.subr.mxu0 0.0
      %1768 = vmatpush2.msra.mxu0 0.0
      %1769 = vmatprep.subr.mxu0 0.0
      %1770 = vmatpush2.msra.mxu0 0.0
      %1771 = vmatprep.subr.mxu0 0.0
      %1772 = vmatpush2.msra.mxu0 0.0
      %1773 = vmatprep.subr.mxu0 0.0
      %1774 = vmatpush2.msra.mxu0 0.0
      %1775 = vmatprep.subr.mxu0 0.0
      %1776 = vmatpush2.msra.mxu0 0.0
      %1777 = vmatprep.subr.mxu0 0.0
      %1778 = vmatpush2.msra.mxu0 0.0
      %1779 = vmatprep.subr.mxu0 0.0
      %1780 = vmatpush2.msra.mxu0 0.0
      %1781 = vmatprep.subr.mxu0 0.0
      %1782 = vmatpush2.msra.mxu0 0.0
      %1783 = vmatprep.subr.mxu0 0.0
      %1784 = vmatpush2.msra.mxu0 0.0
      %1785 = vmatprep.subr.mxu0 0.0
      %1786 = vmatpush2.msra.mxu0 0.0
      %1787 = vmatprep.subr.mxu0 0.0
      %1788 = vmatpush2.msra.mxu0 0.0
      %1789 = vmatprep.subr.mxu0 0.0
      %1790 = vmatpush2.msra.mxu0 0.0
      %1791 = vmatprep.subr.mxu0 0.0
      %1792 = vmatpush2.msra.mxu0 0.0
      %1793 = vmatprep.subr.mxu0 0.0
      %1794 = vmatpush2.msra.mxu0 0.0
      %1795 = vmatprep.subr.mxu0 0.0
      %1796 = vmatpush2.msra.mxu0 0.0
      %1797 = vmatprep.mubr.f32.mxu0 0.0
      %1798 = vmatmul.mubr.f32.gmra.mxu0 %v1722
      %v1799 = vpop.f32.mrf.mxu0
      %v1800 = vadd.f32 0.0, %v1799
      %v1801 = vpop.f32.mrf.mxu0
      %1802 = vmatprep.mubr.f32.mxu0 0.0
      %1803 = vmatmul.mubr.f32.gmra.mxu0 %v1725
      %v1804 = vpop.f32.mrf.mxu0
      %v1805 = vadd.f32 0.0, %v1804
      %v1806 = vpop.f32.mrf.mxu0
      %1807 = vmatprep.mubr.f32.mxu0 0.0
      %1808 = vmatmul.mubr.f32.gmra.mxu0 %v1728
      %v1809 = vpop.f32.mrf.mxu0
      %v1810 = vadd.f32 0.0, %v1809
      %v1811 = vpop.f32.mrf.mxu0
      %1812 = vmatprep.mubr.f32.mxu0 0.0
      %1813 = vmatmul.mubr.f32.gmra.mxu0 %v1731
      %v1814 = vpop.f32.mrf.mxu0
      %v1815 = vadd.f32 0.0, %v1814
      %v1816 = vpop.f32.mrf.mxu0
      %1817 = vdwg.mxu0
      %v1818 = vmul.f32 %v1800, %v637
      %v1819 = vmul.f32 %v1805, %v638
      %v1820 = vmul.f32 %v1810, %v639
      %v1821 = vmul.f32 %v1815, %v640
      %v1822 = vsel %vm689, %v1180, 0.0
      %v1823 = vsel %vm689, %v1181, 0.0
      %v1824 = vadd.f32 %v1822, %v1823
      %v1825 = vsel %vm689, %v1182, 0.0
      %v1826 = vadd.f32 %v1824, %v1825
      %v1827 = vsel %vm689, %v1183, 0.0
      %v1828 = vadd.f32 %v1826, %v1827
      %v1829 = vsel %vm689, %v1184, 0.0
      %v1830 = vadd.f32 %v1828, %v1829
      %v1831 = vsel %vm689, %v1185, 0.0
      %v1832 = vadd.f32 %v1830, %v1831
      %v1833 = vsel %vm689, %v1186, 0.0
      %v1834 = vadd.f32 %v1832, %v1833
      %v1835 = vsel %vm689, %v1187, 0.0
      %v1836 = vadd.f32 %v1834, %v1835
      %v1837 = vrot.slane %v1836, 4
      %v1838 = vadd.f32 %v1836, %v1837
      %v1839 = vrot.slane %v1838, 2
      %v1840 = vadd.f32 %v1838, %v1839
      %v1841 = vrot.slane %v1840, 1
      %v1842 = vadd.f32 %v1840, %v1841
      %v1844 = vsel %vm689, %v1100, 0
      %v1847 = vsel %vm689, %v1101, 0
      %v1850 = vsel %vm689, %v1102, 0
      %v1853 = vsel %vm689, %v1103, 0
      %v1856 = vsel %vm689, %v1104, 0
      %v1859 = vsel %vm689, %v1105, 0
      %v1862 = vsel %vm689, %v1106, 0
      %v1865 = vsel %vm689, %v1107, 0
      %1867 = vmatprep.subr.mxu0 0.0
      %1868 = vmatpush1.msra.mxu0 0.0
      %1869 = vmatprep.subr.mxu0 0.0
      %1870 = vmatpush1.msra.mxu0 0.0
      %1871 = vmatprep.subr.mxu0 0.0
      %1872 = vmatpush1.msra.mxu0 0.0
      %1873 = vmatprep.subr.mxu0 0.0
      %1874 = vmatpush1.msra.mxu0 0.0
      %1875 = vmatprep.subr.mxu0 0.0
      %1876 = vmatpush1.msra.mxu0 0.0
      %1877 = vmatprep.subr.mxu0 0.0
      %1878 = vmatpush1.msra.mxu0 0.0
      %1879 = vmatprep.subr.mxu0 0.0
      %1880 = vmatpush1.msra.mxu0 0.0
      %1881 = vmatprep.subr.mxu0 0.0
      %1882 = vmatpush1.msra.mxu0 0.0
      %1883 = vmatprep.subr.mxu0 0.0
      %1884 = vmatpush1.msra.mxu0 0.0
      %1885 = vmatprep.subr.mxu0 0.0
      %1886 = vmatpush1.msra.mxu0 0.0
      %1887 = vmatprep.subr.mxu0 0.0
      %1888 = vmatpush1.msra.mxu0 0.0
      %1889 = vmatprep.subr.mxu0 0.0
      %1890 = vmatpush1.msra.mxu0 0.0
      %1891 = vmatprep.subr.mxu0 0.0
      %1892 = vmatpush1.msra.mxu0 %v1821
      %1893 = vmatprep.subr.mxu0 0.0
      %1894 = vmatpush1.msra.mxu0 %v1820
      %1895 = vmatprep.subr.mxu0 0.0
      %1896 = vmatpush1.msra.mxu0 %v1819
      %1897 = vmatprep.subr.mxu0 0.0
      %1898 = vmatpush1.msra.mxu0 %v1818
      %1899 = vmatprep.subr.mxu0 0.0
      %1900 = vmatpush2.msra.mxu0 0.0
      %1901 = vmatprep.subr.mxu0 0.0
      %1902 = vmatpush2.msra.mxu0 0.0
      %1903 = vmatprep.subr.mxu0 0.0
      %1904 = vmatpush2.msra.mxu0 0.0
      %1905 = vmatprep.subr.mxu0 0.0
      %1906 = vmatpush2.msra.mxu0 0.0
      %1907 = vmatprep.subr.mxu0 0.0
      %1908 = vmatpush2.msra.mxu0 0.0
      %1909 = vmatprep.subr.mxu0 0.0
      %1910 = vmatpush2.msra.mxu0 0.0
      %1911 = vmatprep.subr.mxu0 0.0
      %1912 = vmatpush2.msra.mxu0 0.0
      %1913 = vmatprep.subr.mxu0 0.0
      %1914 = vmatpush2.msra.mxu0 0.0
      %1915 = vmatprep.subr.mxu0 0.0
      %1916 = vmatpush2.msra.mxu0 0.0
      %1917 = vmatprep.subr.mxu0 0.0
      %1918 = vmatpush2.msra.mxu0 0.0
      %1919 = vmatprep.subr.mxu0 0.0
      %1920 = vmatpush2.msra.mxu0 0.0
      %1921 = vmatprep.subr.mxu0 0.0
      %1922 = vmatpush2.msra.mxu0 0.0
      %1923 = vmatprep.subr.mxu0 0.0
      %1924 = vmatpush2.msra.mxu0 0.0
      %1925 = vmatprep.subr.mxu0 0.0
      %1926 = vmatpush2.msra.mxu0 0.0
      %1927 = vmatprep.subr.mxu0 0.0
      %1928 = vmatpush2.msra.mxu0 0.0
      %1929 = vmatprep.subr.mxu0 0.0
      %1930 = vmatpush2.msra.mxu0 0.0
      %1931 = vmatprep.mubr.f32.mxu0 0.0
      %1932 = vmatmul.mubr.f32.gmra.mxu0 %v1844
      %v1933 = vpop.f32.mrf.mxu0
      %v1934 = vadd.f32 0.0, %v1933
      %v1935 = vpop.f32.mrf.mxu0
      %1936 = vmatprep.mubr.f32.mxu0 0.0
      %1937 = vmatmul.mubr.f32.gmra.mxu0 %v1847
      %v1938 = vpop.f32.mrf.mxu0
      %v1939 = vadd.f32 0.0, %v1938
      %v1940 = vpop.f32.mrf.mxu0
      %1941 = vmatprep.mubr.f32.mxu0 0.0
      %1942 = vmatmul.mubr.f32.gmra.mxu0 %v1850
      %v1943 = vpop.f32.mrf.mxu0
      %v1944 = vadd.f32 0.0, %v1943
      %v1945 = vpop.f32.mrf.mxu0
      %1946 = vmatprep.mubr.f32.mxu0 0.0
      %1947 = vmatmul.mubr.f32.gmra.mxu0 %v1853
      %v1948 = vpop.f32.mrf.mxu0
      %v1949 = vadd.f32 0.0, %v1948
      %v1950 = vpop.f32.mrf.mxu0
      %1951 = vmatprep.mubr.f32.mxu0 0.0
      %1952 = vmatmul.mubr.f32.gmra.mxu0 %v1856
      %v1953 = vpop.f32.mrf.mxu0
      %v1954 = vadd.f32 0.0, %v1953
      %v1955 = vpop.f32.mrf.mxu0
      %1956 = vmatprep.mubr.f32.mxu0 0.0
      %1957 = vmatmul.mubr.f32.gmra.mxu0 %v1859
      %v1958 = vpop.f32.mrf.mxu0
      %v1959 = vadd.f32 0.0, %v1958
      %v1960 = vpop.f32.mrf.mxu0
      %1961 = vmatprep.mubr.f32.mxu0 0.0
      %1962 = vmatmul.mubr.f32.gmra.mxu0 %v1862
      %v1963 = vpop.f32.mrf.mxu0
      %v1964 = vadd.f32 0.0, %v1963
      %v1965 = vpop.f32.mrf.mxu0
      %1966 = vmatprep.mubr.f32.mxu0 0.0
      %1967 = vmatmul.mubr.f32.gmra.mxu0 %v1865
      %v1968 = vpop.f32.mrf.mxu0
      %v1969 = vadd.f32 0.0, %v1968
      %v1970 = vpop.f32.mrf.mxu0
      %1971 = vdwg.mxu0
      %v1972 = vmul.f32 %v1100, %v1842
      %v1973 = vmul.f32 %v1101, %v1842
      %v1974 = vmul.f32 %v1102, %v1842
      %v1975 = vmul.f32 %v1103, %v1842
      %v1976 = vmul.f32 %v1104, %v1842
      %v1977 = vmul.f32 %v1105, %v1842
      %v1978 = vmul.f32 %v1106, %v1842
      %v1979 = vmul.f32 %v1107, %v1842
      %v1981 = vsel %vm689, %v1972, 0
      %v1984 = vsel %vm689, %v1973, 0
      %v1987 = vsel %vm689, %v1974, 0
      %v1990 = vsel %vm689, %v1975, 0
      %v1993 = vsel %vm689, %v1976, 0
      %v1996 = vsel %vm689, %v1977, 0
      %v1999 = vsel %vm689, %v1978, 0
      %v2002 = vsel %vm689, %v1979, 0
      %2004 = vmatprep.subr.mxu0 0.0
      %2005 = vmatpush1.msra.mxu0 0.0
      %2006 = vmatprep.subr.mxu0 0.0
      %2007 = vmatpush1.msra.mxu0 0.0
      %2008 = vmatprep.subr.mxu0 0.0
      %2009 = vmatpush1.msra.mxu0 0.0
      %2010 = vmatprep.subr.mxu0 0.0
      %2011 = vmatpush1.msra.mxu0 0.0
      %2012 = vmatprep.subr.mxu0 0.0
      %2013 = vmatpush1.msra.mxu0 0.0
      %2014 = vmatprep.subr.mxu0 0.0
      %2015 = vmatpush1.msra.mxu0 0.0
      %2016 = vmatprep.subr.mxu0 0.0
      %2017 = vmatpush1.msra.mxu0 0.0
      %2018 = vmatprep.subr.mxu0 0.0
      %2019 = vmatpush1.msra.mxu0 0.0
      %2020 = vmatprep.subr.mxu0 0.0
      %2021 = vmatpush1.msra.mxu0 0.0
      %2022 = vmatprep.subr.mxu0 0.0
      %2023 = vmatpush1.msra.mxu0 0.0
      %2024 = vmatprep.subr.mxu0 0.0
      %2025 = vmatpush1.msra.mxu0 0.0
      %2026 = vmatprep.subr.mxu0 0.0
      %2027 = vmatpush1.msra.mxu0 0.0
      %2028 = vmatprep.subr.mxu0 0.0
      %2029 = vmatpush1.msra.mxu0 %v640
      %2030 = vmatprep.subr.mxu0 0.0
      %2031 = vmatpush1.msra.mxu0 %v639
      %2032 = vmatprep.subr.mxu0 0.0
      %2033 = vmatpush1.msra.mxu0 %v638
      %2034 = vmatprep.subr.mxu0 0.0
      %2035 = vmatpush1.msra.mxu0 %v637
      %2036 = vmatprep.subr.mxu0 0.0
      %2037 = vmatpush2.msra.mxu0 0.0
      %2038 = vmatprep.subr.mxu0 0.0
      %2039 = vmatpush2.msra.mxu0 0.0
      %2040 = vmatprep.subr.mxu0 0.0
      %2041 = vmatpush2.msra.mxu0 0.0
      %2042 = vmatprep.subr.mxu0 0.0
      %2043 = vmatpush2.msra.mxu0 0.0
      %2044 = vmatprep.subr.mxu0 0.0
      %2045 = vmatpush2.msra.mxu0 0.0
      %2046 = vmatprep.subr.mxu0 0.0
      %2047 = vmatpush2.msra.mxu0 0.0
      %2048 = vmatprep.subr.mxu0 0.0
      %2049 = vmatpush2.msra.mxu0 0.0
      %2050 = vmatprep.subr.mxu0 0.0
      %2051 = vmatpush2.msra.mxu0 0.0
      %2052 = vmatprep.subr.mxu0 0.0
      %2053 = vmatpush2.msra.mxu0 0.0
      %2054 = vmatprep.subr.mxu0 0.0
      %2055 = vmatpush2.msra.mxu0 0.0
      %2056 = vmatprep.subr.mxu0 0.0
      %2057 = vmatpush2.msra.mxu0 0.0
      %2058 = vmatprep.subr.mxu0 0.0
      %2059 = vmatpush2.msra.mxu0 0.0
      %2060 = vmatprep.subr.mxu0 0.0
      %2061 = vmatpush2.msra.mxu0 0.0
      %2062 = vmatprep.subr.mxu0 0.0
      %2063 = vmatpush2.msra.mxu0 0.0
      %2064 = vmatprep.subr.mxu0 0.0
      %2065 = vmatpush2.msra.mxu0 0.0
      %2066 = vmatprep.subr.mxu0 0.0
      %2067 = vmatpush2.msra.mxu0 0.0
      %2068 = vmatprep.mubr.f32.mxu0 0.0
      %2069 = vmatmul.mubr.f32.gmra.mxu0 %v1981
      %v2070 = vpop.f32.mrf.mxu0
      %v2071 = vadd.f32 1e-06, %v2070
      %v2072 = vpop.f32.mrf.mxu0
      %2073 = vmatprep.mubr.f32.mxu0 0.0
      %2074 = vmatmul.mubr.f32.gmra.mxu0 %v1984
      %v2075 = vpop.f32.mrf.mxu0
      %v2076 = vadd.f32 1e-06, %v2075
      %v2077 = vpop.f32.mrf.mxu0
      %2078 = vmatprep.mubr.f32.mxu0 0.0
      %2079 = vmatmul.mubr.f32.gmra.mxu0 %v1987
      %v2080 = vpop.f32.mrf.mxu0
      %v2081 = vadd.f32 1e-06, %v2080
      %v2082 = vpop.f32.mrf.mxu0
      %2083 = vmatprep.mubr.f32.mxu0 0.0
      %2084 = vmatmul.mubr.f32.gmra.mxu0 %v1990
      %v2085 = vpop.f32.mrf.mxu0
      %v2086 = vadd.f32 1e-06, %v2085
      %v2087 = vpop.f32.mrf.mxu0
      %2088 = vmatprep.mubr.f32.mxu0 0.0
      %2089 = vmatmul.mubr.f32.gmra.mxu0 %v1993
      %v2090 = vpop.f32.mrf.mxu0
      %v2091 = vadd.f32 1e-06, %v2090
      %v2092 = vpop.f32.mrf.mxu0
      %2093 = vmatprep.mubr.f32.mxu0 0.0
      %2094 = vmatmul.mubr.f32.gmra.mxu0 %v1996
      %v2095 = vpop.f32.mrf.mxu0
      %v2096 = vadd.f32 1e-06, %v2095
      %v2097 = vpop.f32.mrf.mxu0
      %2098 = vmatprep.mubr.f32.mxu0 0.0
      %2099 = vmatmul.mubr.f32.gmra.mxu0 %v1999
      %v2100 = vpop.f32.mrf.mxu0
      %v2101 = vadd.f32 1e-06, %v2100
      %v2102 = vpop.f32.mrf.mxu0
      %2103 = vmatprep.mubr.f32.mxu0 0.0
      %2104 = vmatmul.mubr.f32.gmra.mxu0 %v2002
      %v2105 = vpop.f32.mrf.mxu0
      %v2106 = vadd.f32 1e-06, %v2105
      %v2107 = vpop.f32.mrf.mxu0
      %2108 = vdwg.mxu0
      %v2109 = vrcp.pop %v2071
      %v2110 = vrcp.pop %v2076
      %v2111 = vrcp.pop %v2081
      %v2112 = vrcp.pop %v2086
      %v2113 = vrcp.pop %v2091
      %v2114 = vrcp.pop %v2096
      %v2115 = vrcp.pop %v2101
      %v2116 = vrcp.pop %v2106
      %v2117 = vmul.f32 %v1934, %v2109
      %v2118 = vmul.f32 %v1939, %v2110
      %v2119 = vmul.f32 %v1944, %v2111
      %v2120 = vmul.f32 %v1949, %v2112
      %v2121 = vmul.f32 %v1954, %v2113
      %v2122 = vmul.f32 %v1959, %v2114
      %v2123 = vmul.f32 %v1964, %v2115
      %v2124 = vmul.f32 %v1969, %v2116
      %v2126 = vsel %vm689, %v1649, 0
      %v2129 = vsel %vm689, %v1650, 0
      %v2132 = vsel %vm689, %v1651, 0
      %v2135 = vsel %vm689, %v1652, 0
      %v2138 = vsel %vm689, %v1653, 0
      %v2141 = vsel %vm689, %v1654, 0
      %v2144 = vsel %vm689, %v1655, 0
      %v2147 = vsel %vm689, %v1656, 0
      %v2150 = vsel %vm689, %v2117, 0
      %v2153 = vsel %vm689, %v2118, 0
      %v2156 = vsel %vm689, %v2119, 0
      %v2159 = vsel %vm689, %v2120, 0
      %v2162 = vsel %vm689, %v2121, 0
      %v2165 = vsel %vm689, %v2122, 0
      %v2168 = vsel %vm689, %v2123, 0
      %v2171 = vsel %vm689, %v2124, 0
      %2173 = vmatprep.subr.mxu0 0.0
      %2174 = vmatpush1.msra.mxu0 0.0
      %2175 = vmatprep.subr.mxu0 0.0
      %2176 = vmatpush1.msra.mxu0 0.0
      %2177 = vmatprep.subr.mxu0 0.0
      %2178 = vmatpush1.msra.mxu0 0.0
      %2179 = vmatprep.subr.mxu0 0.0
      %2180 = vmatpush1.msra.mxu0 0.0
      %2181 = vmatprep.subr.mxu0 0.0
      %2182 = vmatpush1.msra.mxu0 0.0
      %2183 = vmatprep.subr.mxu0 0.0
      %2184 = vmatpush1.msra.mxu0 0.0
      %2185 = vmatprep.subr.mxu0 0.0
      %2186 = vmatpush1.msra.mxu0 0.0
      %2187 = vmatprep.subr.mxu0 0.0
      %2188 = vmatpush1.msra.mxu0 0.0
      %2189 = vmatprep.subr.mxu0 0.0
      %2190 = vmatpush1.msra.mxu0 0.0
      %2191 = vmatprep.subr.mxu0 0.0
      %2192 = vmatpush1.msra.mxu0 0.0
      %2193 = vmatprep.subr.mxu0 0.0
      %2194 = vmatpush1.msra.mxu0 0.0
      %2195 = vmatprep.subr.mxu0 0.0
      %2196 = vmatpush1.msra.mxu0 0.0
      %2197 = vmatprep.subr.mxu0 0.0
      %2198 = vmatpush1.msra.mxu0 %v668
      %2199 = vmatprep.subr.mxu0 0.0
      %2200 = vmatpush1.msra.mxu0 %v667
      %2201 = vmatprep.subr.mxu0 0.0
      %2202 = vmatpush1.msra.mxu0 %v666
      %2203 = vmatprep.subr.mxu0 0.0
      %2204 = vmatpush1.msra.mxu0 %v665
      %2205 = vmatprep.subr.mxu0 0.0
      %2206 = vmatpush2.msra.mxu0 0.0
      %2207 = vmatprep.subr.mxu0 0.0
      %2208 = vmatpush2.msra.mxu0 0.0
      %2209 = vmatprep.subr.mxu0 0.0
      %2210 = vmatpush2.msra.mxu0 0.0
      %2211 = vmatprep.subr.mxu0 0.0
      %2212 = vmatpush2.msra.mxu0 0.0
      %2213 = vmatprep.subr.mxu0 0.0
      %2214 = vmatpush2.msra.mxu0 0.0
      %2215 = vmatprep.subr.mxu0 0.0
      %2216 = vmatpush2.msra.mxu0 0.0
      %2217 = vmatprep.subr.mxu0 0.0
      %2218 = vmatpush2.msra.mxu0 0.0
      %2219 = vmatprep.subr.mxu0 0.0
      %2220 = vmatpush2.msra.mxu0 0.0
      %2221 = vmatprep.subr.mxu0 0.0
      %2222 = vmatpush2.msra.mxu0 0.0
      %2223 = vmatprep.subr.mxu0 0.0
      %2224 = vmatpush2.msra.mxu0 0.0
      %2225 = vmatprep.subr.mxu0 0.0
      %2226 = vmatpush2.msra.mxu0 0.0
      %2227 = vmatprep.subr.mxu0 0.0
      %2228 = vmatpush2.msra.mxu0 0.0
      %2229 = vmatprep.subr.mxu0 0.0
      %2230 = vmatpush2.msra.mxu0 0.0
      %2231 = vmatprep.subr.mxu0 0.0
      %2232 = vmatpush2.msra.mxu0 0.0
      %2233 = vmatprep.subr.mxu0 0.0
      %2234 = vmatpush2.msra.mxu0 0.0
      %2235 = vmatprep.subr.mxu0 0.0
      %2236 = vmatpush2.msra.mxu0 0.0
      %2237 = vmatprep.mubr.f32.mxu0 0.0
      %2238 = vmatmul.mubr.f32.gmra.mxu0 %v2126
      %v2239 = vpop.f32.mrf.mxu0
      %v2240 = vadd.f32 0.0, %v2239
      %v2241 = vpop.f32.mrf.mxu0
      %2242 = vmatprep.mubr.f32.mxu0 0.0
      %2243 = vmatmul.mubr.f32.gmra.mxu0 %v2129
      %v2244 = vpop.f32.mrf.mxu0
      %v2245 = vadd.f32 0.0, %v2244
      %v2246 = vpop.f32.mrf.mxu0
      %2247 = vmatprep.mubr.f32.mxu0 0.0
      %2248 = vmatmul.mubr.f32.gmra.mxu0 %v2132
      %v2249 = vpop.f32.mrf.mxu0
      %v2250 = vadd.f32 0.0, %v2249
      %v2251 = vpop.f32.mrf.mxu0
      %2252 = vmatprep.mubr.f32.mxu0 0.0
      %2253 = vmatmul.mubr.f32.gmra.mxu0 %v2135
      %v2254 = vpop.f32.mrf.mxu0
      %v2255 = vadd.f32 0.0, %v2254
      %v2256 = vpop.f32.mrf.mxu0
      %2257 = vmatprep.mubr.f32.mxu0 0.0
      %2258 = vmatmul.mubr.f32.gmra.mxu0 %v2138
      %v2259 = vpop.f32.mrf.mxu0
      %v2260 = vadd.f32 0.0, %v2259
      %v2261 = vpop.f32.mrf.mxu0
      %2262 = vmatprep.mubr.f32.mxu0 0.0
      %2263 = vmatmul.mubr.f32.gmra.mxu0 %v2141
      %v2264 = vpop.f32.mrf.mxu0
      %v2265 = vadd.f32 0.0, %v2264
      %v2266 = vpop.f32.mrf.mxu0
      %2267 = vmatprep.mubr.f32.mxu0 0.0
      %2268 = vmatmul.mubr.f32.gmra.mxu0 %v2144
      %v2269 = vpop.f32.mrf.mxu0
      %v2270 = vadd.f32 0.0, %v2269
      %v2271 = vpop.f32.mrf.mxu0
      %2272 = vmatprep.mubr.f32.mxu0 0.0
      %2273 = vmatmul.mubr.f32.gmra.mxu0 %v2147
      %v2274 = vpop.f32.mrf.mxu0
      %v2275 = vadd.f32 0.0, %v2274
      %v2276 = vpop.f32.mrf.mxu0
      %2277 = vmatprep.mubr.f32.mxu0 0.0
      %2278 = vmatmul.mubr.f32.gmra.mxu0 %v2150
      %v2279 = vpop.f32.mrf.mxu0
      %v2280 = vadd.f32 0.0, %v2279
      %v2281 = vpop.f32.mrf.mxu0
      %2282 = vmatprep.mubr.f32.mxu0 0.0
      %2283 = vmatmul.mubr.f32.gmra.mxu0 %v2153
      %v2284 = vpop.f32.mrf.mxu0
      %v2285 = vadd.f32 0.0, %v2284
      %v2286 = vpop.f32.mrf.mxu0
      %2287 = vmatprep.mubr.f32.mxu0 0.0
      %2288 = vmatmul.mubr.f32.gmra.mxu0 %v2156
      %v2289 = vpop.f32.mrf.mxu0
      %v2290 = vadd.f32 0.0, %v2289
      %v2291 = vpop.f32.mrf.mxu0
      %2292 = vmatprep.mubr.f32.mxu0 0.0
      %2293 = vmatmul.mubr.f32.gmra.mxu0 %v2159
      %v2294 = vpop.f32.mrf.mxu0
      %v2295 = vadd.f32 0.0, %v2294
      %v2296 = vpop.f32.mrf.mxu0
      %2297 = vmatprep.mubr.f32.mxu0 0.0
      %2298 = vmatmul.mubr.f32.gmra.mxu0 %v2162
      %v2299 = vpop.f32.mrf.mxu0
      %v2300 = vadd.f32 0.0, %v2299
      %v2301 = vpop.f32.mrf.mxu0
      %2302 = vmatprep.mubr.f32.mxu0 0.0
      %2303 = vmatmul.mubr.f32.gmra.mxu0 %v2165
      %v2304 = vpop.f32.mrf.mxu0
      %v2305 = vadd.f32 0.0, %v2304
      %v2306 = vpop.f32.mrf.mxu0
      %2307 = vmatprep.mubr.f32.mxu0 0.0
      %2308 = vmatmul.mubr.f32.gmra.mxu0 %v2168
      %v2309 = vpop.f32.mrf.mxu0
      %v2310 = vadd.f32 0.0, %v2309
      %v2311 = vpop.f32.mrf.mxu0
      %2312 = vmatprep.mubr.f32.mxu0 0.0
      %2313 = vmatmul.mubr.f32.gmra.mxu0 %v2171
      %v2314 = vpop.f32.mrf.mxu0
      %v2315 = vadd.f32 0.0, %v2314
      %v2316 = vpop.f32.mrf.mxu0
      %2317 = vdwg.mxu0
      %v2318 = vsel %vm689, %v2240, 0.0
      %2319 = vadd.xlane.f32.xlu0 %v2318
      %v2320 = vpop.xlane.xlu0 %2319
      %v2321 = vsel %vm689, %v2245, 0.0
      %2322 = vadd.xlane.f32.xlu0 %v2321
      %v2323 = vpop.xlane.xlu0 %2322
      %v2324 = vsel %vm689, %v2250, 0.0
      %2325 = vadd.xlane.f32.xlu0 %v2324
      %v2326 = vpop.xlane.xlu0 %2325
      %v2327 = vsel %vm689, %v2255, 0.0
      %2328 = vadd.xlane.f32.xlu0 %v2327
      %v2329 = vpop.xlane.xlu0 %2328
      %v2330 = vsel %vm689, %v2260, 0.0
      %2331 = vadd.xlane.f32.xlu0 %v2330
      %v2332 = vpop.xlane.xlu0 %2331
      %v2333 = vsel %vm689, %v2265, 0.0
      %2334 = vadd.xlane.f32.xlu0 %v2333
      %v2335 = vpop.xlane.xlu0 %2334
      %v2336 = vsel %vm689, %v2270, 0.0
      %2337 = vadd.xlane.f32.xlu0 %v2336
      %v2338 = vpop.xlane.xlu0 %2337
      %v2339 = vsel %vm689, %v2275, 0.0
      %2340 = vadd.xlane.f32.xlu0 %v2339
      %v2341 = vpop.xlane.xlu0 %2340
      %v2342 = vsel %vm689, %v2280, 0.0
      %2343 = vadd.xlane.f32.xlu0 %v2342
      %v2344 = vpop.xlane.xlu0 %2343
      %v2345 = vsel %vm689, %v2285, 0.0
      %2346 = vadd.xlane.f32.xlu0 %v2345
      %v2347 = vpop.xlane.xlu0 %2346
      %v2348 = vsel %vm689, %v2290, 0.0
      %2349 = vadd.xlane.f32.xlu0 %v2348
      %v2350 = vpop.xlane.xlu0 %2349
      %v2351 = vsel %vm689, %v2295, 0.0
      %2352 = vadd.xlane.f32.xlu0 %v2351
      %v2353 = vpop.xlane.xlu0 %2352
      %v2354 = vsel %vm689, %v2300, 0.0
      %2355 = vadd.xlane.f32.xlu0 %v2354
      %v2356 = vpop.xlane.xlu0 %2355
      %v2357 = vsel %vm689, %v2305, 0.0
      %2358 = vadd.xlane.f32.xlu0 %v2357
      %v2359 = vpop.xlane.xlu0 %2358
      %v2360 = vsel %vm689, %v2310, 0.0
      %2361 = vadd.xlane.f32.xlu0 %v2360
      %v2362 = vpop.xlane.xlu0 %2361
      %v2363 = vsel %vm689, %v2315, 0.0
      %2364 = vadd.xlane.f32.xlu0 %v2363
      %v2365 = vpop.xlane.xlu0 %2364
      %v2366 = vrcp.pop 32.0
      %v2367 = vmul.f32 %v2320, %v2366
      %v2368 = vmul.f32 %v2323, %v2366
      %v2369 = vmul.f32 %v2326, %v2366
      %v2370 = vmul.f32 %v2329, %v2366
      %v2371 = vmul.f32 %v2332, %v2366
      %v2372 = vmul.f32 %v2335, %v2366
      %v2373 = vmul.f32 %v2338, %v2366
      %v2374 = vmul.f32 %v2341, %v2366
      %v2375 = vmul.f32 %v2344, %v2366
      %v2376 = vmul.f32 %v2347, %v2366
      %v2377 = vmul.f32 %v2350, %v2366
      %v2378 = vmul.f32 %v2353, %v2366
      %v2379 = vmul.f32 %v2356, %v2366
      %v2380 = vmul.f32 %v2359, %v2366
      %v2381 = vmul.f32 %v2362, %v2366
      %v2382 = vmul.f32 %v2365, %v2366
      %v2383 = vsub.f32 %v2240, %v2367
      %v2384 = vsub.f32 %v2245, %v2368
      %v2385 = vsub.f32 %v2250, %v2369
      %v2386 = vsub.f32 %v2255, %v2370
      %v2387 = vsub.f32 %v2260, %v2371
      %v2388 = vsub.f32 %v2265, %v2372
      %v2389 = vsub.f32 %v2270, %v2373
      %v2390 = vsub.f32 %v2275, %v2374
      %v2391 = vsub.f32 %v2280, %v2375
      %v2392 = vsub.f32 %v2285, %v2376
      %v2393 = vsub.f32 %v2290, %v2377
      %v2394 = vsub.f32 %v2295, %v2378
      %v2395 = vsub.f32 %v2300, %v2379
      %v2396 = vsub.f32 %v2305, %v2380
      %v2397 = vsub.f32 %v2310, %v2381
      %v2398 = vsub.f32 %v2315, %v2382
      %v2399 = vmul.f32 %v2383, %v2383
      %v2400 = vmul.f32 %v2384, %v2384
      %v2401 = vmul.f32 %v2385, %v2385
      %v2402 = vmul.f32 %v2386, %v2386
      %v2403 = vmul.f32 %v2387, %v2387
      %v2404 = vmul.f32 %v2388, %v2388
      %v2405 = vmul.f32 %v2389, %v2389
      %v2406 = vmul.f32 %v2390, %v2390
      %v2407 = vmul.f32 %v2391, %v2391
      %v2408 = vmul.f32 %v2392, %v2392
      %v2409 = vmul.f32 %v2393, %v2393
      %v2410 = vmul.f32 %v2394, %v2394
      %v2411 = vmul.f32 %v2395, %v2395
      %v2412 = vmul.f32 %v2396, %v2396
      %v2413 = vmul.f32 %v2397, %v2397
      %v2414 = vmul.f32 %v2398, %v2398
      %v2415 = vsel %vm689, %v2399, 0.0
      %2416 = vadd.xlane.f32.xlu0 %v2415
      %v2417 = vpop.xlane.xlu0 %2416
      %v2418 = vsel %vm689, %v2400, 0.0
      %2419 = vadd.xlane.f32.xlu0 %v2418
      %v2420 = vpop.xlane.xlu0 %2419
      %v2421 = vsel %vm689, %v2401, 0.0
      %2422 = vadd.xlane.f32.xlu0 %v2421
      %v2423 = vpop.xlane.xlu0 %2422
      %v2424 = vsel %vm689, %v2402, 0.0
      %2425 = vadd.xlane.f32.xlu0 %v2424
      %v2426 = vpop.xlane.xlu0 %2425
      %v2427 = vsel %vm689, %v2403, 0.0
      %2428 = vadd.xlane.f32.xlu0 %v2427
      %v2429 = vpop.xlane.xlu0 %2428
      %v2430 = vsel %vm689, %v2404, 0.0
      %2431 = vadd.xlane.f32.xlu0 %v2430
      %v2432 = vpop.xlane.xlu0 %2431
      %v2433 = vsel %vm689, %v2405, 0.0
      %2434 = vadd.xlane.f32.xlu0 %v2433
      %v2435 = vpop.xlane.xlu0 %2434
      %v2436 = vsel %vm689, %v2406, 0.0
      %2437 = vadd.xlane.f32.xlu0 %v2436
      %v2438 = vpop.xlane.xlu0 %2437
      %v2439 = vsel %vm689, %v2407, 0.0
      %2440 = vadd.xlane.f32.xlu0 %v2439
      %v2441 = vpop.xlane.xlu0 %2440
      %v2442 = vsel %vm689, %v2408, 0.0
      %2443 = vadd.xlane.f32.xlu0 %v2442
      %v2444 = vpop.xlane.xlu0 %2443
      %v2445 = vsel %vm689, %v2409, 0.0
      %2446 = vadd.xlane.f32.xlu0 %v2445
      %v2447 = vpop.xlane.xlu0 %2446
      %v2448 = vsel %vm689, %v2410, 0.0
      %2449 = vadd.xlane.f32.xlu0 %v2448
      %v2450 = vpop.xlane.xlu0 %2449
      %v2451 = vsel %vm689, %v2411, 0.0
      %2452 = vadd.xlane.f32.xlu0 %v2451
      %v2453 = vpop.xlane.xlu0 %2452
      %v2454 = vsel %vm689, %v2412, 0.0
      %2455 = vadd.xlane.f32.xlu0 %v2454
      %v2456 = vpop.xlane.xlu0 %2455
      %v2457 = vsel %vm689, %v2413, 0.0
      %2458 = vadd.xlane.f32.xlu0 %v2457
      %v2459 = vpop.xlane.xlu0 %2458
      %v2460 = vsel %vm689, %v2414, 0.0
      %2461 = vadd.xlane.f32.xlu0 %v2460
      %v2462 = vpop.xlane.xlu0 %2461
      %v2463 = vmul.f32 %v2417, %v2366
      %v2464 = vmul.f32 %v2420, %v2366
      %v2465 = vmul.f32 %v2423, %v2366
      %v2466 = vmul.f32 %v2426, %v2366
      %v2467 = vmul.f32 %v2429, %v2366
      %v2468 = vmul.f32 %v2432, %v2366
      %v2469 = vmul.f32 %v2435, %v2366
      %v2470 = vmul.f32 %v2438, %v2366
      %v2471 = vmul.f32 %v2441, %v2366
      %v2472 = vmul.f32 %v2444, %v2366
      %v2473 = vmul.f32 %v2447, %v2366
      %v2474 = vmul.f32 %v2450, %v2366
      %v2475 = vmul.f32 %v2453, %v2366
      %v2476 = vmul.f32 %v2456, %v2366
      %v2477 = vmul.f32 %v2459, %v2366
      %v2478 = vmul.f32 %v2462, %v2366
      %v2479 = vadd.f32 %v2463, 1e-05
      %v2480 = vadd.f32 %v2464, 1e-05
      %v2481 = vadd.f32 %v2465, 1e-05
      %v2482 = vadd.f32 %v2466, 1e-05
      %v2483 = vadd.f32 %v2467, 1e-05
      %v2484 = vadd.f32 %v2468, 1e-05
      %v2485 = vadd.f32 %v2469, 1e-05
      %v2486 = vadd.f32 %v2470, 1e-05
      %v2487 = vadd.f32 %v2471, 1e-05
      %v2488 = vadd.f32 %v2472, 1e-05
      %v2489 = vadd.f32 %v2473, 1e-05
      %v2490 = vadd.f32 %v2474, 1e-05
      %v2491 = vadd.f32 %v2475, 1e-05
      %v2492 = vadd.f32 %v2476, 1e-05
      %v2493 = vadd.f32 %v2477, 1e-05
      %v2494 = vadd.f32 %v2478, 1e-05
      %v2495 = vrsqrt.pop %v2479
      %v2496 = vrsqrt.pop %v2480
      %v2497 = vrsqrt.pop %v2481
      %v2498 = vrsqrt.pop %v2482
      %v2499 = vrsqrt.pop %v2483
      %v2500 = vrsqrt.pop %v2484
      %v2501 = vrsqrt.pop %v2485
      %v2502 = vrsqrt.pop %v2486
      %v2503 = vrsqrt.pop %v2487
      %v2504 = vrsqrt.pop %v2488
      %v2505 = vrsqrt.pop %v2489
      %v2506 = vrsqrt.pop %v2490
      %v2507 = vrsqrt.pop %v2491
      %v2508 = vrsqrt.pop %v2492
      %v2509 = vrsqrt.pop %v2493
      %v2510 = vrsqrt.pop %v2494
      %v2511 = vmul.f32 %v2383, %v2495
      %v2512 = vmul.f32 %v2384, %v2496
      %v2513 = vmul.f32 %v2385, %v2497
      %v2514 = vmul.f32 %v2386, %v2498
      %v2515 = vmul.f32 %v2387, %v2499
      %v2516 = vmul.f32 %v2388, %v2500
      %v2517 = vmul.f32 %v2389, %v2501
      %v2518 = vmul.f32 %v2390, %v2502
      %v2519 = vmul.f32 %v2391, %v2503
      %v2520 = vmul.f32 %v2392, %v2504
      %v2521 = vmul.f32 %v2393, %v2505
      %v2522 = vmul.f32 %v2394, %v2506
      %v2523 = vmul.f32 %v2395, %v2507
      %v2524 = vmul.f32 %v2396, %v2508
      %v2525 = vmul.f32 %v2397, %v2509
      %v2526 = vmul.f32 %v2398, %v2510
      %v2528 = vlaneseq
      %v2529 = vshrl.u32 %v2528, 7
      %v2530 = vsub.s32 0, %v2529
      %v2531 = vrot.slane %v669, %v2530
      %v2533 = vmul.f32 %v2511, %v2531
      %v2534 = vmul.f32 %v2512, %v2531
      %v2535 = vmul.f32 %v2513, %v2531
      %v2536 = vmul.f32 %v2514, %v2531
      %v2537 = vmul.f32 %v2515, %v2531
      %v2538 = vmul.f32 %v2516, %v2531
      %v2539 = vmul.f32 %v2517, %v2531
      %v2540 = vmul.f32 %v2518, %v2531
      %v2541 = vmul.f32 %v2519, %v2531
      %v2542 = vmul.f32 %v2520, %v2531
      %v2543 = vmul.f32 %v2521, %v2531
      %v2544 = vmul.f32 %v2522, %v2531
      %v2545 = vmul.f32 %v2523, %v2531
      %v2546 = vmul.f32 %v2524, %v2531
      %v2547 = vmul.f32 %v2525, %v2531
      %v2548 = vmul.f32 %v2526, %v2531
      %v2550 = vlaneseq
      %v2551 = vshrl.u32 %v2550, 7
      %v2552 = vsub.s32 0, %v2551
      %v2553 = vrot.slane %v670, %v2552
      %v2555 = vadd.f32 %v2533, %v2553
      %v2556 = vadd.f32 %v2534, %v2553
      %v2557 = vadd.f32 %v2535, %v2553
      %v2558 = vadd.f32 %v2536, %v2553
      %v2559 = vadd.f32 %v2537, %v2553
      %v2560 = vadd.f32 %v2538, %v2553
      %v2561 = vadd.f32 %v2539, %v2553
      %v2562 = vadd.f32 %v2540, %v2553
      %v2563 = vadd.f32 %v2541, %v2553
      %v2564 = vadd.f32 %v2542, %v2553
      %v2565 = vadd.f32 %v2543, %v2553
      %v2566 = vadd.f32 %v2544, %v2553
      %v2567 = vadd.f32 %v2545, %v2553
      %v2568 = vadd.f32 %v2546, %v2553
      %v2569 = vadd.f32 %v2547, %v2553
      %v2570 = vadd.f32 %v2548, %v2553
      %2587 = vrot.lane.b32.xlu0 %v2555, 32
      %v2588 = vpop.permute.xlu0 %2587
      %2589 = vrot.lane.b32.xlu0 %v2556, 32
      %v2590 = vpop.permute.xlu0 %2589
      %2591 = vrot.lane.b32.xlu0 %v2557, 32
      %v2592 = vpop.permute.xlu0 %2591
      %2593 = vrot.lane.b32.xlu0 %v2558, 32
      %v2594 = vpop.permute.xlu0 %2593
      %2595 = vrot.lane.b32.xlu0 %v2559, 32
      %v2596 = vpop.permute.xlu0 %2595
      %2597 = vrot.lane.b32.xlu0 %v2560, 32
      %v2598 = vpop.permute.xlu0 %2597
      %2599 = vrot.lane.b32.xlu0 %v2561, 32
      %v2600 = vpop.permute.xlu0 %2599
      %2601 = vrot.lane.b32.xlu0 %v2562, 32
      %v2602 = vpop.permute.xlu0 %2601
      %2603 = vrot.lane.b32.xlu0 %v2563, 32
      %v2604 = vpop.permute.xlu0 %2603
      %2605 = vrot.lane.b32.xlu0 %v2564, 32
      %v2606 = vpop.permute.xlu0 %2605
      %2607 = vrot.lane.b32.xlu0 %v2565, 32
      %v2608 = vpop.permute.xlu0 %2607
      %2609 = vrot.lane.b32.xlu0 %v2566, 32
      %v2610 = vpop.permute.xlu0 %2609
      %2611 = vrot.lane.b32.xlu0 %v2567, 32
      %v2612 = vpop.permute.xlu0 %2611
      %2613 = vrot.lane.b32.xlu0 %v2568, 32
      %v2614 = vpop.permute.xlu0 %2613
      %2615 = vrot.lane.b32.xlu0 %v2569, 32
      %v2616 = vpop.permute.xlu0 %2615
      %2617 = vrot.lane.b32.xlu0 %v2570, 32
      %v2618 = vpop.permute.xlu0 %2617
      %v2635 = vsel %vm689, %v641, %v2588
      %v2636 = vsel %vm689, %v642, %v2590
      %v2637 = vsel %vm689, %v643, %v2592
      %v2638 = vsel %vm689, %v644, %v2594
      %v2639 = vsel %vm689, %v645, %v2596
      %v2640 = vsel %vm689, %v646, %v2598
      %v2641 = vsel %vm689, %v647, %v2600
      %v2642 = vsel %vm689, %v648, %v2602
      %v2643 = vsel %vm689, %v649, %v2604
      %v2644 = vsel %vm689, %v650, %v2606
      %v2645 = vsel %vm689, %v651, %v2608
      %v2646 = vsel %vm689, %v652, %v2610
      %v2647 = vsel %vm689, %v653, %v2612
      %v2648 = vsel %vm689, %v654, %v2614
      %v2649 = vsel %vm689, %v655, %v2616
      %v2650 = vsel %vm689, %v656, %v2618
      %v2652 = vsel %vm1252, %v2635, 0
      %v2655 = vsel %vm1252, %v2636, 0
      %v2658 = vsel %vm1252, %v2637, 0
      %v2661 = vsel %vm1252, %v2638, 0
      %v2664 = vsel %vm1252, %v2639, 0
      %v2667 = vsel %vm1252, %v2640, 0
      %v2670 = vsel %vm1252, %v2641, 0
      %v2673 = vsel %vm1252, %v2642, 0
      %v2676 = vsel %vm1252, %v2643, 0
      %v2679 = vsel %vm1252, %v2644, 0
      %v2682 = vsel %vm1252, %v2645, 0
      %v2685 = vsel %vm1252, %v2646, 0
      %v2688 = vsel %vm1252, %v2647, 0
      %v2691 = vsel %vm1252, %v2648, 0
      %v2694 = vsel %vm1252, %v2649, 0
      %v2697 = vsel %vm1252, %v2650, 0
      %2699 = vmatprep.subr.mxu0 0.0
      %2700 = vmatpush1.msra.mxu0 0.0
      %2701 = vmatprep.subr.mxu0 0.0
      %2702 = vmatpush1.msra.mxu0 0.0
      %2703 = vmatprep.subr.mxu0 0.0
      %2704 = vmatpush1.msra.mxu0 0.0
      %2705 = vmatprep.subr.mxu0 0.0
      %2706 = vmatpush1.msra.mxu0 0.0
      %2707 = vmatprep.subr.mxu0 0.0
      %2708 = vmatpush1.msra.mxu0 0.0
      %2709 = vmatprep.subr.mxu0 0.0
      %2710 = vmatpush1.msra.mxu0 0.0
      %2711 = vmatprep.subr.mxu0 0.0
      %2712 = vmatpush1.msra.mxu0 0.0
      %2713 = vmatprep.subr.mxu0 0.0
      %2714 = vmatpush1.msra.mxu0 0.0
      %2715 = vmatprep.subr.mxu0 0.0
      %2716 = vmatpush1.msra.mxu0 %v678
      %2717 = vmatprep.subr.mxu0 0.0
      %2718 = vmatpush1.msra.mxu0 %v677
      %2719 = vmatprep.subr.mxu0 0.0
      %2720 = vmatpush1.msra.mxu0 %v676
      %2721 = vmatprep.subr.mxu0 0.0
      %2722 = vmatpush1.msra.mxu0 %v675
      %2723 = vmatprep.subr.mxu0 0.0
      %2724 = vmatpush1.msra.mxu0 %v674
      %2725 = vmatprep.subr.mxu0 0.0
      %2726 = vmatpush1.msra.mxu0 %v673
      %2727 = vmatprep.subr.mxu0 0.0
      %2728 = vmatpush1.msra.mxu0 %v672
      %2729 = vmatprep.subr.mxu0 0.0
      %2730 = vmatpush1.msra.mxu0 %v671
      %2731 = vmatprep.subr.mxu0 0.0
      %2732 = vmatpush2.msra.mxu0 0.0
      %2733 = vmatprep.subr.mxu0 0.0
      %2734 = vmatpush2.msra.mxu0 0.0
      %2735 = vmatprep.subr.mxu0 0.0
      %2736 = vmatpush2.msra.mxu0 0.0
      %2737 = vmatprep.subr.mxu0 0.0
      %2738 = vmatpush2.msra.mxu0 0.0
      %2739 = vmatprep.subr.mxu0 0.0
      %2740 = vmatpush2.msra.mxu0 0.0
      %2741 = vmatprep.subr.mxu0 0.0
      %2742 = vmatpush2.msra.mxu0 0.0
      %2743 = vmatprep.subr.mxu0 0.0
      %2744 = vmatpush2.msra.mxu0 0.0
      %2745 = vmatprep.subr.mxu0 0.0
      %2746 = vmatpush2.msra.mxu0 0.0
      %2747 = vmatprep.subr.mxu0 0.0
      %2748 = vmatpush2.msra.mxu0 0.0
      %2749 = vmatprep.subr.mxu0 0.0
      %2750 = vmatpush2.msra.mxu0 0.0
      %2751 = vmatprep.subr.mxu0 0.0
      %2752 = vmatpush2.msra.mxu0 0.0
      %2753 = vmatprep.subr.mxu0 0.0
      %2754 = vmatpush2.msra.mxu0 0.0
      %2755 = vmatprep.subr.mxu0 0.0
      %2756 = vmatpush2.msra.mxu0 0.0
      %2757 = vmatprep.subr.mxu0 0.0
      %2758 = vmatpush2.msra.mxu0 0.0
      %2759 = vmatprep.subr.mxu0 0.0
      %2760 = vmatpush2.msra.mxu0 0.0
      %2761 = vmatprep.subr.mxu0 0.0
      %2762 = vmatpush2.msra.mxu0 0.0
      %2763 = vmatprep.mubr.f32.mxu0 0.0
      %2764 = vmatmul.mubr.f32.gmra.mxu0 %v2652
      %v2765 = vpop.f32.mrf.mxu0
      %v2766 = vadd.f32 0.0, %v2765
      %v2767 = vpop.f32.mrf.mxu0
      %2768 = vmatprep.mubr.f32.mxu0 0.0
      %2769 = vmatmul.mubr.f32.gmra.mxu0 %v2655
      %v2770 = vpop.f32.mrf.mxu0
      %v2771 = vadd.f32 0.0, %v2770
      %v2772 = vpop.f32.mrf.mxu0
      %2773 = vmatprep.mubr.f32.mxu0 0.0
      %2774 = vmatmul.mubr.f32.gmra.mxu0 %v2658
      %v2775 = vpop.f32.mrf.mxu0
      %v2776 = vadd.f32 0.0, %v2775
      %v2777 = vpop.f32.mrf.mxu0
      %2778 = vmatprep.mubr.f32.mxu0 0.0
      %2779 = vmatmul.mubr.f32.gmra.mxu0 %v2661
      %v2780 = vpop.f32.mrf.mxu0
      %v2781 = vadd.f32 0.0, %v2780
      %v2782 = vpop.f32.mrf.mxu0
      %2783 = vmatprep.mubr.f32.mxu0 0.0
      %2784 = vmatmul.mubr.f32.gmra.mxu0 %v2664
      %v2785 = vpop.f32.mrf.mxu0
      %v2786 = vadd.f32 0.0, %v2785
      %v2787 = vpop.f32.mrf.mxu0
      %2788 = vmatprep.mubr.f32.mxu0 0.0
      %2789 = vmatmul.mubr.f32.gmra.mxu0 %v2667
      %v2790 = vpop.f32.mrf.mxu0
      %v2791 = vadd.f32 0.0, %v2790
      %v2792 = vpop.f32.mrf.mxu0
      %2793 = vmatprep.mubr.f32.mxu0 0.0
      %2794 = vmatmul.mubr.f32.gmra.mxu0 %v2670
      %v2795 = vpop.f32.mrf.mxu0
      %v2796 = vadd.f32 0.0, %v2795
      %v2797 = vpop.f32.mrf.mxu0
      %2798 = vmatprep.mubr.f32.mxu0 0.0
      %2799 = vmatmul.mubr.f32.gmra.mxu0 %v2673
      %v2800 = vpop.f32.mrf.mxu0
      %v2801 = vadd.f32 0.0, %v2800
      %v2802 = vpop.f32.mrf.mxu0
      %2803 = vmatprep.mubr.f32.mxu0 0.0
      %2804 = vmatmul.mubr.f32.gmra.mxu0 %v2676
      %v2805 = vpop.f32.mrf.mxu0
      %v2806 = vadd.f32 0.0, %v2805
      %v2807 = vpop.f32.mrf.mxu0
      %2808 = vmatprep.mubr.f32.mxu0 0.0
      %2809 = vmatmul.mubr.f32.gmra.mxu0 %v2679
      %v2810 = vpop.f32.mrf.mxu0
      %v2811 = vadd.f32 0.0, %v2810
      %v2812 = vpop.f32.mrf.mxu0
      %2813 = vmatprep.mubr.f32.mxu0 0.0
      %2814 = vmatmul.mubr.f32.gmra.mxu0 %v2682
      %v2815 = vpop.f32.mrf.mxu0
      %v2816 = vadd.f32 0.0, %v2815
      %v2817 = vpop.f32.mrf.mxu0
      %2818 = vmatprep.mubr.f32.mxu0 0.0
      %2819 = vmatmul.mubr.f32.gmra.mxu0 %v2685
      %v2820 = vpop.f32.mrf.mxu0
      %v2821 = vadd.f32 0.0, %v2820
      %v2822 = vpop.f32.mrf.mxu0
      %2823 = vmatprep.mubr.f32.mxu0 0.0
      %2824 = vmatmul.mubr.f32.gmra.mxu0 %v2688
      %v2825 = vpop.f32.mrf.mxu0
      %v2826 = vadd.f32 0.0, %v2825
      %v2827 = vpop.f32.mrf.mxu0
      %2828 = vmatprep.mubr.f32.mxu0 0.0
      %2829 = vmatmul.mubr.f32.gmra.mxu0 %v2691
      %v2830 = vpop.f32.mrf.mxu0
      %v2831 = vadd.f32 0.0, %v2830
      %v2832 = vpop.f32.mrf.mxu0
      %2833 = vmatprep.mubr.f32.mxu0 0.0
      %2834 = vmatmul.mubr.f32.gmra.mxu0 %v2694
      %v2835 = vpop.f32.mrf.mxu0
      %v2836 = vadd.f32 0.0, %v2835
      %v2837 = vpop.f32.mrf.mxu0
      %2838 = vmatprep.mubr.f32.mxu0 0.0
      %2839 = vmatmul.mubr.f32.gmra.mxu0 %v2697
      %v2840 = vpop.f32.mrf.mxu0
      %v2841 = vadd.f32 0.0, %v2840
      %v2842 = vpop.f32.mrf.mxu0
      %2843 = vdwg.mxu0
      %v2844 = vmax.f32 %v2766, 0.0
      %v2845 = vmax.f32 %v2771, 0.0
      %v2846 = vmax.f32 %v2776, 0.0
      %v2847 = vmax.f32 %v2781, 0.0
      %v2848 = vmax.f32 %v2786, 0.0
      %v2849 = vmax.f32 %v2791, 0.0
      %v2850 = vmax.f32 %v2796, 0.0
      %v2851 = vmax.f32 %v2801, 0.0
      %v2852 = vmax.f32 %v2806, 0.0
      %v2853 = vmax.f32 %v2811, 0.0
      %v2854 = vmax.f32 %v2816, 0.0
      %v2855 = vmax.f32 %v2821, 0.0
      %v2856 = vmax.f32 %v2826, 0.0
      %v2857 = vmax.f32 %v2831, 0.0
      %v2858 = vmax.f32 %v2836, 0.0
      %v2859 = vmax.f32 %v2841, 0.0
      %v2861 = vsel %vm1252, %v2844, 0
      %v2864 = vsel %vm1252, %v2845, 0
      %v2867 = vsel %vm1252, %v2846, 0
      %v2870 = vsel %vm1252, %v2847, 0
      %v2873 = vsel %vm1252, %v2848, 0
      %v2876 = vsel %vm1252, %v2849, 0
      %v2879 = vsel %vm1252, %v2850, 0
      %v2882 = vsel %vm1252, %v2851, 0
      %v2885 = vsel %vm1252, %v2852, 0
      %v2888 = vsel %vm1252, %v2853, 0
      %v2891 = vsel %vm1252, %v2854, 0
      %v2894 = vsel %vm1252, %v2855, 0
      %v2897 = vsel %vm1252, %v2856, 0
      %v2900 = vsel %vm1252, %v2857, 0
      %v2903 = vsel %vm1252, %v2858, 0
      %v2906 = vsel %vm1252, %v2859, 0
      %2908 = vmatprep.subr.mxu0 0.0
      %2909 = vmatpush1.msra.mxu0 0.0
      %2910 = vmatprep.subr.mxu0 0.0
      %2911 = vmatpush1.msra.mxu0 0.0
      %2912 = vmatprep.subr.mxu0 0.0
      %2913 = vmatpush1.msra.mxu0 0.0
      %2914 = vmatprep.subr.mxu0 0.0
      %2915 = vmatpush1.msra.mxu0 0.0
      %2916 = vmatprep.subr.mxu0 0.0
      %2917 = vmatpush1.msra.mxu0 0.0
      %2918 = vmatprep.subr.mxu0 0.0
      %2919 = vmatpush1.msra.mxu0 0.0
      %2920 = vmatprep.subr.mxu0 0.0
      %2921 = vmatpush1.msra.mxu0 0.0
      %2922 = vmatprep.subr.mxu0 0.0
      %2923 = vmatpush1.msra.mxu0 0.0
      %2924 = vmatprep.subr.mxu0 0.0
      %2925 = vmatpush1.msra.mxu0 %v686
      %2926 = vmatprep.subr.mxu0 0.0
      %2927 = vmatpush1.msra.mxu0 %v685
      %2928 = vmatprep.subr.mxu0 0.0
      %2929 = vmatpush1.msra.mxu0 %v684
      %2930 = vmatprep.subr.mxu0 0.0
      %2931 = vmatpush1.msra.mxu0 %v683
      %2932 = vmatprep.subr.mxu0 0.0
      %2933 = vmatpush1.msra.mxu0 %v682
      %2934 = vmatprep.subr.mxu0 0.0
      %2935 = vmatpush1.msra.mxu0 %v681
      %2936 = vmatprep.subr.mxu0 0.0
      %2937 = vmatpush1.msra.mxu0 %v680
      %2938 = vmatprep.subr.mxu0 0.0
      %2939 = vmatpush1.msra.mxu0 %v679
      %2940 = vmatprep.subr.mxu0 0.0
      %2941 = vmatpush2.msra.mxu0 0.0
      %2942 = vmatprep.subr.mxu0 0.0
      %2943 = vmatpush2.msra.mxu0 0.0
      %2944 = vmatprep.subr.mxu0 0.0
      %2945 = vmatpush2.msra.mxu0 0.0
      %2946 = vmatprep.subr.mxu0 0.0
      %2947 = vmatpush2.msra.mxu0 0.0
      %2948 = vmatprep.subr.mxu0 0.0
      %2949 = vmatpush2.msra.mxu0 0.0
      %2950 = vmatprep.subr.mxu0 0.0
      %2951 = vmatpush2.msra.mxu0 0.0
      %2952 = vmatprep.subr.mxu0 0.0
      %2953 = vmatpush2.msra.mxu0 0.0
      %2954 = vmatprep.subr.mxu0 0.0
      %2955 = vmatpush2.msra.mxu0 0.0
      %2956 = vmatprep.subr.mxu0 0.0
      %2957 = vmatpush2.msra.mxu0 0.0
      %2958 = vmatprep.subr.mxu0 0.0
      %2959 = vmatpush2.msra.mxu0 0.0
      %2960 = vmatprep.subr.mxu0 0.0
      %2961 = vmatpush2.msra.mxu0 0.0
      %2962 = vmatprep.subr.mxu0 0.0
      %2963 = vmatpush2.msra.mxu0 0.0
      %2964 = vmatprep.subr.mxu0 0.0
      %2965 = vmatpush2.msra.mxu0 0.0
      %2966 = vmatprep.subr.mxu0 0.0
      %2967 = vmatpush2.msra.mxu0 0.0
      %2968 = vmatprep.subr.mxu0 0.0
      %2969 = vmatpush2.msra.mxu0 0.0
      %2970 = vmatprep.subr.mxu0 0.0
      %2971 = vmatpush2.msra.mxu0 0.0
      %2972 = vmatprep.mubr.f32.mxu0 0.0
      %2973 = vmatmul.mubr.f32.gmra.mxu0 %v2861
      %v2974 = vpop.f32.mrf.mxu0
      %v2975 = vadd.f32 0.0, %v2974
      %v2976 = vpop.f32.mrf.mxu0
      %2977 = vmatprep.mubr.f32.mxu0 0.0
      %2978 = vmatmul.mubr.f32.gmra.mxu0 %v2864
      %v2979 = vpop.f32.mrf.mxu0
      %v2980 = vadd.f32 0.0, %v2979
      %v2981 = vpop.f32.mrf.mxu0
      %2982 = vmatprep.mubr.f32.mxu0 0.0
      %2983 = vmatmul.mubr.f32.gmra.mxu0 %v2867
      %v2984 = vpop.f32.mrf.mxu0
      %v2985 = vadd.f32 0.0, %v2984
      %v2986 = vpop.f32.mrf.mxu0
      %2987 = vmatprep.mubr.f32.mxu0 0.0
      %2988 = vmatmul.mubr.f32.gmra.mxu0 %v2870
      %v2989 = vpop.f32.mrf.mxu0
      %v2990 = vadd.f32 0.0, %v2989
      %v2991 = vpop.f32.mrf.mxu0
      %2992 = vmatprep.mubr.f32.mxu0 0.0
      %2993 = vmatmul.mubr.f32.gmra.mxu0 %v2873
      %v2994 = vpop.f32.mrf.mxu0
      %v2995 = vadd.f32 0.0, %v2994
      %v2996 = vpop.f32.mrf.mxu0
      %2997 = vmatprep.mubr.f32.mxu0 0.0
      %2998 = vmatmul.mubr.f32.gmra.mxu0 %v2876
      %v2999 = vpop.f32.mrf.mxu0
      %v3000 = vadd.f32 0.0, %v2999
      %v3001 = vpop.f32.mrf.mxu0
      %3002 = vmatprep.mubr.f32.mxu0 0.0
      %3003 = vmatmul.mubr.f32.gmra.mxu0 %v2879
      %v3004 = vpop.f32.mrf.mxu0
      %v3005 = vadd.f32 0.0, %v3004
      %v3006 = vpop.f32.mrf.mxu0
      %3007 = vmatprep.mubr.f32.mxu0 0.0
      %3008 = vmatmul.mubr.f32.gmra.mxu0 %v2882
      %v3009 = vpop.f32.mrf.mxu0
      %v3010 = vadd.f32 0.0, %v3009
      %v3011 = vpop.f32.mrf.mxu0
      %3012 = vmatprep.mubr.f32.mxu0 0.0
      %3013 = vmatmul.mubr.f32.gmra.mxu0 %v2885
      %v3014 = vpop.f32.mrf.mxu0
      %v3015 = vadd.f32 0.0, %v3014
      %v3016 = vpop.f32.mrf.mxu0
      %3017 = vmatprep.mubr.f32.mxu0 0.0
      %3018 = vmatmul.mubr.f32.gmra.mxu0 %v2888
      %v3019 = vpop.f32.mrf.mxu0
      %v3020 = vadd.f32 0.0, %v3019
      %v3021 = vpop.f32.mrf.mxu0
      %3022 = vmatprep.mubr.f32.mxu0 0.0
      %3023 = vmatmul.mubr.f32.gmra.mxu0 %v2891
      %v3024 = vpop.f32.mrf.mxu0
      %v3025 = vadd.f32 0.0, %v3024
      %v3026 = vpop.f32.mrf.mxu0
      %3027 = vmatprep.mubr.f32.mxu0 0.0
      %3028 = vmatmul.mubr.f32.gmra.mxu0 %v2894
      %v3029 = vpop.f32.mrf.mxu0
      %v3030 = vadd.f32 0.0, %v3029
      %v3031 = vpop.f32.mrf.mxu0
      %3032 = vmatprep.mubr.f32.mxu0 0.0
      %3033 = vmatmul.mubr.f32.gmra.mxu0 %v2897
      %v3034 = vpop.f32.mrf.mxu0
      %v3035 = vadd.f32 0.0, %v3034
      %v3036 = vpop.f32.mrf.mxu0
      %3037 = vmatprep.mubr.f32.mxu0 0.0
      %3038 = vmatmul.mubr.f32.gmra.mxu0 %v2900
      %v3039 = vpop.f32.mrf.mxu0
      %v3040 = vadd.f32 0.0, %v3039
      %v3041 = vpop.f32.mrf.mxu0
      %3042 = vmatprep.mubr.f32.mxu0 0.0
      %3043 = vmatmul.mubr.f32.gmra.mxu0 %v2903
      %v3044 = vpop.f32.mrf.mxu0
      %v3045 = vadd.f32 0.0, %v3044
      %v3046 = vpop.f32.mrf.mxu0
      %3047 = vmatprep.mubr.f32.mxu0 0.0
      %3048 = vmatmul.mubr.f32.gmra.mxu0 %v2906
      %v3049 = vpop.f32.mrf.mxu0
      %v3050 = vadd.f32 0.0, %v3049
      %v3051 = vpop.f32.mrf.mxu0
      %3052 = vdwg.mxu0
      %v3053 = vsel %vm689, %v2975, 0.0
      %3054 = vadd.xlane.f32.xlu0 %v3053
      %v3055 = vpop.xlane.xlu0 %3054
      %v3056 = vsel %vm689, %v2980, 0.0
      %3057 = vadd.xlane.f32.xlu0 %v3056
      %v3058 = vpop.xlane.xlu0 %3057
      %v3059 = vsel %vm689, %v2985, 0.0
      %3060 = vadd.xlane.f32.xlu0 %v3059
      %v3061 = vpop.xlane.xlu0 %3060
      %v3062 = vsel %vm689, %v2990, 0.0
      %3063 = vadd.xlane.f32.xlu0 %v3062
      %v3064 = vpop.xlane.xlu0 %3063
      %v3065 = vsel %vm689, %v2995, 0.0
      %3066 = vadd.xlane.f32.xlu0 %v3065
      %v3067 = vpop.xlane.xlu0 %3066
      %v3068 = vsel %vm689, %v3000, 0.0
      %3069 = vadd.xlane.f32.xlu0 %v3068
      %v3070 = vpop.xlane.xlu0 %3069
      %v3071 = vsel %vm689, %v3005, 0.0
      %3072 = vadd.xlane.f32.xlu0 %v3071
      %v3073 = vpop.xlane.xlu0 %3072
      %v3074 = vsel %vm689, %v3010, 0.0
      %3075 = vadd.xlane.f32.xlu0 %v3074
      %v3076 = vpop.xlane.xlu0 %3075
      %v3077 = vsel %vm689, %v3015, 0.0
      %3078 = vadd.xlane.f32.xlu0 %v3077
      %v3079 = vpop.xlane.xlu0 %3078
      %v3080 = vsel %vm689, %v3020, 0.0
      %3081 = vadd.xlane.f32.xlu0 %v3080
      %v3082 = vpop.xlane.xlu0 %3081
      %v3083 = vsel %vm689, %v3025, 0.0
      %3084 = vadd.xlane.f32.xlu0 %v3083
      %v3085 = vpop.xlane.xlu0 %3084
      %v3086 = vsel %vm689, %v3030, 0.0
      %3087 = vadd.xlane.f32.xlu0 %v3086
      %v3088 = vpop.xlane.xlu0 %3087
      %v3089 = vsel %vm689, %v3035, 0.0
      %3090 = vadd.xlane.f32.xlu0 %v3089
      %v3091 = vpop.xlane.xlu0 %3090
      %v3092 = vsel %vm689, %v3040, 0.0
      %3093 = vadd.xlane.f32.xlu0 %v3092
      %v3094 = vpop.xlane.xlu0 %3093
      %v3095 = vsel %vm689, %v3045, 0.0
      %3096 = vadd.xlane.f32.xlu0 %v3095
      %v3097 = vpop.xlane.xlu0 %3096
      %v3098 = vsel %vm689, %v3050, 0.0
      %3099 = vadd.xlane.f32.xlu0 %v3098
      %v3100 = vpop.xlane.xlu0 %3099
      %v3101 = vmul.f32 %v3055, %v2366
      %v3102 = vmul.f32 %v3058, %v2366
      %v3103 = vmul.f32 %v3061, %v2366
      %v3104 = vmul.f32 %v3064, %v2366
      %v3105 = vmul.f32 %v3067, %v2366
      %v3106 = vmul.f32 %v3070, %v2366
      %v3107 = vmul.f32 %v3073, %v2366
      %v3108 = vmul.f32 %v3076, %v2366
      %v3109 = vmul.f32 %v3079, %v2366
      %v3110 = vmul.f32 %v3082, %v2366
      %v3111 = vmul.f32 %v3085, %v2366
      %v3112 = vmul.f32 %v3088, %v2366
      %v3113 = vmul.f32 %v3091, %v2366
      %v3114 = vmul.f32 %v3094, %v2366
      %v3115 = vmul.f32 %v3097, %v2366
      %v3116 = vmul.f32 %v3100, %v2366
      %v3117 = vsub.f32 %v2975, %v3101
      %v3118 = vsub.f32 %v2980, %v3102
      %v3119 = vsub.f32 %v2985, %v3103
      %v3120 = vsub.f32 %v2990, %v3104
      %v3121 = vsub.f32 %v2995, %v3105
      %v3122 = vsub.f32 %v3000, %v3106
      %v3123 = vsub.f32 %v3005, %v3107
      %v3124 = vsub.f32 %v3010, %v3108
      %v3125 = vsub.f32 %v3015, %v3109
      %v3126 = vsub.f32 %v3020, %v3110
      %v3127 = vsub.f32 %v3025, %v3111
      %v3128 = vsub.f32 %v3030, %v3112
      %v3129 = vsub.f32 %v3035, %v3113
      %v3130 = vsub.f32 %v3040, %v3114
      %v3131 = vsub.f32 %v3045, %v3115
      %v3132 = vsub.f32 %v3050, %v3116
      %v3133 = vmul.f32 %v3117, %v3117
      %v3134 = vmul.f32 %v3118, %v3118
      %v3135 = vmul.f32 %v3119, %v3119
      %v3136 = vmul.f32 %v3120, %v3120
      %v3137 = vmul.f32 %v3121, %v3121
      %v3138 = vmul.f32 %v3122, %v3122
      %v3139 = vmul.f32 %v3123, %v3123
      %v3140 = vmul.f32 %v3124, %v3124
      %v3141 = vmul.f32 %v3125, %v3125
      %v3142 = vmul.f32 %v3126, %v3126
      %v3143 = vmul.f32 %v3127, %v3127
      %v3144 = vmul.f32 %v3128, %v3128
      %v3145 = vmul.f32 %v3129, %v3129
      %v3146 = vmul.f32 %v3130, %v3130
      %v3147 = vmul.f32 %v3131, %v3131
      %v3148 = vmul.f32 %v3132, %v3132
      %v3149 = vsel %vm689, %v3133, 0.0
      %3150 = vadd.xlane.f32.xlu0 %v3149
      %v3151 = vpop.xlane.xlu0 %3150
      %v3152 = vsel %vm689, %v3134, 0.0
      %3153 = vadd.xlane.f32.xlu0 %v3152
      %v3154 = vpop.xlane.xlu0 %3153
      %v3155 = vsel %vm689, %v3135, 0.0
      %3156 = vadd.xlane.f32.xlu0 %v3155
      %v3157 = vpop.xlane.xlu0 %3156
      %v3158 = vsel %vm689, %v3136, 0.0
      %3159 = vadd.xlane.f32.xlu0 %v3158
      %v3160 = vpop.xlane.xlu0 %3159
      %v3161 = vsel %vm689, %v3137, 0.0
      %3162 = vadd.xlane.f32.xlu0 %v3161
      %v3163 = vpop.xlane.xlu0 %3162
      %v3164 = vsel %vm689, %v3138, 0.0
      %3165 = vadd.xlane.f32.xlu0 %v3164
      %v3166 = vpop.xlane.xlu0 %3165
      %v3167 = vsel %vm689, %v3139, 0.0
      %3168 = vadd.xlane.f32.xlu0 %v3167
      %v3169 = vpop.xlane.xlu0 %3168
      %v3170 = vsel %vm689, %v3140, 0.0
      %3171 = vadd.xlane.f32.xlu0 %v3170
      %v3172 = vpop.xlane.xlu0 %3171
      %v3173 = vsel %vm689, %v3141, 0.0
      %3174 = vadd.xlane.f32.xlu0 %v3173
      %v3175 = vpop.xlane.xlu0 %3174
      %v3176 = vsel %vm689, %v3142, 0.0
      %3177 = vadd.xlane.f32.xlu0 %v3176
      %v3178 = vpop.xlane.xlu0 %3177
      %v3179 = vsel %vm689, %v3143, 0.0
      %3180 = vadd.xlane.f32.xlu0 %v3179
      %v3181 = vpop.xlane.xlu0 %3180
      %v3182 = vsel %vm689, %v3144, 0.0
      %3183 = vadd.xlane.f32.xlu0 %v3182
      %v3184 = vpop.xlane.xlu0 %3183
      %v3185 = vsel %vm689, %v3145, 0.0
      %3186 = vadd.xlane.f32.xlu0 %v3185
      %v3187 = vpop.xlane.xlu0 %3186
      %v3188 = vsel %vm689, %v3146, 0.0
      %3189 = vadd.xlane.f32.xlu0 %v3188
      %v3190 = vpop.xlane.xlu0 %3189
      %v3191 = vsel %vm689, %v3147, 0.0
      %3192 = vadd.xlane.f32.xlu0 %v3191
      %v3193 = vpop.xlane.xlu0 %3192
      %v3194 = vsel %vm689, %v3148, 0.0
      %3195 = vadd.xlane.f32.xlu0 %v3194
      %v3196 = vpop.xlane.xlu0 %3195
      %v3197 = vmul.f32 %v3151, %v2366
      %v3198 = vmul.f32 %v3154, %v2366
      %v3199 = vmul.f32 %v3157, %v2366
      %v3200 = vmul.f32 %v3160, %v2366
      %v3201 = vmul.f32 %v3163, %v2366
      %v3202 = vmul.f32 %v3166, %v2366
      %v3203 = vmul.f32 %v3169, %v2366
      %v3204 = vmul.f32 %v3172, %v2366
      %v3205 = vmul.f32 %v3175, %v2366
      %v3206 = vmul.f32 %v3178, %v2366
      %v3207 = vmul.f32 %v3181, %v2366
      %v3208 = vmul.f32 %v3184, %v2366
      %v3209 = vmul.f32 %v3187, %v2366
      %v3210 = vmul.f32 %v3190, %v2366
      %v3211 = vmul.f32 %v3193, %v2366
      %v3212 = vmul.f32 %v3196, %v2366
      %v3213 = vadd.f32 %v3197, 1e-05
      %v3214 = vadd.f32 %v3198, 1e-05
      %v3215 = vadd.f32 %v3199, 1e-05
      %v3216 = vadd.f32 %v3200, 1e-05
      %v3217 = vadd.f32 %v3201, 1e-05
      %v3218 = vadd.f32 %v3202, 1e-05
      %v3219 = vadd.f32 %v3203, 1e-05
      %v3220 = vadd.f32 %v3204, 1e-05
      %v3221 = vadd.f32 %v3205, 1e-05
      %v3222 = vadd.f32 %v3206, 1e-05
      %v3223 = vadd.f32 %v3207, 1e-05
      %v3224 = vadd.f32 %v3208, 1e-05
      %v3225 = vadd.f32 %v3209, 1e-05
      %v3226 = vadd.f32 %v3210, 1e-05
      %v3227 = vadd.f32 %v3211, 1e-05
      %v3228 = vadd.f32 %v3212, 1e-05
      %v3229 = vrsqrt.pop %v3213
      %v3230 = vrsqrt.pop %v3214
      %v3231 = vrsqrt.pop %v3215
      %v3232 = vrsqrt.pop %v3216
      %v3233 = vrsqrt.pop %v3217
      %v3234 = vrsqrt.pop %v3218
      %v3235 = vrsqrt.pop %v3219
      %v3236 = vrsqrt.pop %v3220
      %v3237 = vrsqrt.pop %v3221
      %v3238 = vrsqrt.pop %v3222
      %v3239 = vrsqrt.pop %v3223
      %v3240 = vrsqrt.pop %v3224
      %v3241 = vrsqrt.pop %v3225
      %v3242 = vrsqrt.pop %v3226
      %v3243 = vrsqrt.pop %v3227
      %v3244 = vrsqrt.pop %v3228
      %v3245 = vmul.f32 %v3117, %v3229
      %v3246 = vmul.f32 %v3118, %v3230
      %v3247 = vmul.f32 %v3119, %v3231
      %v3248 = vmul.f32 %v3120, %v3232
      %v3249 = vmul.f32 %v3121, %v3233
      %v3250 = vmul.f32 %v3122, %v3234
      %v3251 = vmul.f32 %v3123, %v3235
      %v3252 = vmul.f32 %v3124, %v3236
      %v3253 = vmul.f32 %v3125, %v3237
      %v3254 = vmul.f32 %v3126, %v3238
      %v3255 = vmul.f32 %v3127, %v3239
      %v3256 = vmul.f32 %v3128, %v3240
      %v3257 = vmul.f32 %v3129, %v3241
      %v3258 = vmul.f32 %v3130, %v3242
      %v3259 = vmul.f32 %v3131, %v3243
      %v3260 = vmul.f32 %v3132, %v3244
      %v3262 = vlaneseq
      %v3263 = vshrl.u32 %v3262, 7
      %v3264 = vsub.s32 0, %v3263
      %v3265 = vrot.slane %v687, %v3264
      %v3267 = vmul.f32 %v3245, %v3265
      %v3268 = vmul.f32 %v3246, %v3265
      %v3269 = vmul.f32 %v3247, %v3265
      %v3270 = vmul.f32 %v3248, %v3265
      %v3271 = vmul.f32 %v3249, %v3265
      %v3272 = vmul.f32 %v3250, %v3265
      %v3273 = vmul.f32 %v3251, %v3265
      %v3274 = vmul.f32 %v3252, %v3265
      %v3275 = vmul.f32 %v3253, %v3265
      %v3276 = vmul.f32 %v3254, %v3265
      %v3277 = vmul.f32 %v3255, %v3265
      %v3278 = vmul.f32 %v3256, %v3265
      %v3279 = vmul.f32 %v3257, %v3265
      %v3280 = vmul.f32 %v3258, %v3265
      %v3281 = vmul.f32 %v3259, %v3265
      %v3282 = vmul.f32 %v3260, %v3265
      %v3284 = vlaneseq
      %v3285 = vshrl.u32 %v3284, 7
      %v3286 = vsub.s32 0, %v3285
      %v3287 = vrot.slane %v688, %v3286
      %v3289 = vadd.f32 %v3267, %v3287
      %v3290 = vadd.f32 %v3268, %v3287
      %v3291 = vadd.f32 %v3269, %v3287
      %v3292 = vadd.f32 %v3270, %v3287
      %v3293 = vadd.f32 %v3271, %v3287
      %v3294 = vadd.f32 %v3272, %v3287
      %v3295 = vadd.f32 %v3273, %v3287
      %v3296 = vadd.f32 %v3274, %v3287
      %v3297 = vadd.f32 %v3275, %v3287
      %v3298 = vadd.f32 %v3276, %v3287
      %v3299 = vadd.f32 %v3277, %v3287
      %v3300 = vadd.f32 %v3278, %v3287
      %v3301 = vadd.f32 %v3279, %v3287
      %v3302 = vadd.f32 %v3280, %v3287
      %v3303 = vadd.f32 %v3281, %v3287
      %v3304 = vadd.f32 %v3282, %v3287
      %v3305 = vadd.f32 %v641, %v3289
      %v3306 = vadd.f32 %v642, %v3290
      %v3307 = vadd.f32 %v643, %v3291
      %v3308 = vadd.f32 %v644, %v3292
      %v3309 = vadd.f32 %v645, %v3293
      %v3310 = vadd.f32 %v646, %v3294
      %v3311 = vadd.f32 %v647, %v3295
      %v3312 = vadd.f32 %v648, %v3296
      %v3313 = vadd.f32 %v649, %v3297
      %v3314 = vadd.f32 %v650, %v3298
      %v3315 = vadd.f32 %v651, %v3299
      %v3316 = vadd.f32 %v652, %v3300
      %v3317 = vadd.f32 %v653, %v3301
      %v3318 = vadd.f32 %v654, %v3302
      %v3319 = vadd.f32 %v655, %v3303
      %v3320 = vadd.f32 %v656, %v3304
      %s3321 = scalar_lea.vmem %s545, 32
      %v3322 = vld [vmem:[%s3321] sm:$0xff]
      %v3323 = vld [vmem:[%s3321 + $0x8] sm:$0xff]
      %v3324 = vld [vmem:[%s3321 + $0x10] sm:$0xff]
      %v3325 = vld [vmem:[%s3321 + $0x18] sm:$0xff]
      %s3326 = scalar_lea.vmem %s552, 32
      %v3327 = vld [vmem:[%s3326] sm:$0xff]
      %v3328 = vld [vmem:[%s3326 + $0x8] sm:$0xff]
      %v3329 = vld [vmem:[%s3326 + $0x10] sm:$0xff]
      %v3330 = vld [vmem:[%s3326 + $0x18] sm:$0xff]
      %s3331 = scalar_lea.vmem %s559, 32
      %v3332 = vld [vmem:[%s3331] sm:$0xff]
      %v3333 = vld [vmem:[%s3331 + $0x8] sm:$0xff]
      %v3334 = vld [vmem:[%s3331 + $0x10] sm:$0xff]
      %v3335 = vld [vmem:[%s3331 + $0x18] sm:$0xff]
      %s3336 = scalar_lea.vmem %s564, 1
      %v3337 = vld [vmem:[%s3336] sm:$0x1]
      %s3338 = scalar_lea.vmem %s569, 1
      %v3339 = vld [vmem:[%s3338] sm:$0x1]
      %s3340 = scalar_lea.vmem %s576, 64
      %v3341 = vld [vmem:[%s3340] sm:$0xff]
      %v3342 = vld [vmem:[%s3340 + $0x8] sm:$0xff]
      %v3343 = vld [vmem:[%s3340 + $0x10] sm:$0xff]
      %v3344 = vld [vmem:[%s3340 + $0x18] sm:$0xff]
      %v3345 = vld [vmem:[%s3340 + $0x20] sm:$0xff]
      %v3346 = vld [vmem:[%s3340 + $0x28] sm:$0xff]
      %v3347 = vld [vmem:[%s3340 + $0x30] sm:$0xff]
      %v3348 = vld [vmem:[%s3340 + $0x38] sm:$0xff]
      %s3349 = scalar_lea.vmem %s583, 64
      %v3350 = vld [vmem:[%s3349] sm:$0xff]
      %v3351 = vld [vmem:[%s3349 + $0x8] sm:$0xff]
      %v3352 = vld [vmem:[%s3349 + $0x10] sm:$0xff]
      %v3353 = vld [vmem:[%s3349 + $0x18] sm:$0xff]
      %v3354 = vld [vmem:[%s3349 + $0x20] sm:$0xff]
      %v3355 = vld [vmem:[%s3349 + $0x28] sm:$0xff]
      %v3356 = vld [vmem:[%s3349 + $0x30] sm:$0xff]
      %v3357 = vld [vmem:[%s3349 + $0x38] sm:$0xff]
      %s3358 = scalar_lea.vmem %s588, 1
      %v3359 = vld [vmem:[%s3358] sm:$0x1]
      %s3360 = scalar_lea.vmem %s593, 1
      %v3361 = vld [vmem:[%s3360] sm:$0x1]
      %v3363 = vsel %vm689, %v3305, 0
      %v3366 = vsel %vm689, %v3306, 0
      %v3369 = vsel %vm689, %v3307, 0
      %v3372 = vsel %vm689, %v3308, 0
      %v3375 = vsel %vm689, %v3309, 0
      %v3378 = vsel %vm689, %v3310, 0
      %v3381 = vsel %vm689, %v3311, 0
      %v3384 = vsel %vm689, %v3312, 0
      %v3387 = vsel %vm689, %v3313, 0
      %v3390 = vsel %vm689, %v3314, 0
      %v3393 = vsel %vm689, %v3315, 0
      %v3396 = vsel %vm689, %v3316, 0
      %v3399 = vsel %vm689, %v3317, 0
      %v3402 = vsel %vm689, %v3318, 0
      %v3405 = vsel %vm689, %v3319, 0
      %v3408 = vsel %vm689, %v3320, 0
      %3410 = vmatprep.subr.mxu0 0.0
      %3411 = vmatpush1.msra.mxu0 0.0
      %3412 = vmatprep.subr.mxu0 0.0
      %3413 = vmatpush1.msra.mxu0 0.0
      %3414 = vmatprep.subr.mxu0 0.0
      %3415 = vmatpush1.msra.mxu0 0.0
      %3416 = vmatprep.subr.mxu0 0.0
      %3417 = vmatpush1.msra.mxu0 0.0
      %3418 = vmatprep.subr.mxu0 0.0
      %3419 = vmatpush1.msra.mxu0 0.0
      %3420 = vmatprep.subr.mxu0 0.0
      %3421 = vmatpush1.msra.mxu0 0.0
      %3422 = vmatprep.subr.mxu0 0.0
      %3423 = vmatpush1.msra.mxu0 0.0
      %3424 = vmatprep.subr.mxu0 0.0
      %3425 = vmatpush1.msra.mxu0 0.0
      %3426 = vmatprep.subr.mxu0 0.0
      %3427 = vmatpush1.msra.mxu0 0.0
      %3428 = vmatprep.subr.mxu0 0.0
      %3429 = vmatpush1.msra.mxu0 0.0
      %3430 = vmatprep.subr.mxu0 0.0
      %3431 = vmatpush1.msra.mxu0 0.0
      %3432 = vmatprep.subr.mxu0 0.0
      %3433 = vmatpush1.msra.mxu0 0.0
      %3434 = vmatprep.subr.mxu0 0.0
      %3435 = vmatpush1.msra.mxu0 %v3325
      %3436 = vmatprep.subr.mxu0 0.0
      %3437 = vmatpush1.msra.mxu0 %v3324
      %3438 = vmatprep.subr.mxu0 0.0
      %3439 = vmatpush1.msra.mxu0 %v3323
      %3440 = vmatprep.subr.mxu0 0.0
      %3441 = vmatpush1.msra.mxu0 %v3322
      %3442 = vmatprep.subr.mxu0 0.0
      %3443 = vmatpush2.msra.mxu0 0.0
      %3444 = vmatprep.subr.mxu0 0.0
      %3445 = vmatpush2.msra.mxu0 0.0
      %3446 = vmatprep.subr.mxu0 0.0
      %3447 = vmatpush2.msra.mxu0 0.0
      %3448 = vmatprep.subr.mxu0 0.0
      %3449 = vmatpush2.msra.mxu0 0.0
      %3450 = vmatprep.subr.mxu0 0.0
      %3451 = vmatpush2.msra.mxu0 0.0
      %3452 = vmatprep.subr.mxu0 0.0
      %3453 = vmatpush2.msra.mxu0 0.0
      %3454 = vmatprep.subr.mxu0 0.0
      %3455 = vmatpush2.msra.mxu0 0.0
      %3456 = vmatprep.subr.mxu0 0.0
      %3457 = vmatpush2.msra.mxu0 0.0
      %3458 = vmatprep.subr.mxu0 0.0
      %3459 = vmatpush2.msra.mxu0 0.0
      %3460 = vmatprep.subr.mxu0 0.0
      %3461 = vmatpush2.msra.mxu0 0.0
      %3462 = vmatprep.subr.mxu0 0.0
      %3463 = vmatpush2.msra.mxu0 0.0
      %3464 = vmatprep.subr.mxu0 0.0
      %3465 = vmatpush2.msra.mxu0 0.0
      %3466 = vmatprep.subr.mxu0 0.0
      %3467 = vmatpush2.msra.mxu0 0.0
      %3468 = vmatprep.subr.mxu0 0.0
      %3469 = vmatpush2.msra.mxu0 0.0
      %3470 = vmatprep.subr.mxu0 0.0
      %3471 = vmatpush2.msra.mxu0 0.0
      %3472 = vmatprep.subr.mxu0 0.0
      %3473 = vmatpush2.msra.mxu0 0.0
      %3474 = vmatprep.mubr.f32.mxu0 0.0
      %3475 = vmatmul.mubr.f32.gmra.mxu0 %v3363
      %v3476 = vpop.f32.mrf.mxu0
      %v3477 = vadd.f32 0.0, %v3476
      %v3478 = vpop.f32.mrf.mxu0
      %3479 = vmatprep.mubr.f32.mxu0 0.0
      %3480 = vmatmul.mubr.f32.gmra.mxu0 %v3366
      %v3481 = vpop.f32.mrf.mxu0
      %v3482 = vadd.f32 0.0, %v3481
      %v3483 = vpop.f32.mrf.mxu0
      %3484 = vmatprep.mubr.f32.mxu0 0.0
      %3485 = vmatmul.mubr.f32.gmra.mxu0 %v3369
      %v3486 = vpop.f32.mrf.mxu0
      %v3487 = vadd.f32 0.0, %v3486
      %v3488 = vpop.f32.mrf.mxu0
      %3489 = vmatprep.mubr.f32.mxu0 0.0
      %3490 = vmatmul.mubr.f32.gmra.mxu0 %v3372
      %v3491 = vpop.f32.mrf.mxu0
      %v3492 = vadd.f32 0.0, %v3491
      %v3493 = vpop.f32.mrf.mxu0
      %3494 = vmatprep.mubr.f32.mxu0 0.0
      %3495 = vmatmul.mubr.f32.gmra.mxu0 %v3375
      %v3496 = vpop.f32.mrf.mxu0
      %v3497 = vadd.f32 0.0, %v3496
      %v3498 = vpop.f32.mrf.mxu0
      %3499 = vmatprep.mubr.f32.mxu0 0.0
      %3500 = vmatmul.mubr.f32.gmra.mxu0 %v3378
      %v3501 = vpop.f32.mrf.mxu0
      %v3502 = vadd.f32 0.0, %v3501
      %v3503 = vpop.f32.mrf.mxu0
      %3504 = vmatprep.mubr.f32.mxu0 0.0
      %3505 = vmatmul.mubr.f32.gmra.mxu0 %v3381
      %v3506 = vpop.f32.mrf.mxu0
      %v3507 = vadd.f32 0.0, %v3506
      %v3508 = vpop.f32.mrf.mxu0
      %3509 = vmatprep.mubr.f32.mxu0 0.0
      %3510 = vmatmul.mubr.f32.gmra.mxu0 %v3384
      %v3511 = vpop.f32.mrf.mxu0
      %v3512 = vadd.f32 0.0, %v3511
      %v3513 = vpop.f32.mrf.mxu0
      %3514 = vmatprep.mubr.f32.mxu0 0.0
      %3515 = vmatmul.mubr.f32.gmra.mxu0 %v3387
      %v3516 = vpop.f32.mrf.mxu0
      %v3517 = vadd.f32 0.0, %v3516
      %v3518 = vpop.f32.mrf.mxu0
      %3519 = vmatprep.mubr.f32.mxu0 0.0
      %3520 = vmatmul.mubr.f32.gmra.mxu0 %v3390
      %v3521 = vpop.f32.mrf.mxu0
      %v3522 = vadd.f32 0.0, %v3521
      %v3523 = vpop.f32.mrf.mxu0
      %3524 = vmatprep.mubr.f32.mxu0 0.0
      %3525 = vmatmul.mubr.f32.gmra.mxu0 %v3393
      %v3526 = vpop.f32.mrf.mxu0
      %v3527 = vadd.f32 0.0, %v3526
      %v3528 = vpop.f32.mrf.mxu0
      %3529 = vmatprep.mubr.f32.mxu0 0.0
      %3530 = vmatmul.mubr.f32.gmra.mxu0 %v3396
      %v3531 = vpop.f32.mrf.mxu0
      %v3532 = vadd.f32 0.0, %v3531
      %v3533 = vpop.f32.mrf.mxu0
      %3534 = vmatprep.mubr.f32.mxu0 0.0
      %3535 = vmatmul.mubr.f32.gmra.mxu0 %v3399
      %v3536 = vpop.f32.mrf.mxu0
      %v3537 = vadd.f32 0.0, %v3536
      %v3538 = vpop.f32.mrf.mxu0
      %3539 = vmatprep.mubr.f32.mxu0 0.0
      %3540 = vmatmul.mubr.f32.gmra.mxu0 %v3402
      %v3541 = vpop.f32.mrf.mxu0
      %v3542 = vadd.f32 0.0, %v3541
      %v3543 = vpop.f32.mrf.mxu0
      %3544 = vmatprep.mubr.f32.mxu0 0.0
      %3545 = vmatmul.mubr.f32.gmra.mxu0 %v3405
      %v3546 = vpop.f32.mrf.mxu0
      %v3547 = vadd.f32 0.0, %v3546
      %v3548 = vpop.f32.mrf.mxu0
      %3549 = vmatprep.mubr.f32.mxu0 0.0
      %3550 = vmatmul.mubr.f32.gmra.mxu0 %v3408
      %v3551 = vpop.f32.mrf.mxu0
      %v3552 = vadd.f32 0.0, %v3551
      %v3553 = vpop.f32.mrf.mxu0
      %3554 = vdwg.mxu0
      %3555 = vmatprep.subr.mxu0 0.0
      %3556 = vmatpush1.msra.mxu0 0.0
      %3557 = vmatprep.subr.mxu0 0.0
      %3558 = vmatpush1.msra.mxu0 0.0
      %3559 = vmatprep.subr.mxu0 0.0
      %3560 = vmatpush1.msra.mxu0 0.0
      %3561 = vmatprep.subr.mxu0 0.0
      %3562 = vmatpush1.msra.mxu0 0.0
      %3563 = vmatprep.subr.mxu0 0.0
      %3564 = vmatpush1.msra.mxu0 0.0
      %3565 = vmatprep.subr.mxu0 0.0
      %3566 = vmatpush1.msra.mxu0 0.0
      %3567 = vmatprep.subr.mxu0 0.0
      %3568 = vmatpush1.msra.mxu0 0.0
      %3569 = vmatprep.subr.mxu0 0.0
      %3570 = vmatpush1.msra.mxu0 0.0
      %3571 = vmatprep.subr.mxu0 0.0
      %3572 = vmatpush1.msra.mxu0 0.0
      %3573 = vmatprep.subr.mxu0 0.0
      %3574 = vmatpush1.msra.mxu0 0.0
      %3575 = vmatprep.subr.mxu0 0.0
      %3576 = vmatpush1.msra.mxu0 0.0
      %3577 = vmatprep.subr.mxu0 0.0
      %3578 = vmatpush1.msra.mxu0 0.0
      %3579 = vmatprep.subr.mxu0 0.0
      %3580 = vmatpush1.msra.mxu0 %v3330
      %3581 = vmatprep.subr.mxu0 0.0
      %3582 = vmatpush1.msra.mxu0 %v3329
      %3583 = vmatprep.subr.mxu0 0.0
      %3584 = vmatpush1.msra.mxu0 %v3328
      %3585 = vmatprep.subr.mxu0 0.0
      %3586 = vmatpush1.msra.mxu0 %v3327
      %3587 = vmatprep.subr.mxu0 0.0
      %3588 = vmatpush2.msra.mxu0 0.0
      %3589 = vmatprep.subr.mxu0 0.0
      %3590 = vmatpush2.msra.mxu0 0.0
      %3591 = vmatprep.subr.mxu0 0.0
      %3592 = vmatpush2.msra.mxu0 0.0
      %3593 = vmatprep.subr.mxu0 0.0
      %3594 = vmatpush2.msra.mxu0 0.0
      %3595 = vmatprep.subr.mxu0 0.0
      %3596 = vmatpush2.msra.mxu0 0.0
      %3597 = vmatprep.subr.mxu0 0.0
      %3598 = vmatpush2.msra.mxu0 0.0
      %3599 = vmatprep.subr.mxu0 0.0
      %3600 = vmatpush2.msra.mxu0 0.0
      %3601 = vmatprep.subr.mxu0 0.0
      %3602 = vmatpush2.msra.mxu0 0.0
      %3603 = vmatprep.subr.mxu0 0.0
      %3604 = vmatpush2.msra.mxu0 0.0
      %3605 = vmatprep.subr.mxu0 0.0
      %3606 = vmatpush2.msra.mxu0 0.0
      %3607 = vmatprep.subr.mxu0 0.0
      %3608 = vmatpush2.msra.mxu0 0.0
      %3609 = vmatprep.subr.mxu0 0.0
      %3610 = vmatpush2.msra.mxu0 0.0
      %3611 = vmatprep.subr.mxu0 0.0
      %3612 = vmatpush2.msra.mxu0 0.0
      %3613 = vmatprep.subr.mxu0 0.0
      %3614 = vmatpush2.msra.mxu0 0.0
      %3615 = vmatprep.subr.mxu0 0.0
      %3616 = vmatpush2.msra.mxu0 0.0
      %3617 = vmatprep.subr.mxu0 0.0
      %3618 = vmatpush2.msra.mxu0 0.0
      %3619 = vmatprep.mubr.f32.mxu0 0.0
      %3620 = vmatmul.mubr.f32.gmra.mxu0 %v3387
      %v3621 = vpop.f32.mrf.mxu0
      %v3622 = vadd.f32 0.0, %v3621
      %v3623 = vpop.f32.mrf.mxu0
      %3624 = vmatprep.mubr.f32.mxu0 0.0
      %3625 = vmatmul.mubr.f32.gmra.mxu0 %v3390
      %v3626 = vpop.f32.mrf.mxu0
      %v3627 = vadd.f32 0.0, %v3626
      %v3628 = vpop.f32.mrf.mxu0
      %3629 = vmatprep.mubr.f32.mxu0 0.0
      %3630 = vmatmul.mubr.f32.gmra.mxu0 %v3393
      %v3631 = vpop.f32.mrf.mxu0
      %v3632 = vadd.f32 0.0, %v3631
      %v3633 = vpop.f32.mrf.mxu0
      %3634 = vmatprep.mubr.f32.mxu0 0.0
      %3635 = vmatmul.mubr.f32.gmra.mxu0 %v3396
      %v3636 = vpop.f32.mrf.mxu0
      %v3637 = vadd.f32 0.0, %v3636
      %v3638 = vpop.f32.mrf.mxu0
      %3639 = vmatprep.mubr.f32.mxu0 0.0
      %3640 = vmatmul.mubr.f32.gmra.mxu0 %v3399
      %v3641 = vpop.f32.mrf.mxu0
      %v3642 = vadd.f32 0.0, %v3641
      %v3643 = vpop.f32.mrf.mxu0
      %3644 = vmatprep.mubr.f32.mxu0 0.0
      %3645 = vmatmul.mubr.f32.gmra.mxu0 %v3402
      %v3646 = vpop.f32.mrf.mxu0
      %v3647 = vadd.f32 0.0, %v3646
      %v3648 = vpop.f32.mrf.mxu0
      %3649 = vmatprep.mubr.f32.mxu0 0.0
      %3650 = vmatmul.mubr.f32.gmra.mxu0 %v3405
      %v3651 = vpop.f32.mrf.mxu0
      %v3652 = vadd.f32 0.0, %v3651
      %v3653 = vpop.f32.mrf.mxu0
      %3654 = vmatprep.mubr.f32.mxu0 0.0
      %3655 = vmatmul.mubr.f32.gmra.mxu0 %v3408
      %v3656 = vpop.f32.mrf.mxu0
      %v3657 = vadd.f32 0.0, %v3656
      %v3658 = vpop.f32.mrf.mxu0
      %3659 = vmatprep.mubr.f32.mxu0 0.0
      %3660 = vmatmul.mubr.f32.gmra.mxu0 %v3363
      %v3661 = vpop.f32.mrf.mxu0
      %v3662 = vadd.f32 0.0, %v3661
      %v3663 = vpop.f32.mrf.mxu0
      %3664 = vmatprep.mubr.f32.mxu0 0.0
      %3665 = vmatmul.mubr.f32.gmra.mxu0 %v3366
      %v3666 = vpop.f32.mrf.mxu0
      %v3667 = vadd.f32 0.0, %v3666
      %v3668 = vpop.f32.mrf.mxu0
      %3669 = vmatprep.mubr.f32.mxu0 0.0
      %3670 = vmatmul.mubr.f32.gmra.mxu0 %v3369
      %v3671 = vpop.f32.mrf.mxu0
      %v3672 = vadd.f32 0.0, %v3671
      %v3673 = vpop.f32.mrf.mxu0
      %3674 = vmatprep.mubr.f32.mxu0 0.0
      %3675 = vmatmul.mubr.f32.gmra.mxu0 %v3372
      %v3676 = vpop.f32.mrf.mxu0
      %v3677 = vadd.f32 0.0, %v3676
      %v3678 = vpop.f32.mrf.mxu0
      %3679 = vmatprep.mubr.f32.mxu0 0.0
      %3680 = vmatmul.mubr.f32.gmra.mxu0 %v3375
      %v3681 = vpop.f32.mrf.mxu0
      %v3682 = vadd.f32 0.0, %v3681
      %v3683 = vpop.f32.mrf.mxu0
      %3684 = vmatprep.mubr.f32.mxu0 0.0
      %3685 = vmatmul.mubr.f32.gmra.mxu0 %v3378
      %v3686 = vpop.f32.mrf.mxu0
      %v3687 = vadd.f32 0.0, %v3686
      %v3688 = vpop.f32.mrf.mxu0
      %3689 = vmatprep.mubr.f32.mxu0 0.0
      %3690 = vmatmul.mubr.f32.gmra.mxu0 %v3381
      %v3691 = vpop.f32.mrf.mxu0
      %v3692 = vadd.f32 0.0, %v3691
      %v3693 = vpop.f32.mrf.mxu0
      %3694 = vmatprep.mubr.f32.mxu0 0.0
      %3695 = vmatmul.mubr.f32.gmra.mxu0 %v3384
      %v3696 = vpop.f32.mrf.mxu0
      %v3697 = vadd.f32 0.0, %v3696
      %v3698 = vpop.f32.mrf.mxu0
      %3699 = vdwg.mxu0
      %vm3700 = vcmp.gt.f32.partialorder %v3477, 0.0
      %vm3701 = vcmp.gt.f32.partialorder %v3482, 0.0
      %vm3702 = vcmp.gt.f32.partialorder %v3487, 0.0
      %vm3703 = vcmp.gt.f32.partialorder %v3492, 0.0
      %vm3704 = vcmp.gt.f32.partialorder %v3497, 0.0
      %vm3705 = vcmp.gt.f32.partialorder %v3502, 0.0
      %vm3706 = vcmp.gt.f32.partialorder %v3507, 0.0
      %vm3707 = vcmp.gt.f32.partialorder %v3512, 0.0
      %vm3708 = vcmp.gt.f32.partialorder %v3517, 0.0
      %vm3709 = vcmp.gt.f32.partialorder %v3522, 0.0
      %vm3710 = vcmp.gt.f32.partialorder %v3527, 0.0
      %vm3711 = vcmp.gt.f32.partialorder %v3532, 0.0
      %vm3712 = vcmp.gt.f32.partialorder %v3537, 0.0
      %vm3713 = vcmp.gt.f32.partialorder %v3542, 0.0
      %vm3714 = vcmp.gt.f32.partialorder %v3547, 0.0
      %vm3715 = vcmp.gt.f32.partialorder %v3552, 0.0
      %v3716 = vadd.f32 %v3477, 1.0
      %v3717 = vadd.f32 %v3482, 1.0
      %v3718 = vadd.f32 %v3487, 1.0
      %v3719 = vadd.f32 %v3492, 1.0
      %v3720 = vadd.f32 %v3497, 1.0
      %v3721 = vadd.f32 %v3502, 1.0
      %v3722 = vadd.f32 %v3507, 1.0
      %v3723 = vadd.f32 %v3512, 1.0
      %v3724 = vadd.f32 %v3517, 1.0
      %v3725 = vadd.f32 %v3522, 1.0
      %v3726 = vadd.f32 %v3527, 1.0
      %v3727 = vadd.f32 %v3532, 1.0
      %v3728 = vadd.f32 %v3537, 1.0
      %v3729 = vadd.f32 %v3542, 1.0
      %v3730 = vadd.f32 %v3547, 1.0
      %v3731 = vadd.f32 %v3552, 1.0
      %v3732 = vmul.f32 %v3477, 1.442695
      %v3733 = vpow.pop %v3732
      %v3734 = vmul.f32 %v3482, 1.442695
      %v3735 = vpow.pop %v3734
      %v3736 = vmul.f32 %v3487, 1.442695
      %v3737 = vpow.pop %v3736
      %v3738 = vmul.f32 %v3492, 1.442695
      %v3739 = vpow.pop %v3738
      %v3740 = vmul.f32 %v3497, 1.442695
      %v3741 = vpow.pop %v3740
      %v3742 = vmul.f32 %v3502, 1.442695
      %v3743 = vpow.pop %v3742
      %v3744 = vmul.f32 %v3507, 1.442695
      %v3745 = vpow.pop %v3744
      %v3746 = vmul.f32 %v3512, 1.442695
      %v3747 = vpow.pop %v3746
      %v3748 = vmul.f32 %v3517, 1.442695
      %v3749 = vpow.pop %v3748
      %v3750 = vmul.f32 %v3522, 1.442695
      %v3751 = vpow.pop %v3750
      %v3752 = vmul.f32 %v3527, 1.442695
      %v3753 = vpow.pop %v3752
      %v3754 = vmul.f32 %v3532, 1.442695
      %v3755 = vpow.pop %v3754
      %v3756 = vmul.f32 %v3537, 1.442695
      %v3757 = vpow.pop %v3756
      %v3758 = vmul.f32 %v3542, 1.442695
      %v3759 = vpow.pop %v3758
      %v3760 = vmul.f32 %v3547, 1.442695
      %v3761 = vpow.pop %v3760
      %v3762 = vmul.f32 %v3552, 1.442695
      %v3763 = vpow.pop %v3762
      %v3764 = vsel %vm3700, %v3716, %v3733
      %v3765 = vsel %vm3701, %v3717, %v3735
      %v3766 = vsel %vm3702, %v3718, %v3737
      %v3767 = vsel %vm3703, %v3719, %v3739
      %v3768 = vsel %vm3704, %v3720, %v3741
      %v3769 = vsel %vm3705, %v3721, %v3743
      %v3770 = vsel %vm3706, %v3722, %v3745
      %v3771 = vsel %vm3707, %v3723, %v3747
      %v3772 = vsel %vm3708, %v3724, %v3749
      %v3773 = vsel %vm3709, %v3725, %v3751
      %v3774 = vsel %vm3710, %v3726, %v3753
      %v3775 = vsel %vm3711, %v3727, %v3755
      %v3776 = vsel %vm3712, %v3728, %v3757
      %v3777 = vsel %vm3713, %v3729, %v3759
      %v3778 = vsel %vm3714, %v3730, %v3761
      %v3779 = vsel %vm3715, %v3731, %v3763
      %vm3780 = vcmp.gt.f32.partialorder %v3622, 0.0
      %vm3781 = vcmp.gt.f32.partialorder %v3627, 0.0
      %vm3782 = vcmp.gt.f32.partialorder %v3632, 0.0
      %vm3783 = vcmp.gt.f32.partialorder %v3637, 0.0
      %vm3784 = vcmp.gt.f32.partialorder %v3642, 0.0
      %vm3785 = vcmp.gt.f32.partialorder %v3647, 0.0
      %vm3786 = vcmp.gt.f32.partialorder %v3652, 0.0
      %vm3787 = vcmp.gt.f32.partialorder %v3657, 0.0
      %vm3788 = vcmp.gt.f32.partialorder %v3662, 0.0
      %vm3789 = vcmp.gt.f32.partialorder %v3667, 0.0
      %vm3790 = vcmp.gt.f32.partialorder %v3672, 0.0
      %vm3791 = vcmp.gt.f32.partialorder %v3677, 0.0
      %vm3792 = vcmp.gt.f32.partialorder %v3682, 0.0
      %vm3793 = vcmp.gt.f32.partialorder %v3687, 0.0
      %vm3794 = vcmp.gt.f32.partialorder %v3692, 0.0
      %vm3795 = vcmp.gt.f32.partialorder %v3697, 0.0
      %v3796 = vadd.f32 %v3622, 1.0
      %v3797 = vadd.f32 %v3627, 1.0
      %v3798 = vadd.f32 %v3632, 1.0
      %v3799 = vadd.f32 %v3637, 1.0
      %v3800 = vadd.f32 %v3642, 1.0
      %v3801 = vadd.f32 %v3647, 1.0
      %v3802 = vadd.f32 %v3652, 1.0
      %v3803 = vadd.f32 %v3657, 1.0
      %v3804 = vadd.f32 %v3662, 1.0
      %v3805 = vadd.f32 %v3667, 1.0
      %v3806 = vadd.f32 %v3672, 1.0
      %v3807 = vadd.f32 %v3677, 1.0
      %v3808 = vadd.f32 %v3682, 1.0
      %v3809 = vadd.f32 %v3687, 1.0
      %v3810 = vadd.f32 %v3692, 1.0
      %v3811 = vadd.f32 %v3697, 1.0
      %v3812 = vmul.f32 %v3622, 1.442695
      %v3813 = vpow.pop %v3812
      %v3814 = vmul.f32 %v3627, 1.442695
      %v3815 = vpow.pop %v3814
      %v3816 = vmul.f32 %v3632, 1.442695
      %v3817 = vpow.pop %v3816
      %v3818 = vmul.f32 %v3637, 1.442695
      %v3819 = vpow.pop %v3818
      %v3820 = vmul.f32 %v3642, 1.442695
      %v3821 = vpow.pop %v3820
      %v3822 = vmul.f32 %v3647, 1.442695
      %v3823 = vpow.pop %v3822
      %v3824 = vmul.f32 %v3652, 1.442695
      %v3825 = vpow.pop %v3824
      %v3826 = vmul.f32 %v3657, 1.442695
      %v3827 = vpow.pop %v3826
      %v3828 = vmul.f32 %v3662, 1.442695
      %v3829 = vpow.pop %v3828
      %v3830 = vmul.f32 %v3667, 1.442695
      %v3831 = vpow.pop %v3830
      %v3832 = vmul.f32 %v3672, 1.442695
      %v3833 = vpow.pop %v3832
      %v3834 = vmul.f32 %v3677, 1.442695
      %v3835 = vpow.pop %v3834
      %v3836 = vmul.f32 %v3682, 1.442695
      %v3837 = vpow.pop %v3836
      %v3838 = vmul.f32 %v3687, 1.442695
      %v3839 = vpow.pop %v3838
      %v3840 = vmul.f32 %v3692, 1.442695
      %v3841 = vpow.pop %v3840
      %v3842 = vmul.f32 %v3697, 1.442695
      %v3843 = vpow.pop %v3842
      %v3844 = vsel %vm3780, %v3796, %v3813
      %v3845 = vsel %vm3781, %v3797, %v3815
      %v3846 = vsel %vm3782, %v3798, %v3817
      %v3847 = vsel %vm3783, %v3799, %v3819
      %v3848 = vsel %vm3784, %v3800, %v3821
      %v3849 = vsel %vm3785, %v3801, %v3823
      %v3850 = vsel %vm3786, %v3802, %v3825
      %v3851 = vsel %vm3787, %v3803, %v3827
      %v3852 = vsel %vm3788, %v3804, %v3829
      %v3853 = vsel %vm3789, %v3805, %v3831
      %v3854 = vsel %vm3790, %v3806, %v3833
      %v3855 = vsel %vm3791, %v3807, %v3835
      %v3856 = vsel %vm3792, %v3808, %v3837
      %v3857 = vsel %vm3793, %v3809, %v3839
      %v3858 = vsel %vm3794, %v3810, %v3841
      %v3859 = vsel %vm3795, %v3811, %v3843
      %3860 = vxpose.xlu0.b32.start [1/16] %v3844, 128
      %3861 = vxpose.xlu0.b32.cont [2/16] %v3845, 128
      %3862 = vxpose.xlu0.b32.cont [3/16] %v3846, 128
      %3863 = vxpose.xlu0.b32.cont [4/16] %v3847, 128
      %3864 = vxpose.xlu0.b32.cont [5/16] %v3848, 128
      %3865 = vxpose.xlu0.b32.cont [6/16] %v3849, 128
      %3866 = vxpose.xlu0.b32.cont [7/16] %v3850, 128
      %3867 = vxpose.xlu0.b32.cont [8/16] %v3851, 128
      %3868 = vxpose.xlu0.b32.cont [9/16] 0.0, 128
      %3869 = vxpose.xlu0.b32.cont [10/16] 0.0, 128
      %3870 = vxpose.xlu0.b32.cont [11/16] 0.0, 128
      %3871 = vxpose.xlu0.b32.cont [12/16] 0.0, 128
      %3872 = vxpose.xlu0.b32.cont [13/16] 0.0, 128
      %3873 = vxpose.xlu0.b32.cont [14/16] 0.0, 128
      %3874 = vxpose.xlu0.b32.cont [15/16] 0.0, 128
      %3875 = vxpose.xlu0.b32.end [16/16] 0.0, 128
      %v3876 = vpop.trf.xlu0
      %v3877 = vpop.trf.xlu0
      %v3878 = vpop.trf.xlu0
      %v3879 = vpop.trf.xlu0
      %v3880 = vpop.trf.xlu0
      %v3881 = vpop.trf.xlu0
      %v3882 = vpop.trf.xlu0
      %v3883 = vpop.trf.xlu0
      %v3884 = vpop.trf.xlu0
      %v3885 = vpop.trf.xlu0
      %v3886 = vpop.trf.xlu0
      %v3887 = vpop.trf.xlu0
      %v3888 = vpop.trf.xlu0
      %v3889 = vpop.trf.xlu0
      %v3890 = vpop.trf.xlu0
      %v3891 = vpop.trf.xlu0
      %3900 = vrot.lane.b32.xlu0 %v3622, 96
      %v3901 = vpop.permute.xlu0 %3900
      %3902 = vrot.lane.b32.xlu0 %v3627, 96
      %v3903 = vpop.permute.xlu0 %3902
      %3904 = vrot.lane.b32.xlu0 %v3632, 96
      %v3905 = vpop.permute.xlu0 %3904
      %3906 = vrot.lane.b32.xlu0 %v3637, 96
      %v3907 = vpop.permute.xlu0 %3906
      %3908 = vrot.lane.b32.xlu0 %v3642, 96
      %v3909 = vpop.permute.xlu0 %3908
      %3910 = vrot.lane.b32.xlu0 %v3647, 96
      %v3911 = vpop.permute.xlu0 %3910
      %3912 = vrot.lane.b32.xlu0 %v3652, 96
      %v3913 = vpop.permute.xlu0 %3912
      %3914 = vrot.lane.b32.xlu0 %v3657, 96
      %v3915 = vpop.permute.xlu0 %3914
      %v3925 = vsel %vm1252, %v3876, 0
      %v3928 = vsel %vm1252, %v3877, 0
      %v3931 = vsel %vm1252, %v3878, 0
      %v3934 = vsel %vm1252, %v3879, 0
      %3936 = vmatprep.subr.mxu0 0.0
      %3937 = vmatpush1.msra.mxu0 0.0
      %3938 = vmatprep.subr.mxu0 0.0
      %3939 = vmatpush1.msra.mxu0 0.0
      %3940 = vmatprep.subr.mxu0 0.0
      %3941 = vmatpush1.msra.mxu0 0.0
      %3942 = vmatprep.subr.mxu0 0.0
      %3943 = vmatpush1.msra.mxu0 0.0
      %3944 = vmatprep.subr.mxu0 0.0
      %3945 = vmatpush1.msra.mxu0 0.0
      %3946 = vmatprep.subr.mxu0 0.0
      %3947 = vmatpush1.msra.mxu0 0.0
      %3948 = vmatprep.subr.mxu0 0.0
      %3949 = vmatpush1.msra.mxu0 0.0
      %3950 = vmatprep.subr.mxu0 0.0
      %3951 = vmatpush1.msra.mxu0 0.0
      %3952 = vmatprep.subr.mxu0 0.0
      %3953 = vmatpush1.msra.mxu0 %v3915
      %3954 = vmatprep.subr.mxu0 0.0
      %3955 = vmatpush1.msra.mxu0 %v3913
      %3956 = vmatprep.subr.mxu0 0.0
      %3957 = vmatpush1.msra.mxu0 %v3911
      %3958 = vmatprep.subr.mxu0 0.0
      %3959 = vmatpush1.msra.mxu0 %v3909
      %3960 = vmatprep.subr.mxu0 0.0
      %3961 = vmatpush1.msra.mxu0 %v3907
      %3962 = vmatprep.subr.mxu0 0.0
      %3963 = vmatpush1.msra.mxu0 %v3905
      %3964 = vmatprep.subr.mxu0 0.0
      %3965 = vmatpush1.msra.mxu0 %v3903
      %3966 = vmatprep.subr.mxu0 0.0
      %3967 = vmatpush1.msra.mxu0 %v3901
      %3968 = vmatprep.subr.mxu0 0.0
      %3969 = vmatpush2.msra.mxu0 0.0
      %3970 = vmatprep.subr.mxu0 0.0
      %3971 = vmatpush2.msra.mxu0 0.0
      %3972 = vmatprep.subr.mxu0 0.0
      %3973 = vmatpush2.msra.mxu0 0.0
      %3974 = vmatprep.subr.mxu0 0.0
      %3975 = vmatpush2.msra.mxu0 0.0
      %3976 = vmatprep.subr.mxu0 0.0
      %3977 = vmatpush2.msra.mxu0 0.0
      %3978 = vmatprep.subr.mxu0 0.0
      %3979 = vmatpush2.msra.mxu0 0.0
      %3980 = vmatprep.subr.mxu0 0.0
      %3981 = vmatpush2.msra.mxu0 0.0
      %3982 = vmatprep.subr.mxu0 0.0
      %3983 = vmatpush2.msra.mxu0 0.0
      %3984 = vmatprep.subr.mxu0 0.0
      %3985 = vmatpush2.msra.mxu0 0.0
      %3986 = vmatprep.subr.mxu0 0.0
      %3987 = vmatpush2.msra.mxu0 0.0
      %3988 = vmatprep.subr.mxu0 0.0
      %3989 = vmatpush2.msra.mxu0 0.0
      %3990 = vmatprep.subr.mxu0 0.0
      %3991 = vmatpush2.msra.mxu0 0.0
      %3992 = vmatprep.subr.mxu0 0.0
      %3993 = vmatpush2.msra.mxu0 0.0
      %3994 = vmatprep.subr.mxu0 0.0
      %3995 = vmatpush2.msra.mxu0 0.0
      %3996 = vmatprep.subr.mxu0 0.0
      %3997 = vmatpush2.msra.mxu0 0.0
      %3998 = vmatprep.subr.mxu0 0.0
      %3999 = vmatpush2.msra.mxu0 0.0
      %4000 = vmatprep.mubr.f32.mxu0 0.0
      %4001 = vmatmul.mubr.f32.gmra.mxu0 %v3925
      %v4002 = vpop.f32.mrf.mxu0
      %v4003 = vadd.f32 0.0, %v4002
      %v4004 = vpop.f32.mrf.mxu0
      %4005 = vmatprep.mubr.f32.mxu0 0.0
      %4006 = vmatmul.mubr.f32.gmra.mxu0 %v3928
      %v4007 = vpop.f32.mrf.mxu0
      %v4008 = vadd.f32 0.0, %v4007
      %v4009 = vpop.f32.mrf.mxu0
      %4010 = vmatprep.mubr.f32.mxu0 0.0
      %4011 = vmatmul.mubr.f32.gmra.mxu0 %v3931
      %v4012 = vpop.f32.mrf.mxu0
      %v4013 = vadd.f32 0.0, %v4012
      %v4014 = vpop.f32.mrf.mxu0
      %4015 = vmatprep.mubr.f32.mxu0 0.0
      %4016 = vmatmul.mubr.f32.gmra.mxu0 %v3934
      %v4017 = vpop.f32.mrf.mxu0
      %v4018 = vadd.f32 0.0, %v4017
      %v4019 = vpop.f32.mrf.mxu0
      %4020 = vdwg.mxu0
      %v4021 = vmul.f32 %v4003, %v637
      %v4022 = vmul.f32 %v4008, %v638
      %v4023 = vmul.f32 %v4013, %v639
      %v4024 = vmul.f32 %v4018, %v640
      %v4025 = vsel %vm689, %v3844, 0.0
      %v4026 = vsel %vm689, %v3845, 0.0
      %v4027 = vadd.f32 %v4025, %v4026
      %v4028 = vsel %vm689, %v3846, 0.0
      %v4029 = vadd.f32 %v4027, %v4028
      %v4030 = vsel %vm689, %v3847, 0.0
      %v4031 = vadd.f32 %v4029, %v4030
      %v4032 = vsel %vm689, %v3848, 0.0
      %v4033 = vadd.f32 %v4031, %v4032
      %v4034 = vsel %vm689, %v3849, 0.0
      %v4035 = vadd.f32 %v4033, %v4034
      %v4036 = vsel %vm689, %v3850, 0.0
      %v4037 = vadd.f32 %v4035, %v4036
      %v4038 = vsel %vm689, %v3851, 0.0
      %v4039 = vadd.f32 %v4037, %v4038
      %v4040 = vrot.slane %v4039, 4
      %v4041 = vadd.f32 %v4039, %v4040
      %v4042 = vrot.slane %v4041, 2
      %v4043 = vadd.f32 %v4041, %v4042
      %v4044 = vrot.slane %v4043, 1
      %v4045 = vadd.f32 %v4043, %v4044
      %v4047 = vsel %vm689, %v3764, 0
      %v4050 = vsel %vm689, %v3765, 0
      %v4053 = vsel %vm689, %v3766, 0
      %v4056 = vsel %vm689, %v3767, 0
      %v4059 = vsel %vm689, %v3768, 0
      %v4062 = vsel %vm689, %v3769, 0
      %v4065 = vsel %vm689, %v3770, 0
      %v4068 = vsel %vm689, %v3771, 0
      %4070 = vmatprep.subr.mxu0 0.0
      %4071 = vmatpush1.msra.mxu0 0.0
      %4072 = vmatprep.subr.mxu0 0.0
      %4073 = vmatpush1.msra.mxu0 0.0
      %4074 = vmatprep.subr.mxu0 0.0
      %4075 = vmatpush1.msra.mxu0 0.0
      %4076 = vmatprep.subr.mxu0 0.0
      %4077 = vmatpush1.msra.mxu0 0.0
      %4078 = vmatprep.subr.mxu0 0.0
      %4079 = vmatpush1.msra.mxu0 0.0
      %4080 = vmatprep.subr.mxu0 0.0
      %4081 = vmatpush1.msra.mxu0 0.0
      %4082 = vmatprep.subr.mxu0 0.0
      %4083 = vmatpush1.msra.mxu0 0.0
      %4084 = vmatprep.subr.mxu0 0.0
      %4085 = vmatpush1.msra.mxu0 0.0
      %4086 = vmatprep.subr.mxu0 0.0
      %4087 = vmatpush1.msra.mxu0 0.0
      %4088 = vmatprep.subr.mxu0 0.0
      %4089 = vmatpush1.msra.mxu0 0.0
      %4090 = vmatprep.subr.mxu0 0.0
      %4091 = vmatpush1.msra.mxu0 0.0
      %4092 = vmatprep.subr.mxu0 0.0
      %4093 = vmatpush1.msra.mxu0 0.0
      %4094 = vmatprep.subr.mxu0 0.0
      %4095 = vmatpush1.msra.mxu0 %v4024
      %4096 = vmatprep.subr.mxu0 0.0
      %4097 = vmatpush1.msra.mxu0 %v4023
      %4098 = vmatprep.subr.mxu0 0.0
      %4099 = vmatpush1.msra.mxu0 %v4022
      %4100 = vmatprep.subr.mxu0 0.0
      %4101 = vmatpush1.msra.mxu0 %v4021
      %4102 = vmatprep.subr.mxu0 0.0
      %4103 = vmatpush2.msra.mxu0 0.0
      %4104 = vmatprep.subr.mxu0 0.0
      %4105 = vmatpush2.msra.mxu0 0.0
      %4106 = vmatprep.subr.mxu0 0.0
      %4107 = vmatpush2.msra.mxu0 0.0
      %4108 = vmatprep.subr.mxu0 0.0
      %4109 = vmatpush2.msra.mxu0 0.0
      %4110 = vmatprep.subr.mxu0 0.0
      %4111 = vmatpush2.msra.mxu0 0.0
      %4112 = vmatprep.subr.mxu0 0.0
      %4113 = vmatpush2.msra.mxu0 0.0
      %4114 = vmatprep.subr.mxu0 0.0
      %4115 = vmatpush2.msra.mxu0 0.0
      %4116 = vmatprep.subr.mxu0 0.0
      %4117 = vmatpush2.msra.mxu0 0.0
      %4118 = vmatprep.subr.mxu0 0.0
      %4119 = vmatpush2.msra.mxu0 0.0
      %4120 = vmatprep.subr.mxu0 0.0
      %4121 = vmatpush2.msra.mxu0 0.0
      %4122 = vmatprep.subr.mxu0 0.0
      %4123 = vmatpush2.msra.mxu0 0.0
      %4124 = vmatprep.subr.mxu0 0.0
      %4125 = vmatpush2.msra.mxu0 0.0
      %4126 = vmatprep.subr.mxu0 0.0
      %4127 = vmatpush2.msra.mxu0 0.0
      %4128 = vmatprep.subr.mxu0 0.0
      %4129 = vmatpush2.msra.mxu0 0.0
      %4130 = vmatprep.subr.mxu0 0.0
      %4131 = vmatpush2.msra.mxu0 0.0
      %4132 = vmatprep.subr.mxu0 0.0
      %4133 = vmatpush2.msra.mxu0 0.0
      %4134 = vmatprep.mubr.f32.mxu0 0.0
      %4135 = vmatmul.mubr.f32.gmra.mxu0 %v4047
      %v4136 = vpop.f32.mrf.mxu0
      %v4137 = vadd.f32 0.0, %v4136
      %v4138 = vpop.f32.mrf.mxu0
      %4139 = vmatprep.mubr.f32.mxu0 0.0
      %4140 = vmatmul.mubr.f32.gmra.mxu0 %v4050
      %v4141 = vpop.f32.mrf.mxu0
      %v4142 = vadd.f32 0.0, %v4141
      %v4143 = vpop.f32.mrf.mxu0
      %4144 = vmatprep.mubr.f32.mxu0 0.0
      %4145 = vmatmul.mubr.f32.gmra.mxu0 %v4053
      %v4146 = vpop.f32.mrf.mxu0
      %v4147 = vadd.f32 0.0, %v4146
      %v4148 = vpop.f32.mrf.mxu0
      %4149 = vmatprep.mubr.f32.mxu0 0.0
      %4150 = vmatmul.mubr.f32.gmra.mxu0 %v4056
      %v4151 = vpop.f32.mrf.mxu0
      %v4152 = vadd.f32 0.0, %v4151
      %v4153 = vpop.f32.mrf.mxu0
      %4154 = vmatprep.mubr.f32.mxu0 0.0
      %4155 = vmatmul.mubr.f32.gmra.mxu0 %v4059
      %v4156 = vpop.f32.mrf.mxu0
      %v4157 = vadd.f32 0.0, %v4156
      %v4158 = vpop.f32.mrf.mxu0
      %4159 = vmatprep.mubr.f32.mxu0 0.0
      %4160 = vmatmul.mubr.f32.gmra.mxu0 %v4062
      %v4161 = vpop.f32.mrf.mxu0
      %v4162 = vadd.f32 0.0, %v4161
      %v4163 = vpop.f32.mrf.mxu0
      %4164 = vmatprep.mubr.f32.mxu0 0.0
      %4165 = vmatmul.mubr.f32.gmra.mxu0 %v4065
      %v4166 = vpop.f32.mrf.mxu0
      %v4167 = vadd.f32 0.0, %v4166
      %v4168 = vpop.f32.mrf.mxu0
      %4169 = vmatprep.mubr.f32.mxu0 0.0
      %4170 = vmatmul.mubr.f32.gmra.mxu0 %v4068
      %v4171 = vpop.f32.mrf.mxu0
      %v4172 = vadd.f32 0.0, %v4171
      %v4173 = vpop.f32.mrf.mxu0
      %4174 = vdwg.mxu0
      %v4175 = vmul.f32 %v3764, %v4045
      %v4176 = vmul.f32 %v3765, %v4045
      %v4177 = vmul.f32 %v3766, %v4045
      %v4178 = vmul.f32 %v3767, %v4045
      %v4179 = vmul.f32 %v3768, %v4045
      %v4180 = vmul.f32 %v3769, %v4045
      %v4181 = vmul.f32 %v3770, %v4045
      %v4182 = vmul.f32 %v3771, %v4045
      %v4184 = vsel %vm689, %v4175, 0
      %v4187 = vsel %vm689, %v4176, 0
      %v4190 = vsel %vm689, %v4177, 0
      %v4193 = vsel %vm689, %v4178, 0
      %v4196 = vsel %vm689, %v4179, 0
      %v4199 = vsel %vm689, %v4180, 0
      %v4202 = vsel %vm689, %v4181, 0
      %v4205 = vsel %vm689, %v4182, 0
      %4207 = vmatprep.subr.mxu0 0.0
      %4208 = vmatpush1.msra.mxu0 0.0
      %4209 = vmatprep.subr.mxu0 0.0
      %4210 = vmatpush1.msra.mxu0 0.0
      %4211 = vmatprep.subr.mxu0 0.0
      %4212 = vmatpush1.msra.mxu0 0.0
      %4213 = vmatprep.subr.mxu0 0.0
      %4214 = vmatpush1.msra.mxu0 0.0
      %4215 = vmatprep.subr.mxu0 0.0
      %4216 = vmatpush1.msra.mxu0 0.0
      %4217 = vmatprep.subr.mxu0 0.0
      %4218 = vmatpush1.msra.mxu0 0.0
      %4219 = vmatprep.subr.mxu0 0.0
      %4220 = vmatpush1.msra.mxu0 0.0
      %4221 = vmatprep.subr.mxu0 0.0
      %4222 = vmatpush1.msra.mxu0 0.0
      %4223 = vmatprep.subr.mxu0 0.0
      %4224 = vmatpush1.msra.mxu0 0.0
      %4225 = vmatprep.subr.mxu0 0.0
      %4226 = vmatpush1.msra.mxu0 0.0
      %4227 = vmatprep.subr.mxu0 0.0
      %4228 = vmatpush1.msra.mxu0 0.0
      %4229 = vmatprep.subr.mxu0 0.0
      %4230 = vmatpush1.msra.mxu0 0.0
      %4231 = vmatprep.subr.mxu0 0.0
      %4232 = vmatpush1.msra.mxu0 %v640
      %4233 = vmatprep.subr.mxu0 0.0
      %4234 = vmatpush1.msra.mxu0 %v639
      %4235 = vmatprep.subr.mxu0 0.0
      %4236 = vmatpush1.msra.mxu0 %v638
      %4237 = vmatprep.subr.mxu0 0.0
      %4238 = vmatpush1.msra.mxu0 %v637
      %4239 = vmatprep.subr.mxu0 0.0
      %4240 = vmatpush2.msra.mxu0 0.0
      %4241 = vmatprep.subr.mxu0 0.0
      %4242 = vmatpush2.msra.mxu0 0.0
      %4243 = vmatprep.subr.mxu0 0.0
      %4244 = vmatpush2.msra.mxu0 0.0
      %4245 = vmatprep.subr.mxu0 0.0
      %4246 = vmatpush2.msra.mxu0 0.0
      %4247 = vmatprep.subr.mxu0 0.0
      %4248 = vmatpush2.msra.mxu0 0.0
      %4249 = vmatprep.subr.mxu0 0.0
      %4250 = vmatpush2.msra.mxu0 0.0
      %4251 = vmatprep.subr.mxu0 0.0
      %4252 = vmatpush2.msra.mxu0 0.0
      %4253 = vmatprep.subr.mxu0 0.0
      %4254 = vmatpush2.msra.mxu0 0.0
      %4255 = vmatprep.subr.mxu0 0.0
      %4256 = vmatpush2.msra.mxu0 0.0
      %4257 = vmatprep.subr.mxu0 0.0
      %4258 = vmatpush2.msra.mxu0 0.0
      %4259 = vmatprep.subr.mxu0 0.0
      %4260 = vmatpush2.msra.mxu0 0.0
      %4261 = vmatprep.subr.mxu0 0.0
      %4262 = vmatpush2.msra.mxu0 0.0
      %4263 = vmatprep.subr.mxu0 0.0
      %4264 = vmatpush2.msra.mxu0 0.0
      %4265 = vmatprep.subr.mxu0 0.0
      %4266 = vmatpush2.msra.mxu0 0.0
      %4267 = vmatprep.subr.mxu0 0.0
      %4268 = vmatpush2.msra.mxu0 0.0
      %4269 = vmatprep.subr.mxu0 0.0
      %4270 = vmatpush2.msra.mxu0 0.0
      %4271 = vmatprep.mubr.f32.mxu0 0.0
      %4272 = vmatmul.mubr.f32.gmra.mxu0 %v4184
      %v4273 = vpop.f32.mrf.mxu0
      %v4274 = vadd.f32 1e-06, %v4273
      %v4275 = vpop.f32.mrf.mxu0
      %4276 = vmatprep.mubr.f32.mxu0 0.0
      %4277 = vmatmul.mubr.f32.gmra.mxu0 %v4187
      %v4278 = vpop.f32.mrf.mxu0
      %v4279 = vadd.f32 1e-06, %v4278
      %v4280 = vpop.f32.mrf.mxu0
      %4281 = vmatprep.mubr.f32.mxu0 0.0
      %4282 = vmatmul.mubr.f32.gmra.mxu0 %v4190
      %v4283 = vpop.f32.mrf.mxu0
      %v4284 = vadd.f32 1e-06, %v4283
      %v4285 = vpop.f32.mrf.mxu0
      %4286 = vmatprep.mubr.f32.mxu0 0.0
      %4287 = vmatmul.mubr.f32.gmra.mxu0 %v4193
      %v4288 = vpop.f32.mrf.mxu0
      %v4289 = vadd.f32 1e-06, %v4288
      %v4290 = vpop.f32.mrf.mxu0
      %4291 = vmatprep.mubr.f32.mxu0 0.0
      %4292 = vmatmul.mubr.f32.gmra.mxu0 %v4196
      %v4293 = vpop.f32.mrf.mxu0
      %v4294 = vadd.f32 1e-06, %v4293
      %v4295 = vpop.f32.mrf.mxu0
      %4296 = vmatprep.mubr.f32.mxu0 0.0
      %4297 = vmatmul.mubr.f32.gmra.mxu0 %v4199
      %v4298 = vpop.f32.mrf.mxu0
      %v4299 = vadd.f32 1e-06, %v4298
      %v4300 = vpop.f32.mrf.mxu0
      %4301 = vmatprep.mubr.f32.mxu0 0.0
      %4302 = vmatmul.mubr.f32.gmra.mxu0 %v4202
      %v4303 = vpop.f32.mrf.mxu0
      %v4304 = vadd.f32 1e-06, %v4303
      %v4305 = vpop.f32.mrf.mxu0
      %4306 = vmatprep.mubr.f32.mxu0 0.0
      %4307 = vmatmul.mubr.f32.gmra.mxu0 %v4205
      %v4308 = vpop.f32.mrf.mxu0
      %v4309 = vadd.f32 1e-06, %v4308
      %v4310 = vpop.f32.mrf.mxu0
      %4311 = vdwg.mxu0
      %v4312 = vrcp.pop %v4274
      %v4313 = vrcp.pop %v4279
      %v4314 = vrcp.pop %v4284
      %v4315 = vrcp.pop %v4289
      %v4316 = vrcp.pop %v4294
      %v4317 = vrcp.pop %v4299
      %v4318 = vrcp.pop %v4304
      %v4319 = vrcp.pop %v4309
      %v4320 = vmul.f32 %v4137, %v4312
      %v4321 = vmul.f32 %v4142, %v4313
      %v4322 = vmul.f32 %v4147, %v4314
      %v4323 = vmul.f32 %v4152, %v4315
      %v4324 = vmul.f32 %v4157, %v4316
      %v4325 = vmul.f32 %v4162, %v4317
      %v4326 = vmul.f32 %v4167, %v4318
      %v4327 = vmul.f32 %v4172, %v4319
      %4328 = vxpose.xlu0.b32.start [1/16] %v3852, 128
      %4329 = vxpose.xlu0.b32.cont [2/16] %v3853, 128
      %4330 = vxpose.xlu0.b32.cont [3/16] %v3854, 128
      %4331 = vxpose.xlu0.b32.cont [4/16] %v3855, 128
      %4332 = vxpose.xlu0.b32.cont [5/16] %v3856, 128
      %4333 = vxpose.xlu0.b32.cont [6/16] %v3857, 128
      %4334 = vxpose.xlu0.b32.cont [7/16] %v3858, 128
      %4335 = vxpose.xlu0.b32.cont [8/16] %v3859, 128
      %4336 = vxpose.xlu0.b32.cont [9/16] 0.0, 128
      %4337 = vxpose.xlu0.b32.cont [10/16] 0.0, 128
      %4338 = vxpose.xlu0.b32.cont [11/16] 0.0, 128
      %4339 = vxpose.xlu0.b32.cont [12/16] 0.0, 128
      %4340 = vxpose.xlu0.b32.cont [13/16] 0.0, 128
      %4341 = vxpose.xlu0.b32.cont [14/16] 0.0, 128
      %4342 = vxpose.xlu0.b32.cont [15/16] 0.0, 128
      %4343 = vxpose.xlu0.b32.end [16/16] 0.0, 128
      %v4344 = vpop.trf.xlu0
      %v4345 = vpop.trf.xlu0
      %v4346 = vpop.trf.xlu0
      %v4347 = vpop.trf.xlu0
      %v4348 = vpop.trf.xlu0
      %v4349 = vpop.trf.xlu0
      %v4350 = vpop.trf.xlu0
      %v4351 = vpop.trf.xlu0
      %v4352 = vpop.trf.xlu0
      %v4353 = vpop.trf.xlu0
      %v4354 = vpop.trf.xlu0
      %v4355 = vpop.trf.xlu0
      %v4356 = vpop.trf.xlu0
      %v4357 = vpop.trf.xlu0
      %v4358 = vpop.trf.xlu0
      %v4359 = vpop.trf.xlu0
      %4368 = vrot.lane.b32.xlu0 %v3662, 96
      %v4369 = vpop.permute.xlu0 %4368
      %4370 = vrot.lane.b32.xlu0 %v3667, 96
      %v4371 = vpop.permute.xlu0 %4370
      %4372 = vrot.lane.b32.xlu0 %v3672, 96
      %v4373 = vpop.permute.xlu0 %4372
      %4374 = vrot.lane.b32.xlu0 %v3677, 96
      %v4375 = vpop.permute.xlu0 %4374
      %4376 = vrot.lane.b32.xlu0 %v3682, 96
      %v4377 = vpop.permute.xlu0 %4376
      %4378 = vrot.lane.b32.xlu0 %v3687, 96
      %v4379 = vpop.permute.xlu0 %4378
      %4380 = vrot.lane.b32.xlu0 %v3692, 96
      %v4381 = vpop.permute.xlu0 %4380
      %4382 = vrot.lane.b32.xlu0 %v3697, 96
      %v4383 = vpop.permute.xlu0 %4382
      %v4393 = vsel %vm1252, %v4344, 0
      %v4396 = vsel %vm1252, %v4345, 0
      %v4399 = vsel %vm1252, %v4346, 0
      %v4402 = vsel %vm1252, %v4347, 0
      %4404 = vmatprep.subr.mxu0 0.0
      %4405 = vmatpush1.msra.mxu0 0.0
      %4406 = vmatprep.subr.mxu0 0.0
      %4407 = vmatpush1.msra.mxu0 0.0
      %4408 = vmatprep.subr.mxu0 0.0
      %4409 = vmatpush1.msra.mxu0 0.0
      %4410 = vmatprep.subr.mxu0 0.0
      %4411 = vmatpush1.msra.mxu0 0.0
      %4412 = vmatprep.subr.mxu0 0.0
      %4413 = vmatpush1.msra.mxu0 0.0
      %4414 = vmatprep.subr.mxu0 0.0
      %4415 = vmatpush1.msra.mxu0 0.0
      %4416 = vmatprep.subr.mxu0 0.0
      %4417 = vmatpush1.msra.mxu0 0.0
      %4418 = vmatprep.subr.mxu0 0.0
      %4419 = vmatpush1.msra.mxu0 0.0
      %4420 = vmatprep.subr.mxu0 0.0
      %4421 = vmatpush1.msra.mxu0 %v4383
      %4422 = vmatprep.subr.mxu0 0.0
      %4423 = vmatpush1.msra.mxu0 %v4381
      %4424 = vmatprep.subr.mxu0 0.0
      %4425 = vmatpush1.msra.mxu0 %v4379
      %4426 = vmatprep.subr.mxu0 0.0
      %4427 = vmatpush1.msra.mxu0 %v4377
      %4428 = vmatprep.subr.mxu0 0.0
      %4429 = vmatpush1.msra.mxu0 %v4375
      %4430 = vmatprep.subr.mxu0 0.0
      %4431 = vmatpush1.msra.mxu0 %v4373
      %4432 = vmatprep.subr.mxu0 0.0
      %4433 = vmatpush1.msra.mxu0 %v4371
      %4434 = vmatprep.subr.mxu0 0.0
      %4435 = vmatpush1.msra.mxu0 %v4369
      %4436 = vmatprep.subr.mxu0 0.0
      %4437 = vmatpush2.msra.mxu0 0.0
      %4438 = vmatprep.subr.mxu0 0.0
      %4439 = vmatpush2.msra.mxu0 0.0
      %4440 = vmatprep.subr.mxu0 0.0
      %4441 = vmatpush2.msra.mxu0 0.0
      %4442 = vmatprep.subr.mxu0 0.0
      %4443 = vmatpush2.msra.mxu0 0.0
      %4444 = vmatprep.subr.mxu0 0.0
      %4445 = vmatpush2.msra.mxu0 0.0
      %4446 = vmatprep.subr.mxu0 0.0
      %4447 = vmatpush2.msra.mxu0 0.0
      %4448 = vmatprep.subr.mxu0 0.0
      %4449 = vmatpush2.msra.mxu0 0.0
      %4450 = vmatprep.subr.mxu0 0.0
      %4451 = vmatpush2.msra.mxu0 0.0
      %4452 = vmatprep.subr.mxu0 0.0
      %4453 = vmatpush2.msra.mxu0 0.0
      %4454 = vmatprep.subr.mxu0 0.0
      %4455 = vmatpush2.msra.mxu0 0.0
      %4456 = vmatprep.subr.mxu0 0.0
      %4457 = vmatpush2.msra.mxu0 0.0
      %4458 = vmatprep.subr.mxu0 0.0
      %4459 = vmatpush2.msra.mxu0 0.0
      %4460 = vmatprep.subr.mxu0 0.0
      %4461 = vmatpush2.msra.mxu0 0.0
      %4462 = vmatprep.subr.mxu0 0.0
      %4463 = vmatpush2.msra.mxu0 0.0
      %4464 = vmatprep.subr.mxu0 0.0
      %4465 = vmatpush2.msra.mxu0 0.0
      %4466 = vmatprep.subr.mxu0 0.0
      %4467 = vmatpush2.msra.mxu0 0.0
      %4468 = vmatprep.mubr.f32.mxu0 0.0
      %4469 = vmatmul.mubr.f32.gmra.mxu0 %v4393
      %v4470 = vpop.f32.mrf.mxu0
      %v4471 = vadd.f32 0.0, %v4470
      %v4472 = vpop.f32.mrf.mxu0
      %4473 = vmatprep.mubr.f32.mxu0 0.0
      %4474 = vmatmul.mubr.f32.gmra.mxu0 %v4396
      %v4475 = vpop.f32.mrf.mxu0
      %v4476 = vadd.f32 0.0, %v4475
      %v4477 = vpop.f32.mrf.mxu0
      %4478 = vmatprep.mubr.f32.mxu0 0.0
      %4479 = vmatmul.mubr.f32.gmra.mxu0 %v4399
      %v4480 = vpop.f32.mrf.mxu0
      %v4481 = vadd.f32 0.0, %v4480
      %v4482 = vpop.f32.mrf.mxu0
      %4483 = vmatprep.mubr.f32.mxu0 0.0
      %4484 = vmatmul.mubr.f32.gmra.mxu0 %v4402
      %v4485 = vpop.f32.mrf.mxu0
      %v4486 = vadd.f32 0.0, %v4485
      %v4487 = vpop.f32.mrf.mxu0
      %4488 = vdwg.mxu0
      %v4489 = vmul.f32 %v4471, %v637
      %v4490 = vmul.f32 %v4476, %v638
      %v4491 = vmul.f32 %v4481, %v639
      %v4492 = vmul.f32 %v4486, %v640
      %v4493 = vsel %vm689, %v3852, 0.0
      %v4494 = vsel %vm689, %v3853, 0.0
      %v4495 = vadd.f32 %v4493, %v4494
      %v4496 = vsel %vm689, %v3854, 0.0
      %v4497 = vadd.f32 %v4495, %v4496
      %v4498 = vsel %vm689, %v3855, 0.0
      %v4499 = vadd.f32 %v4497, %v4498
      %v4500 = vsel %vm689, %v3856, 0.0
      %v4501 = vadd.f32 %v4499, %v4500
      %v4502 = vsel %vm689, %v3857, 0.0
      %v4503 = vadd.f32 %v4501, %v4502
      %v4504 = vsel %vm689, %v3858, 0.0
      %v4505 = vadd.f32 %v4503, %v4504
      %v4506 = vsel %vm689, %v3859, 0.0
      %v4507 = vadd.f32 %v4505, %v4506
      %v4508 = vrot.slane %v4507, 4
      %v4509 = vadd.f32 %v4507, %v4508
      %v4510 = vrot.slane %v4509, 2
      %v4511 = vadd.f32 %v4509, %v4510
      %v4512 = vrot.slane %v4511, 1
      %v4513 = vadd.f32 %v4511, %v4512
      %v4515 = vsel %vm689, %v3772, 0
      %v4518 = vsel %vm689, %v3773, 0
      %v4521 = vsel %vm689, %v3774, 0
      %v4524 = vsel %vm689, %v3775, 0
      %v4527 = vsel %vm689, %v3776, 0
      %v4530 = vsel %vm689, %v3777, 0
      %v4533 = vsel %vm689, %v3778, 0
      %v4536 = vsel %vm689, %v3779, 0
      %4538 = vmatprep.subr.mxu0 0.0
      %4539 = vmatpush1.msra.mxu0 0.0
      %4540 = vmatprep.subr.mxu0 0.0
      %4541 = vmatpush1.msra.mxu0 0.0
      %4542 = vmatprep.subr.mxu0 0.0
      %4543 = vmatpush1.msra.mxu0 0.0
      %4544 = vmatprep.subr.mxu0 0.0
      %4545 = vmatpush1.msra.mxu0 0.0
      %4546 = vmatprep.subr.mxu0 0.0
      %4547 = vmatpush1.msra.mxu0 0.0
      %4548 = vmatprep.subr.mxu0 0.0
      %4549 = vmatpush1.msra.mxu0 0.0
      %4550 = vmatprep.subr.mxu0 0.0
      %4551 = vmatpush1.msra.mxu0 0.0
      %4552 = vmatprep.subr.mxu0 0.0
      %4553 = vmatpush1.msra.mxu0 0.0
      %4554 = vmatprep.subr.mxu0 0.0
      %4555 = vmatpush1.msra.mxu0 0.0
      %4556 = vmatprep.subr.mxu0 0.0
      %4557 = vmatpush1.msra.mxu0 0.0
      %4558 = vmatprep.subr.mxu0 0.0
      %4559 = vmatpush1.msra.mxu0 0.0
      %4560 = vmatprep.subr.mxu0 0.0
      %4561 = vmatpush1.msra.mxu0 0.0
      %4562 = vmatprep.subr.mxu0 0.0
      %4563 = vmatpush1.msra.mxu0 %v4492
      %4564 = vmatprep.subr.mxu0 0.0
      %4565 = vmatpush1.msra.mxu0 %v4491
      %4566 = vmatprep.subr.mxu0 0.0
      %4567 = vmatpush1.msra.mxu0 %v4490
      %4568 = vmatprep.subr.mxu0 0.0
      %4569 = vmatpush1.msra.mxu0 %v4489
      %4570 = vmatprep.subr.mxu0 0.0
      %4571 = vmatpush2.msra.mxu0 0.0
      %4572 = vmatprep.subr.mxu0 0.0
      %4573 = vmatpush2.msra.mxu0 0.0
      %4574 = vmatprep.subr.mxu0 0.0
      %4575 = vmatpush2.msra.mxu0 0.0
      %4576 = vmatprep.subr.mxu0 0.0
      %4577 = vmatpush2.msra.mxu0 0.0
      %4578 = vmatprep.subr.mxu0 0.0
      %4579 = vmatpush2.msra.mxu0 0.0
      %4580 = vmatprep.subr.mxu0 0.0
      %4581 = vmatpush2.msra.mxu0 0.0
      %4582 = vmatprep.subr.mxu0 0.0
      %4583 = vmatpush2.msra.mxu0 0.0
      %4584 = vmatprep.subr.mxu0 0.0
      %4585 = vmatpush2.msra.mxu0 0.0
      %4586 = vmatprep.subr.mxu0 0.0
      %4587 = vmatpush2.msra.mxu0 0.0
      %4588 = vmatprep.subr.mxu0 0.0
      %4589 = vmatpush2.msra.mxu0 0.0
      %4590 = vmatprep.subr.mxu0 0.0
      %4591 = vmatpush2.msra.mxu0 0.0
      %4592 = vmatprep.subr.mxu0 0.0
      %4593 = vmatpush2.msra.mxu0 0.0
      %4594 = vmatprep.subr.mxu0 0.0
      %4595 = vmatpush2.msra.mxu0 0.0
      %4596 = vmatprep.subr.mxu0 0.0
      %4597 = vmatpush2.msra.mxu0 0.0
      %4598 = vmatprep.subr.mxu0 0.0
      %4599 = vmatpush2.msra.mxu0 0.0
      %4600 = vmatprep.subr.mxu0 0.0
      %4601 = vmatpush2.msra.mxu0 0.0
      %4602 = vmatprep.mubr.f32.mxu0 0.0
      %4603 = vmatmul.mubr.f32.gmra.mxu0 %v4515
      %v4604 = vpop.f32.mrf.mxu0
      %v4605 = vadd.f32 0.0, %v4604
      %v4606 = vpop.f32.mrf.mxu0
      %4607 = vmatprep.mubr.f32.mxu0 0.0
      %4608 = vmatmul.mubr.f32.gmra.mxu0 %v4518
      %v4609 = vpop.f32.mrf.mxu0
      %v4610 = vadd.f32 0.0, %v4609
      %v4611 = vpop.f32.mrf.mxu0
      %4612 = vmatprep.mubr.f32.mxu0 0.0
      %4613 = vmatmul.mubr.f32.gmra.mxu0 %v4521
      %v4614 = vpop.f32.mrf.mxu0
      %v4615 = vadd.f32 0.0, %v4614
      %v4616 = vpop.f32.mrf.mxu0
      %4617 = vmatprep.mubr.f32.mxu0 0.0
      %4618 = vmatmul.mubr.f32.gmra.mxu0 %v4524
      %v4619 = vpop.f32.mrf.mxu0
      %v4620 = vadd.f32 0.0, %v4619
      %v4621 = vpop.f32.mrf.mxu0
      %4622 = vmatprep.mubr.f32.mxu0 0.0
      %4623 = vmatmul.mubr.f32.gmra.mxu0 %v4527
      %v4624 = vpop.f32.mrf.mxu0
      %v4625 = vadd.f32 0.0, %v4624
      %v4626 = vpop.f32.mrf.mxu0
      %4627 = vmatprep.mubr.f32.mxu0 0.0
      %4628 = vmatmul.mubr.f32.gmra.mxu0 %v4530
      %v4629 = vpop.f32.mrf.mxu0
      %v4630 = vadd.f32 0.0, %v4629
      %v4631 = vpop.f32.mrf.mxu0
      %4632 = vmatprep.mubr.f32.mxu0 0.0
      %4633 = vmatmul.mubr.f32.gmra.mxu0 %v4533
      %v4634 = vpop.f32.mrf.mxu0
      %v4635 = vadd.f32 0.0, %v4634
      %v4636 = vpop.f32.mrf.mxu0
      %4637 = vmatprep.mubr.f32.mxu0 0.0
      %4638 = vmatmul.mubr.f32.gmra.mxu0 %v4536
      %v4639 = vpop.f32.mrf.mxu0
      %v4640 = vadd.f32 0.0, %v4639
      %v4641 = vpop.f32.mrf.mxu0
      %4642 = vdwg.mxu0
      %v4643 = vmul.f32 %v3772, %v4513
      %v4644 = vmul.f32 %v3773, %v4513
      %v4645 = vmul.f32 %v3774, %v4513
      %v4646 = vmul.f32 %v3775, %v4513
      %v4647 = vmul.f32 %v3776, %v4513
      %v4648 = vmul.f32 %v3777, %v4513
      %v4649 = vmul.f32 %v3778, %v4513
      %v4650 = vmul.f32 %v3779, %v4513
      %v4652 = vsel %vm689, %v4643, 0
      %v4655 = vsel %vm689, %v4644, 0
      %v4658 = vsel %vm689, %v4645, 0
      %v4661 = vsel %vm689, %v4646, 0
      %v4664 = vsel %vm689, %v4647, 0
      %v4667 = vsel %vm689, %v4648, 0
      %v4670 = vsel %vm689, %v4649, 0
      %v4673 = vsel %vm689, %v4650, 0
      %4675 = vmatprep.subr.mxu0 0.0
      %4676 = vmatpush1.msra.mxu0 0.0
      %4677 = vmatprep.subr.mxu0 0.0
      %4678 = vmatpush1.msra.mxu0 0.0
      %4679 = vmatprep.subr.mxu0 0.0
      %4680 = vmatpush1.msra.mxu0 0.0
      %4681 = vmatprep.subr.mxu0 0.0
      %4682 = vmatpush1.msra.mxu0 0.0
      %4683 = vmatprep.subr.mxu0 0.0
      %4684 = vmatpush1.msra.mxu0 0.0
      %4685 = vmatprep.subr.mxu0 0.0
      %4686 = vmatpush1.msra.mxu0 0.0
      %4687 = vmatprep.subr.mxu0 0.0
      %4688 = vmatpush1.msra.mxu0 0.0
      %4689 = vmatprep.subr.mxu0 0.0
      %4690 = vmatpush1.msra.mxu0 0.0
      %4691 = vmatprep.subr.mxu0 0.0
      %4692 = vmatpush1.msra.mxu0 0.0
      %4693 = vmatprep.subr.mxu0 0.0
      %4694 = vmatpush1.msra.mxu0 0.0
      %4695 = vmatprep.subr.mxu0 0.0
      %4696 = vmatpush1.msra.mxu0 0.0
      %4697 = vmatprep.subr.mxu0 0.0
      %4698 = vmatpush1.msra.mxu0 0.0
      %4699 = vmatprep.subr.mxu0 0.0
      %4700 = vmatpush1.msra.mxu0 %v640
      %4701 = vmatprep.subr.mxu0 0.0
      %4702 = vmatpush1.msra.mxu0 %v639
      %4703 = vmatprep.subr.mxu0 0.0
      %4704 = vmatpush1.msra.mxu0 %v638
      %4705 = vmatprep.subr.mxu0 0.0
      %4706 = vmatpush1.msra.mxu0 %v637
      %4707 = vmatprep.subr.mxu0 0.0
      %4708 = vmatpush2.msra.mxu0 0.0
      %4709 = vmatprep.subr.mxu0 0.0
      %4710 = vmatpush2.msra.mxu0 0.0
      %4711 = vmatprep.subr.mxu0 0.0
      %4712 = vmatpush2.msra.mxu0 0.0
      %4713 = vmatprep.subr.mxu0 0.0
      %4714 = vmatpush2.msra.mxu0 0.0
      %4715 = vmatprep.subr.mxu0 0.0
      %4716 = vmatpush2.msra.mxu0 0.0
      %4717 = vmatprep.subr.mxu0 0.0
      %4718 = vmatpush2.msra.mxu0 0.0
      %4719 = vmatprep.subr.mxu0 0.0
      %4720 = vmatpush2.msra.mxu0 0.0
      %4721 = vmatprep.subr.mxu0 0.0
      %4722 = vmatpush2.msra.mxu0 0.0
      %4723 = vmatprep.subr.mxu0 0.0
      %4724 = vmatpush2.msra.mxu0 0.0
      %4725 = vmatprep.subr.mxu0 0.0
      %4726 = vmatpush2.msra.mxu0 0.0
      %4727 = vmatprep.subr.mxu0 0.0
      %4728 = vmatpush2.msra.mxu0 0.0
      %4729 = vmatprep.subr.mxu0 0.0
      %4730 = vmatpush2.msra.mxu0 0.0
      %4731 = vmatprep.subr.mxu0 0.0
      %4732 = vmatpush2.msra.mxu0 0.0
      %4733 = vmatprep.subr.mxu0 0.0
      %4734 = vmatpush2.msra.mxu0 0.0
      %4735 = vmatprep.subr.mxu0 0.0
      %4736 = vmatpush2.msra.mxu0 0.0
      %4737 = vmatprep.subr.mxu0 0.0
      %4738 = vmatpush2.msra.mxu0 0.0
      %4739 = vmatprep.mubr.f32.mxu0 0.0
      %4740 = vmatmul.mubr.f32.gmra.mxu0 %v4652
      %v4741 = vpop.f32.mrf.mxu0
      %v4742 = vadd.f32 1e-06, %v4741
      %v4743 = vpop.f32.mrf.mxu0
      %4744 = vmatprep.mubr.f32.mxu0 0.0
      %4745 = vmatmul.mubr.f32.gmra.mxu0 %v4655
      %v4746 = vpop.f32.mrf.mxu0
      %v4747 = vadd.f32 1e-06, %v4746
      %v4748 = vpop.f32.mrf.mxu0
      %4749 = vmatprep.mubr.f32.mxu0 0.0
      %4750 = vmatmul.mubr.f32.gmra.mxu0 %v4658
      %v4751 = vpop.f32.mrf.mxu0
      %v4752 = vadd.f32 1e-06, %v4751
      %v4753 = vpop.f32.mrf.mxu0
      %4754 = vmatprep.mubr.f32.mxu0 0.0
      %4755 = vmatmul.mubr.f32.gmra.mxu0 %v4661
      %v4756 = vpop.f32.mrf.mxu0
      %v4757 = vadd.f32 1e-06, %v4756
      %v4758 = vpop.f32.mrf.mxu0
      %4759 = vmatprep.mubr.f32.mxu0 0.0
      %4760 = vmatmul.mubr.f32.gmra.mxu0 %v4664
      %v4761 = vpop.f32.mrf.mxu0
      %v4762 = vadd.f32 1e-06, %v4761
      %v4763 = vpop.f32.mrf.mxu0
      %4764 = vmatprep.mubr.f32.mxu0 0.0
      %4765 = vmatmul.mubr.f32.gmra.mxu0 %v4667
      %v4766 = vpop.f32.mrf.mxu0
      %v4767 = vadd.f32 1e-06, %v4766
      %v4768 = vpop.f32.mrf.mxu0
      %4769 = vmatprep.mubr.f32.mxu0 0.0
      %4770 = vmatmul.mubr.f32.gmra.mxu0 %v4670
      %v4771 = vpop.f32.mrf.mxu0
      %v4772 = vadd.f32 1e-06, %v4771
      %v4773 = vpop.f32.mrf.mxu0
      %4774 = vmatprep.mubr.f32.mxu0 0.0
      %4775 = vmatmul.mubr.f32.gmra.mxu0 %v4673
      %v4776 = vpop.f32.mrf.mxu0
      %v4777 = vadd.f32 1e-06, %v4776
      %v4778 = vpop.f32.mrf.mxu0
      %4779 = vdwg.mxu0
      %v4780 = vrcp.pop %v4742
      %v4781 = vrcp.pop %v4747
      %v4782 = vrcp.pop %v4752
      %v4783 = vrcp.pop %v4757
      %v4784 = vrcp.pop %v4762
      %v4785 = vrcp.pop %v4767
      %v4786 = vrcp.pop %v4772
      %v4787 = vrcp.pop %v4777
      %v4788 = vmul.f32 %v4605, %v4780
      %v4789 = vmul.f32 %v4610, %v4781
      %v4790 = vmul.f32 %v4615, %v4782
      %v4791 = vmul.f32 %v4620, %v4783
      %v4792 = vmul.f32 %v4625, %v4784
      %v4793 = vmul.f32 %v4630, %v4785
      %v4794 = vmul.f32 %v4635, %v4786
      %v4795 = vmul.f32 %v4640, %v4787
      %v4797 = vsel %vm689, %v4320, 0
      %v4800 = vsel %vm689, %v4321, 0
      %v4803 = vsel %vm689, %v4322, 0
      %v4806 = vsel %vm689, %v4323, 0
      %v4809 = vsel %vm689, %v4324, 0
      %v4812 = vsel %vm689, %v4325, 0
      %v4815 = vsel %vm689, %v4326, 0
      %v4818 = vsel %vm689, %v4327, 0
      %v4821 = vsel %vm689, %v4788, 0
      %v4824 = vsel %vm689, %v4789, 0
      %v4827 = vsel %vm689, %v4790, 0
      %v4830 = vsel %vm689, %v4791, 0
      %v4833 = vsel %vm689, %v4792, 0
      %v4836 = vsel %vm689, %v4793, 0
      %v4839 = vsel %vm689, %v4794, 0
      %v4842 = vsel %vm689, %v4795, 0
      %4844 = vmatprep.subr.mxu0 0.0
      %4845 = vmatpush1.msra.mxu0 0.0
      %4846 = vmatprep.subr.mxu0 0.0
      %4847 = vmatpush1.msra.mxu0 0.0
      %4848 = vmatprep.subr.mxu0 0.0
      %4849 = vmatpush1.msra.mxu0 0.0
      %4850 = vmatprep.subr.mxu0 0.0
      %4851 = vmatpush1.msra.mxu0 0.0
      %4852 = vmatprep.subr.mxu0 0.0
      %4853 = vmatpush1.msra.mxu0 0.0
      %4854 = vmatprep.subr.mxu0 0.0
      %4855 = vmatpush1.msra.mxu0 0.0
      %4856 = vmatprep.subr.mxu0 0.0
      %4857 = vmatpush1.msra.mxu0 0.0
      %4858 = vmatprep.subr.mxu0 0.0
      %4859 = vmatpush1.msra.mxu0 0.0
      %4860 = vmatprep.subr.mxu0 0.0
      %4861 = vmatpush1.msra.mxu0 0.0
      %4862 = vmatprep.subr.mxu0 0.0
      %4863 = vmatpush1.msra.mxu0 0.0
      %4864 = vmatprep.subr.mxu0 0.0
      %4865 = vmatpush1.msra.mxu0 0.0
      %4866 = vmatprep.subr.mxu0 0.0
      %4867 = vmatpush1.msra.mxu0 0.0
      %4868 = vmatprep.subr.mxu0 0.0
      %4869 = vmatpush1.msra.mxu0 %v3335
      %4870 = vmatprep.subr.mxu0 0.0
      %4871 = vmatpush1.msra.mxu0 %v3334
      %4872 = vmatprep.subr.mxu0 0.0
      %4873 = vmatpush1.msra.mxu0 %v3333
      %4874 = vmatprep.subr.mxu0 0.0
      %4875 = vmatpush1.msra.mxu0 %v3332
      %4876 = vmatprep.subr.mxu0 0.0
      %4877 = vmatpush2.msra.mxu0 0.0
      %4878 = vmatprep.subr.mxu0 0.0
      %4879 = vmatpush2.msra.mxu0 0.0
      %4880 = vmatprep.subr.mxu0 0.0
      %4881 = vmatpush2.msra.mxu0 0.0
      %4882 = vmatprep.subr.mxu0 0.0
      %4883 = vmatpush2.msra.mxu0 0.0
      %4884 = vmatprep.subr.mxu0 0.0
      %4885 = vmatpush2.msra.mxu0 0.0
      %4886 = vmatprep.subr.mxu0 0.0
      %4887 = vmatpush2.msra.mxu0 0.0
      %4888 = vmatprep.subr.mxu0 0.0
      %4889 = vmatpush2.msra.mxu0 0.0
      %4890 = vmatprep.subr.mxu0 0.0
      %4891 = vmatpush2.msra.mxu0 0.0
      %4892 = vmatprep.subr.mxu0 0.0
      %4893 = vmatpush2.msra.mxu0 0.0
      %4894 = vmatprep.subr.mxu0 0.0
      %4895 = vmatpush2.msra.mxu0 0.0
      %4896 = vmatprep.subr.mxu0 0.0
      %4897 = vmatpush2.msra.mxu0 0.0
      %4898 = vmatprep.subr.mxu0 0.0
      %4899 = vmatpush2.msra.mxu0 0.0
      %4900 = vmatprep.subr.mxu0 0.0
      %4901 = vmatpush2.msra.mxu0 0.0
      %4902 = vmatprep.subr.mxu0 0.0
      %4903 = vmatpush2.msra.mxu0 0.0
      %4904 = vmatprep.subr.mxu0 0.0
      %4905 = vmatpush2.msra.mxu0 0.0
      %4906 = vmatprep.subr.mxu0 0.0
      %4907 = vmatpush2.msra.mxu0 0.0
      %4908 = vmatprep.mubr.f32.mxu0 0.0
      %4909 = vmatmul.mubr.f32.gmra.mxu0 %v4797
      %v4910 = vpop.f32.mrf.mxu0
      %v4911 = vadd.f32 0.0, %v4910
      %v4912 = vpop.f32.mrf.mxu0
      %4913 = vmatprep.mubr.f32.mxu0 0.0
      %4914 = vmatmul.mubr.f32.gmra.mxu0 %v4800
      %v4915 = vpop.f32.mrf.mxu0
      %v4916 = vadd.f32 0.0, %v4915
      %v4917 = vpop.f32.mrf.mxu0
      %4918 = vmatprep.mubr.f32.mxu0 0.0
      %4919 = vmatmul.mubr.f32.gmra.mxu0 %v4803
      %v4920 = vpop.f32.mrf.mxu0
      %v4921 = vadd.f32 0.0, %v4920
      %v4922 = vpop.f32.mrf.mxu0
      %4923 = vmatprep.mubr.f32.mxu0 0.0
      %4924 = vmatmul.mubr.f32.gmra.mxu0 %v4806
      %v4925 = vpop.f32.mrf.mxu0
      %v4926 = vadd.f32 0.0, %v4925
      %v4927 = vpop.f32.mrf.mxu0
      %4928 = vmatprep.mubr.f32.mxu0 0.0
      %4929 = vmatmul.mubr.f32.gmra.mxu0 %v4809
      %v4930 = vpop.f32.mrf.mxu0
      %v4931 = vadd.f32 0.0, %v4930
      %v4932 = vpop.f32.mrf.mxu0
      %4933 = vmatprep.mubr.f32.mxu0 0.0
      %4934 = vmatmul.mubr.f32.gmra.mxu0 %v4812
      %v4935 = vpop.f32.mrf.mxu0
      %v4936 = vadd.f32 0.0, %v4935
      %v4937 = vpop.f32.mrf.mxu0
      %4938 = vmatprep.mubr.f32.mxu0 0.0
      %4939 = vmatmul.mubr.f32.gmra.mxu0 %v4815
      %v4940 = vpop.f32.mrf.mxu0
      %v4941 = vadd.f32 0.0, %v4940
      %v4942 = vpop.f32.mrf.mxu0
      %4943 = vmatprep.mubr.f32.mxu0 0.0
      %4944 = vmatmul.mubr.f32.gmra.mxu0 %v4818
      %v4945 = vpop.f32.mrf.mxu0
      %v4946 = vadd.f32 0.0, %v4945
      %v4947 = vpop.f32.mrf.mxu0
      %4948 = vmatprep.mubr.f32.mxu0 0.0
      %4949 = vmatmul.mubr.f32.gmra.mxu0 %v4821
      %v4950 = vpop.f32.mrf.mxu0
      %v4951 = vadd.f32 0.0, %v4950
      %v4952 = vpop.f32.mrf.mxu0
      %4953 = vmatprep.mubr.f32.mxu0 0.0
      %4954 = vmatmul.mubr.f32.gmra.mxu0 %v4824
      %v4955 = vpop.f32.mrf.mxu0
      %v4956 = vadd.f32 0.0, %v4955
      %v4957 = vpop.f32.mrf.mxu0
      %4958 = vmatprep.mubr.f32.mxu0 0.0
      %4959 = vmatmul.mubr.f32.gmra.mxu0 %v4827
      %v4960 = vpop.f32.mrf.mxu0
      %v4961 = vadd.f32 0.0, %v4960
      %v4962 = vpop.f32.mrf.mxu0
      %4963 = vmatprep.mubr.f32.mxu0 0.0
      %4964 = vmatmul.mubr.f32.gmra.mxu0 %v4830
      %v4965 = vpop.f32.mrf.mxu0
      %v4966 = vadd.f32 0.0, %v4965
      %v4967 = vpop.f32.mrf.mxu0
      %4968 = vmatprep.mubr.f32.mxu0 0.0
      %4969 = vmatmul.mubr.f32.gmra.mxu0 %v4833
      %v4970 = vpop.f32.mrf.mxu0
      %v4971 = vadd.f32 0.0, %v4970
      %v4972 = vpop.f32.mrf.mxu0
      %4973 = vmatprep.mubr.f32.mxu0 0.0
      %4974 = vmatmul.mubr.f32.gmra.mxu0 %v4836
      %v4975 = vpop.f32.mrf.mxu0
      %v4976 = vadd.f32 0.0, %v4975
      %v4977 = vpop.f32.mrf.mxu0
      %4978 = vmatprep.mubr.f32.mxu0 0.0
      %4979 = vmatmul.mubr.f32.gmra.mxu0 %v4839
      %v4980 = vpop.f32.mrf.mxu0
      %v4981 = vadd.f32 0.0, %v4980
      %v4982 = vpop.f32.mrf.mxu0
      %4983 = vmatprep.mubr.f32.mxu0 0.0
      %4984 = vmatmul.mubr.f32.gmra.mxu0 %v4842
      %v4985 = vpop.f32.mrf.mxu0
      %v4986 = vadd.f32 0.0, %v4985
      %v4987 = vpop.f32.mrf.mxu0
      %4988 = vdwg.mxu0
      %v4989 = vsel %vm689, %v4911, 0.0
      %4990 = vadd.xlane.f32.xlu0 %v4989
      %v4991 = vpop.xlane.xlu0 %4990
      %v4992 = vsel %vm689, %v4916, 0.0
      %4993 = vadd.xlane.f32.xlu0 %v4992
      %v4994 = vpop.xlane.xlu0 %4993
      %v4995 = vsel %vm689, %v4921, 0.0
      %4996 = vadd.xlane.f32.xlu0 %v4995
      %v4997 = vpop.xlane.xlu0 %4996
      %v4998 = vsel %vm689, %v4926, 0.0
      %4999 = vadd.xlane.f32.xlu0 %v4998
      %v5000 = vpop.xlane.xlu0 %4999
      %v5001 = vsel %vm689, %v4931, 0.0
      %5002 = vadd.xlane.f32.xlu0 %v5001
      %v5003 = vpop.xlane.xlu0 %5002
      %v5004 = vsel %vm689, %v4936, 0.0
      %5005 = vadd.xlane.f32.xlu0 %v5004
      %v5006 = vpop.xlane.xlu0 %5005
      %v5007 = vsel %vm689, %v4941, 0.0
      %5008 = vadd.xlane.f32.xlu0 %v5007
      %v5009 = vpop.xlane.xlu0 %5008
      %v5010 = vsel %vm689, %v4946, 0.0
      %5011 = vadd.xlane.f32.xlu0 %v5010
      %v5012 = vpop.xlane.xlu0 %5011
      %v5013 = vsel %vm689, %v4951, 0.0
      %5014 = vadd.xlane.f32.xlu0 %v5013
      %v5015 = vpop.xlane.xlu0 %5014
      %v5016 = vsel %vm689, %v4956, 0.0
      %5017 = vadd.xlane.f32.xlu0 %v5016
      %v5018 = vpop.xlane.xlu0 %5017
      %v5019 = vsel %vm689, %v4961, 0.0
      %5020 = vadd.xlane.f32.xlu0 %v5019
      %v5021 = vpop.xlane.xlu0 %5020
      %v5022 = vsel %vm689, %v4966, 0.0
      %5023 = vadd.xlane.f32.xlu0 %v5022
      %v5024 = vpop.xlane.xlu0 %5023
      %v5025 = vsel %vm689, %v4971, 0.0
      %5026 = vadd.xlane.f32.xlu0 %v5025
      %v5027 = vpop.xlane.xlu0 %5026
      %v5028 = vsel %vm689, %v4976, 0.0
      %5029 = vadd.xlane.f32.xlu0 %v5028
      %v5030 = vpop.xlane.xlu0 %5029
      %v5031 = vsel %vm689, %v4981, 0.0
      %5032 = vadd.xlane.f32.xlu0 %v5031
      %v5033 = vpop.xlane.xlu0 %5032
      %v5034 = vsel %vm689, %v4986, 0.0
      %5035 = vadd.xlane.f32.xlu0 %v5034
      %v5036 = vpop.xlane.xlu0 %5035
      %v5037 = vmul.f32 %v4991, %v2366
      %v5038 = vmul.f32 %v4994, %v2366
      %v5039 = vmul.f32 %v4997, %v2366
      %v5040 = vmul.f32 %v5000, %v2366
      %v5041 = vmul.f32 %v5003, %v2366
      %v5042 = vmul.f32 %v5006, %v2366
      %v5043 = vmul.f32 %v5009, %v2366
      %v5044 = vmul.f32 %v5012, %v2366
      %v5045 = vmul.f32 %v5015, %v2366
      %v5046 = vmul.f32 %v5018, %v2366
      %v5047 = vmul.f32 %v5021, %v2366
      %v5048 = vmul.f32 %v5024, %v2366
      %v5049 = vmul.f32 %v5027, %v2366
      %v5050 = vmul.f32 %v5030, %v2366
      %v5051 = vmul.f32 %v5033, %v2366
      %v5052 = vmul.f32 %v5036, %v2366
      %v5053 = vsub.f32 %v4911, %v5037
      %v5054 = vsub.f32 %v4916, %v5038
      %v5055 = vsub.f32 %v4921, %v5039
      %v5056 = vsub.f32 %v4926, %v5040
      %v5057 = vsub.f32 %v4931, %v5041
      %v5058 = vsub.f32 %v4936, %v5042
      %v5059 = vsub.f32 %v4941, %v5043
      %v5060 = vsub.f32 %v4946, %v5044
      %v5061 = vsub.f32 %v4951, %v5045
      %v5062 = vsub.f32 %v4956, %v5046
      %v5063 = vsub.f32 %v4961, %v5047
      %v5064 = vsub.f32 %v4966, %v5048
      %v5065 = vsub.f32 %v4971, %v5049
      %v5066 = vsub.f32 %v4976, %v5050
      %v5067 = vsub.f32 %v4981, %v5051
      %v5068 = vsub.f32 %v4986, %v5052
      %v5069 = vmul.f32 %v5053, %v5053
      %v5070 = vmul.f32 %v5054, %v5054
      %v5071 = vmul.f32 %v5055, %v5055
      %v5072 = vmul.f32 %v5056, %v5056
      %v5073 = vmul.f32 %v5057, %v5057
      %v5074 = vmul.f32 %v5058, %v5058
      %v5075 = vmul.f32 %v5059, %v5059
      %v5076 = vmul.f32 %v5060, %v5060
      %v5077 = vmul.f32 %v5061, %v5061
      %v5078 = vmul.f32 %v5062, %v5062
      %v5079 = vmul.f32 %v5063, %v5063
      %v5080 = vmul.f32 %v5064, %v5064
      %v5081 = vmul.f32 %v5065, %v5065
      %v5082 = vmul.f32 %v5066, %v5066
      %v5083 = vmul.f32 %v5067, %v5067
      %v5084 = vmul.f32 %v5068, %v5068
      %v5085 = vsel %vm689, %v5069, 0.0
      %5086 = vadd.xlane.f32.xlu0 %v5085
      %v5087 = vpop.xlane.xlu0 %5086
      %v5088 = vsel %vm689, %v5070, 0.0
      %5089 = vadd.xlane.f32.xlu0 %v5088
      %v5090 = vpop.xlane.xlu0 %5089
      %v5091 = vsel %vm689, %v5071, 0.0
      %5092 = vadd.xlane.f32.xlu0 %v5091
      %v5093 = vpop.xlane.xlu0 %5092
      %v5094 = vsel %vm689, %v5072, 0.0
      %5095 = vadd.xlane.f32.xlu0 %v5094
      %v5096 = vpop.xlane.xlu0 %5095
      %v5097 = vsel %vm689, %v5073, 0.0
      %5098 = vadd.xlane.f32.xlu0 %v5097
      %v5099 = vpop.xlane.xlu0 %5098
      %v5100 = vsel %vm689, %v5074, 0.0
      %5101 = vadd.xlane.f32.xlu0 %v5100
      %v5102 = vpop.xlane.xlu0 %5101
      %v5103 = vsel %vm689, %v5075, 0.0
      %5104 = vadd.xlane.f32.xlu0 %v5103
      %v5105 = vpop.xlane.xlu0 %5104
      %v5106 = vsel %vm689, %v5076, 0.0
      %5107 = vadd.xlane.f32.xlu0 %v5106
      %v5108 = vpop.xlane.xlu0 %5107
      %v5109 = vsel %vm689, %v5077, 0.0
      %5110 = vadd.xlane.f32.xlu0 %v5109
      %v5111 = vpop.xlane.xlu0 %5110
      %v5112 = vsel %vm689, %v5078, 0.0
      %5113 = vadd.xlane.f32.xlu0 %v5112
      %v5114 = vpop.xlane.xlu0 %5113
      %v5115 = vsel %vm689, %v5079, 0.0
      %5116 = vadd.xlane.f32.xlu0 %v5115
      %v5117 = vpop.xlane.xlu0 %5116
      %v5118 = vsel %vm689, %v5080, 0.0
      %5119 = vadd.xlane.f32.xlu0 %v5118
      %v5120 = vpop.xlane.xlu0 %5119
      %v5121 = vsel %vm689, %v5081, 0.0
      %5122 = vadd.xlane.f32.xlu0 %v5121
      %v5123 = vpop.xlane.xlu0 %5122
      %v5124 = vsel %vm689, %v5082, 0.0
      %5125 = vadd.xlane.f32.xlu0 %v5124
      %v5126 = vpop.xlane.xlu0 %5125
      %v5127 = vsel %vm689, %v5083, 0.0
      %5128 = vadd.xlane.f32.xlu0 %v5127
      %v5129 = vpop.xlane.xlu0 %5128
      %v5130 = vsel %vm689, %v5084, 0.0
      %5131 = vadd.xlane.f32.xlu0 %v5130
      %v5132 = vpop.xlane.xlu0 %5131
      %v5133 = vmul.f32 %v5087, %v2366
      %v5134 = vmul.f32 %v5090, %v2366
      %v5135 = vmul.f32 %v5093, %v2366
      %v5136 = vmul.f32 %v5096, %v2366
      %v5137 = vmul.f32 %v5099, %v2366
      %v5138 = vmul.f32 %v5102, %v2366
      %v5139 = vmul.f32 %v5105, %v2366
      %v5140 = vmul.f32 %v5108, %v2366
      %v5141 = vmul.f32 %v5111, %v2366
      %v5142 = vmul.f32 %v5114, %v2366
      %v5143 = vmul.f32 %v5117, %v2366
      %v5144 = vmul.f32 %v5120, %v2366
      %v5145 = vmul.f32 %v5123, %v2366
      %v5146 = vmul.f32 %v5126, %v2366
      %v5147 = vmul.f32 %v5129, %v2366
      %v5148 = vmul.f32 %v5132, %v2366
      %v5149 = vadd.f32 %v5133, 1e-05
      %v5150 = vadd.f32 %v5134, 1e-05
      %v5151 = vadd.f32 %v5135, 1e-05
      %v5152 = vadd.f32 %v5136, 1e-05
      %v5153 = vadd.f32 %v5137, 1e-05
      %v5154 = vadd.f32 %v5138, 1e-05
      %v5155 = vadd.f32 %v5139, 1e-05
      %v5156 = vadd.f32 %v5140, 1e-05
      %v5157 = vadd.f32 %v5141, 1e-05
      %v5158 = vadd.f32 %v5142, 1e-05
      %v5159 = vadd.f32 %v5143, 1e-05
      %v5160 = vadd.f32 %v5144, 1e-05
      %v5161 = vadd.f32 %v5145, 1e-05
      %v5162 = vadd.f32 %v5146, 1e-05
      %v5163 = vadd.f32 %v5147, 1e-05
      %v5164 = vadd.f32 %v5148, 1e-05
      %v5165 = vrsqrt.pop %v5149
      %v5166 = vrsqrt.pop %v5150
      %v5167 = vrsqrt.pop %v5151
      %v5168 = vrsqrt.pop %v5152
      %v5169 = vrsqrt.pop %v5153
      %v5170 = vrsqrt.pop %v5154
      %v5171 = vrsqrt.pop %v5155
      %v5172 = vrsqrt.pop %v5156
      %v5173 = vrsqrt.pop %v5157
      %v5174 = vrsqrt.pop %v5158
      %v5175 = vrsqrt.pop %v5159
      %v5176 = vrsqrt.pop %v5160
      %v5177 = vrsqrt.pop %v5161
      %v5178 = vrsqrt.pop %v5162
      %v5179 = vrsqrt.pop %v5163
      %v5180 = vrsqrt.pop %v5164
      %v5181 = vmul.f32 %v5053, %v5165
      %v5182 = vmul.f32 %v5054, %v5166
      %v5183 = vmul.f32 %v5055, %v5167
      %v5184 = vmul.f32 %v5056, %v5168
      %v5185 = vmul.f32 %v5057, %v5169
      %v5186 = vmul.f32 %v5058, %v5170
      %v5187 = vmul.f32 %v5059, %v5171
      %v5188 = vmul.f32 %v5060, %v5172
      %v5189 = vmul.f32 %v5061, %v5173
      %v5190 = vmul.f32 %v5062, %v5174
      %v5191 = vmul.f32 %v5063, %v5175
      %v5192 = vmul.f32 %v5064, %v5176
      %v5193 = vmul.f32 %v5065, %v5177
      %v5194 = vmul.f32 %v5066, %v5178
      %v5195 = vmul.f32 %v5067, %v5179
      %v5196 = vmul.f32 %v5068, %v5180
      %v5198 = vlaneseq
      %v5199 = vshrl.u32 %v5198, 7
      %v5200 = vsub.s32 0, %v5199
      %v5201 = vrot.slane %v3337, %v5200
      %v5203 = vmul.f32 %v5181, %v5201
      %v5204 = vmul.f32 %v5182, %v5201
      %v5205 = vmul.f32 %v5183, %v5201
      %v5206 = vmul.f32 %v5184, %v5201
      %v5207 = vmul.f32 %v5185, %v5201
      %v5208 = vmul.f32 %v5186, %v5201
      %v5209 = vmul.f32 %v5187, %v5201
      %v5210 = vmul.f32 %v5188, %v5201
      %v5211 = vmul.f32 %v5189, %v5201
      %v5212 = vmul.f32 %v5190, %v5201
      %v5213 = vmul.f32 %v5191, %v5201
      %v5214 = vmul.f32 %v5192, %v5201
      %v5215 = vmul.f32 %v5193, %v5201
      %v5216 = vmul.f32 %v5194, %v5201
      %v5217 = vmul.f32 %v5195, %v5201
      %v5218 = vmul.f32 %v5196, %v5201
      %v5220 = vlaneseq
      %v5221 = vshrl.u32 %v5220, 7
      %v5222 = vsub.s32 0, %v5221
      %v5223 = vrot.slane %v3339, %v5222
      %v5225 = vadd.f32 %v5203, %v5223
      %v5226 = vadd.f32 %v5204, %v5223
      %v5227 = vadd.f32 %v5205, %v5223
      %v5228 = vadd.f32 %v5206, %v5223
      %v5229 = vadd.f32 %v5207, %v5223
      %v5230 = vadd.f32 %v5208, %v5223
      %v5231 = vadd.f32 %v5209, %v5223
      %v5232 = vadd.f32 %v5210, %v5223
      %v5233 = vadd.f32 %v5211, %v5223
      %v5234 = vadd.f32 %v5212, %v5223
      %v5235 = vadd.f32 %v5213, %v5223
      %v5236 = vadd.f32 %v5214, %v5223
      %v5237 = vadd.f32 %v5215, %v5223
      %v5238 = vadd.f32 %v5216, %v5223
      %v5239 = vadd.f32 %v5217, %v5223
      %v5240 = vadd.f32 %v5218, %v5223
      %5257 = vrot.lane.b32.xlu0 %v5225, 32
      %v5258 = vpop.permute.xlu0 %5257
      %5259 = vrot.lane.b32.xlu0 %v5226, 32
      %v5260 = vpop.permute.xlu0 %5259
      %5261 = vrot.lane.b32.xlu0 %v5227, 32
      %v5262 = vpop.permute.xlu0 %5261
      %5263 = vrot.lane.b32.xlu0 %v5228, 32
      %v5264 = vpop.permute.xlu0 %5263
      %5265 = vrot.lane.b32.xlu0 %v5229, 32
      %v5266 = vpop.permute.xlu0 %5265
      %5267 = vrot.lane.b32.xlu0 %v5230, 32
      %v5268 = vpop.permute.xlu0 %5267
      %5269 = vrot.lane.b32.xlu0 %v5231, 32
      %v5270 = vpop.permute.xlu0 %5269
      %5271 = vrot.lane.b32.xlu0 %v5232, 32
      %v5272 = vpop.permute.xlu0 %5271
      %5273 = vrot.lane.b32.xlu0 %v5233, 32
      %v5274 = vpop.permute.xlu0 %5273
      %5275 = vrot.lane.b32.xlu0 %v5234, 32
      %v5276 = vpop.permute.xlu0 %5275
      %5277 = vrot.lane.b32.xlu0 %v5235, 32
      %v5278 = vpop.permute.xlu0 %5277
      %5279 = vrot.lane.b32.xlu0 %v5236, 32
      %v5280 = vpop.permute.xlu0 %5279
      %5281 = vrot.lane.b32.xlu0 %v5237, 32
      %v5282 = vpop.permute.xlu0 %5281
      %5283 = vrot.lane.b32.xlu0 %v5238, 32
      %v5284 = vpop.permute.xlu0 %5283
      %5285 = vrot.lane.b32.xlu0 %v5239, 32
      %v5286 = vpop.permute.xlu0 %5285
      %5287 = vrot.lane.b32.xlu0 %v5240, 32
      %v5288 = vpop.permute.xlu0 %5287
      %v5305 = vsel %vm689, %v3305, %v5258
      %v5306 = vsel %vm689, %v3306, %v5260
      %v5307 = vsel %vm689, %v3307, %v5262
      %v5308 = vsel %vm689, %v3308, %v5264
      %v5309 = vsel %vm689, %v3309, %v5266
      %v5310 = vsel %vm689, %v3310, %v5268
      %v5311 = vsel %vm689, %v3311, %v5270
      %v5312 = vsel %vm689, %v3312, %v5272
      %v5313 = vsel %vm689, %v3313, %v5274
      %v5314 = vsel %vm689, %v3314, %v5276
      %v5315 = vsel %vm689, %v3315, %v5278
      %v5316 = vsel %vm689, %v3316, %v5280
      %v5317 = vsel %vm689, %v3317, %v5282
      %v5318 = vsel %vm689, %v3318, %v5284
      %v5319 = vsel %vm689, %v3319, %v5286
      %v5320 = vsel %vm689, %v3320, %v5288
      %v5322 = vsel %vm1252, %v5305, 0
      %v5325 = vsel %vm1252, %v5306, 0
      %v5328 = vsel %vm1252, %v5307, 0
      %v5331 = vsel %vm1252, %v5308, 0
      %v5334 = vsel %vm1252, %v5309, 0
      %v5337 = vsel %vm1252, %v5310, 0
      %v5340 = vsel %vm1252, %v5311, 0
      %v5343 = vsel %vm1252, %v5312, 0
      %v5346 = vsel %vm1252, %v5313, 0
      %v5349 = vsel %vm1252, %v5314, 0
      %v5352 = vsel %vm1252, %v5315, 0
      %v5355 = vsel %vm1252, %v5316, 0
      %v5358 = vsel %vm1252, %v5317, 0
      %v5361 = vsel %vm1252, %v5318, 0
      %v5364 = vsel %vm1252, %v5319, 0
      %v5367 = vsel %vm1252, %v5320, 0
      %5369 = vmatprep.subr.mxu0 0.0
      %5370 = vmatpush1.msra.mxu0 0.0
      %5371 = vmatprep.subr.mxu0 0.0
      %5372 = vmatpush1.msra.mxu0 0.0
      %5373 = vmatprep.subr.mxu0 0.0
      %5374 = vmatpush1.msra.mxu0 0.0
      %5375 = vmatprep.subr.mxu0 0.0
      %5376 = vmatpush1.msra.mxu0 0.0
      %5377 = vmatprep.subr.mxu0 0.0
      %5378 = vmatpush1.msra.mxu0 0.0
      %5379 = vmatprep.subr.mxu0 0.0
      %5380 = vmatpush1.msra.mxu0 0.0
      %5381 = vmatprep.subr.mxu0 0.0
      %5382 = vmatpush1.msra.mxu0 0.0
      %5383 = vmatprep.subr.mxu0 0.0
      %5384 = vmatpush1.msra.mxu0 0.0
      %5385 = vmatprep.subr.mxu0 0.0
      %5386 = vmatpush1.msra.mxu0 %v3348
      %5387 = vmatprep.subr.mxu0 0.0
      %5388 = vmatpush1.msra.mxu0 %v3347
      %5389 = vmatprep.subr.mxu0 0.0
      %5390 = vmatpush1.msra.mxu0 %v3346
      %5391 = vmatprep.subr.mxu0 0.0
      %5392 = vmatpush1.msra.mxu0 %v3345
      %5393 = vmatprep.subr.mxu0 0.0
      %5394 = vmatpush1.msra.mxu0 %v3344
      %5395 = vmatprep.subr.mxu0 0.0
      %5396 = vmatpush1.msra.mxu0 %v3343
      %5397 = vmatprep.subr.mxu0 0.0
      %5398 = vmatpush1.msra.mxu0 %v3342
      %5399 = vmatprep.subr.mxu0 0.0
      %5400 = vmatpush1.msra.mxu0 %v3341
      %5401 = vmatprep.subr.mxu0 0.0
      %5402 = vmatpush2.msra.mxu0 0.0
      %5403 = vmatprep.subr.mxu0 0.0
      %5404 = vmatpush2.msra.mxu0 0.0
      %5405 = vmatprep.subr.mxu0 0.0
      %5406 = vmatpush2.msra.mxu0 0.0
      %5407 = vmatprep.subr.mxu0 0.0
      %5408 = vmatpush2.msra.mxu0 0.0
      %5409 = vmatprep.subr.mxu0 0.0
      %5410 = vmatpush2.msra.mxu0 0.0
      %5411 = vmatprep.subr.mxu0 0.0
      %5412 = vmatpush2.msra.mxu0 0.0
      %5413 = vmatprep.subr.mxu0 0.0
      %5414 = vmatpush2.msra.mxu0 0.0
      %5415 = vmatprep.subr.mxu0 0.0
      %5416 = vmatpush2.msra.mxu0 0.0
      %5417 = vmatprep.subr.mxu0 0.0
      %5418 = vmatpush2.msra.mxu0 0.0
      %5419 = vmatprep.subr.mxu0 0.0
      %5420 = vmatpush2.msra.mxu0 0.0
      %5421 = vmatprep.subr.mxu0 0.0
      %5422 = vmatpush2.msra.mxu0 0.0
      %5423 = vmatprep.subr.mxu0 0.0
      %5424 = vmatpush2.msra.mxu0 0.0
      %5425 = vmatprep.subr.mxu0 0.0
      %5426 = vmatpush2.msra.mxu0 0.0
      %5427 = vmatprep.subr.mxu0 0.0
      %5428 = vmatpush2.msra.mxu0 0.0
      %5429 = vmatprep.subr.mxu0 0.0
      %5430 = vmatpush2.msra.mxu0 0.0
      %5431 = vmatprep.subr.mxu0 0.0
      %5432 = vmatpush2.msra.mxu0 0.0
      %5433 = vmatprep.mubr.f32.mxu0 0.0
      %5434 = vmatmul.mubr.f32.gmra.mxu0 %v5322
      %v5435 = vpop.f32.mrf.mxu0
      %v5436 = vadd.f32 0.0, %v5435
      %v5437 = vpop.f32.mrf.mxu0
      %5438 = vmatprep.mubr.f32.mxu0 0.0
      %5439 = vmatmul.mubr.f32.gmra.mxu0 %v5325
      %v5440 = vpop.f32.mrf.mxu0
      %v5441 = vadd.f32 0.0, %v5440
      %v5442 = vpop.f32.mrf.mxu0
      %5443 = vmatprep.mubr.f32.mxu0 0.0
      %5444 = vmatmul.mubr.f32.gmra.mxu0 %v5328
      %v5445 = vpop.f32.mrf.mxu0
      %v5446 = vadd.f32 0.0, %v5445
      %v5447 = vpop.f32.mrf.mxu0
      %5448 = vmatprep.mubr.f32.mxu0 0.0
      %5449 = vmatmul.mubr.f32.gmra.mxu0 %v5331
      %v5450 = vpop.f32.mrf.mxu0
      %v5451 = vadd.f32 0.0, %v5450
      %v5452 = vpop.f32.mrf.mxu0
      %5453 = vmatprep.mubr.f32.mxu0 0.0
      %5454 = vmatmul.mubr.f32.gmra.mxu0 %v5334
      %v5455 = vpop.f32.mrf.mxu0
      %v5456 = vadd.f32 0.0, %v5455
      %v5457 = vpop.f32.mrf.mxu0
      %5458 = vmatprep.mubr.f32.mxu0 0.0
      %5459 = vmatmul.mubr.f32.gmra.mxu0 %v5337
      %v5460 = vpop.f32.mrf.mxu0
      %v5461 = vadd.f32 0.0, %v5460
      %v5462 = vpop.f32.mrf.mxu0
      %5463 = vmatprep.mubr.f32.mxu0 0.0
      %5464 = vmatmul.mubr.f32.gmra.mxu0 %v5340
      %v5465 = vpop.f32.mrf.mxu0
      %v5466 = vadd.f32 0.0, %v5465
      %v5467 = vpop.f32.mrf.mxu0
      %5468 = vmatprep.mubr.f32.mxu0 0.0
      %5469 = vmatmul.mubr.f32.gmra.mxu0 %v5343
      %v5470 = vpop.f32.mrf.mxu0
      %v5471 = vadd.f32 0.0, %v5470
      %v5472 = vpop.f32.mrf.mxu0
      %5473 = vmatprep.mubr.f32.mxu0 0.0
      %5474 = vmatmul.mubr.f32.gmra.mxu0 %v5346
      %v5475 = vpop.f32.mrf.mxu0
      %v5476 = vadd.f32 0.0, %v5475
      %v5477 = vpop.f32.mrf.mxu0
      %5478 = vmatprep.mubr.f32.mxu0 0.0
      %5479 = vmatmul.mubr.f32.gmra.mxu0 %v5349
      %v5480 = vpop.f32.mrf.mxu0
      %v5481 = vadd.f32 0.0, %v5480
      %v5482 = vpop.f32.mrf.mxu0
      %5483 = vmatprep.mubr.f32.mxu0 0.0
      %5484 = vmatmul.mubr.f32.gmra.mxu0 %v5352
      %v5485 = vpop.f32.mrf.mxu0
      %v5486 = vadd.f32 0.0, %v5485
      %v5487 = vpop.f32.mrf.mxu0
      %5488 = vmatprep.mubr.f32.mxu0 0.0
      %5489 = vmatmul.mubr.f32.gmra.mxu0 %v5355
      %v5490 = vpop.f32.mrf.mxu0
      %v5491 = vadd.f32 0.0, %v5490
      %v5492 = vpop.f32.mrf.mxu0
      %5493 = vmatprep.mubr.f32.mxu0 0.0
      %5494 = vmatmul.mubr.f32.gmra.mxu0 %v5358
      %v5495 = vpop.f32.mrf.mxu0
      %v5496 = vadd.f32 0.0, %v5495
      %v5497 = vpop.f32.mrf.mxu0
      %5498 = vmatprep.mubr.f32.mxu0 0.0
      %5499 = vmatmul.mubr.f32.gmra.mxu0 %v5361
      %v5500 = vpop.f32.mrf.mxu0
      %v5501 = vadd.f32 0.0, %v5500
      %v5502 = vpop.f32.mrf.mxu0
      %5503 = vmatprep.mubr.f32.mxu0 0.0
      %5504 = vmatmul.mubr.f32.gmra.mxu0 %v5364
      %v5505 = vpop.f32.mrf.mxu0
      %v5506 = vadd.f32 0.0, %v5505
      %v5507 = vpop.f32.mrf.mxu0
      %5508 = vmatprep.mubr.f32.mxu0 0.0
      %5509 = vmatmul.mubr.f32.gmra.mxu0 %v5367
      %v5510 = vpop.f32.mrf.mxu0
      %v5511 = vadd.f32 0.0, %v5510
      %v5512 = vpop.f32.mrf.mxu0
      %5513 = vdwg.mxu0
      %v5514 = vmax.f32 %v5436, 0.0
      %v5515 = vmax.f32 %v5441, 0.0
      %v5516 = vmax.f32 %v5446, 0.0
      %v5517 = vmax.f32 %v5451, 0.0
      %v5518 = vmax.f32 %v5456, 0.0
      %v5519 = vmax.f32 %v5461, 0.0
      %v5520 = vmax.f32 %v5466, 0.0
      %v5521 = vmax.f32 %v5471, 0.0
      %v5522 = vmax.f32 %v5476, 0.0
      %v5523 = vmax.f32 %v5481, 0.0
      %v5524 = vmax.f32 %v5486, 0.0
      %v5525 = vmax.f32 %v5491, 0.0
      %v5526 = vmax.f32 %v5496, 0.0
      %v5527 = vmax.f32 %v5501, 0.0
      %v5528 = vmax.f32 %v5506, 0.0
      %v5529 = vmax.f32 %v5511, 0.0
      %v5531 = vsel %vm1252, %v5514, 0
      %v5534 = vsel %vm1252, %v5515, 0
      %v5537 = vsel %vm1252, %v5516, 0
      %v5540 = vsel %vm1252, %v5517, 0
      %v5543 = vsel %vm1252, %v5518, 0
      %v5546 = vsel %vm1252, %v5519, 0
      %v5549 = vsel %vm1252, %v5520, 0
      %v5552 = vsel %vm1252, %v5521, 0
      %v5555 = vsel %vm1252, %v5522, 0
      %v5558 = vsel %vm1252, %v5523, 0
      %v5561 = vsel %vm1252, %v5524, 0
      %v5564 = vsel %vm1252, %v5525, 0
      %v5567 = vsel %vm1252, %v5526, 0
      %v5570 = vsel %vm1252, %v5527, 0
      %v5573 = vsel %vm1252, %v5528, 0
      %v5576 = vsel %vm1252, %v5529, 0
      %5578 = vmatprep.subr.mxu0 0.0
      %5579 = vmatpush1.msra.mxu0 0.0
      %5580 = vmatprep.subr.mxu0 0.0
      %5581 = vmatpush1.msra.mxu0 0.0
      %5582 = vmatprep.subr.mxu0 0.0
      %5583 = vmatpush1.msra.mxu0 0.0
      %5584 = vmatprep.subr.mxu0 0.0
      %5585 = vmatpush1.msra.mxu0 0.0
      %5586 = vmatprep.subr.mxu0 0.0
      %5587 = vmatpush1.msra.mxu0 0.0
      %5588 = vmatprep.subr.mxu0 0.0
      %5589 = vmatpush1.msra.mxu0 0.0
      %5590 = vmatprep.subr.mxu0 0.0
      %5591 = vmatpush1.msra.mxu0 0.0
      %5592 = vmatprep.subr.mxu0 0.0
      %5593 = vmatpush1.msra.mxu0 0.0
      %5594 = vmatprep.subr.mxu0 0.0
      %5595 = vmatpush1.msra.mxu0 %v3357
      %5596 = vmatprep.subr.mxu0 0.0
      %5597 = vmatpush1.msra.mxu0 %v3356
      %5598 = vmatprep.subr.mxu0 0.0
      %5599 = vmatpush1.msra.mxu0 %v3355
      %5600 = vmatprep.subr.mxu0 0.0
      %5601 = vmatpush1.msra.mxu0 %v3354
      %5602 = vmatprep.subr.mxu0 0.0
      %5603 = vmatpush1.msra.mxu0 %v3353
      %5604 = vmatprep.subr.mxu0 0.0
      %5605 = vmatpush1.msra.mxu0 %v3352
      %5606 = vmatprep.subr.mxu0 0.0
      %5607 = vmatpush1.msra.mxu0 %v3351
      %5608 = vmatprep.subr.mxu0 0.0
      %5609 = vmatpush1.msra.mxu0 %v3350
      %5610 = vmatprep.subr.mxu0 0.0
      %5611 = vmatpush2.msra.mxu0 0.0
      %5612 = vmatprep.subr.mxu0 0.0
      %5613 = vmatpush2.msra.mxu0 0.0
      %5614 = vmatprep.subr.mxu0 0.0
      %5615 = vmatpush2.msra.mxu0 0.0
      %5616 = vmatprep.subr.mxu0 0.0
      %5617 = vmatpush2.msra.mxu0 0.0
      %5618 = vmatprep.subr.mxu0 0.0
      %5619 = vmatpush2.msra.mxu0 0.0
      %5620 = vmatprep.subr.mxu0 0.0
      %5621 = vmatpush2.msra.mxu0 0.0
      %5622 = vmatprep.subr.mxu0 0.0
      %5623 = vmatpush2.msra.mxu0 0.0
      %5624 = vmatprep.subr.mxu0 0.0
      %5625 = vmatpush2.msra.mxu0 0.0
      %5626 = vmatprep.subr.mxu0 0.0
      %5627 = vmatpush2.msra.mxu0 0.0
      %5628 = vmatprep.subr.mxu0 0.0
      %5629 = vmatpush2.msra.mxu0 0.0
      %5630 = vmatprep.subr.mxu0 0.0
      %5631 = vmatpush2.msra.mxu0 0.0
      %5632 = vmatprep.subr.mxu0 0.0
      %5633 = vmatpush2.msra.mxu0 0.0
      %5634 = vmatprep.subr.mxu0 0.0
      %5635 = vmatpush2.msra.mxu0 0.0
      %5636 = vmatprep.subr.mxu0 0.0
      %5637 = vmatpush2.msra.mxu0 0.0
      %5638 = vmatprep.subr.mxu0 0.0
      %5639 = vmatpush2.msra.mxu0 0.0
      %5640 = vmatprep.subr.mxu0 0.0
      %5641 = vmatpush2.msra.mxu0 0.0
      %5642 = vmatprep.mubr.f32.mxu0 0.0
      %5643 = vmatmul.mubr.f32.gmra.mxu0 %v5531
      %v5644 = vpop.f32.mrf.mxu0
      %v5645 = vadd.f32 0.0, %v5644
      %v5646 = vpop.f32.mrf.mxu0
      %5647 = vmatprep.mubr.f32.mxu0 0.0
      %5648 = vmatmul.mubr.f32.gmra.mxu0 %v5534
      %v5649 = vpop.f32.mrf.mxu0
      %v5650 = vadd.f32 0.0, %v5649
      %v5651 = vpop.f32.mrf.mxu0
      %5652 = vmatprep.mubr.f32.mxu0 0.0
      %5653 = vmatmul.mubr.f32.gmra.mxu0 %v5537
      %v5654 = vpop.f32.mrf.mxu0
      %v5655 = vadd.f32 0.0, %v5654
      %v5656 = vpop.f32.mrf.mxu0
      %5657 = vmatprep.mubr.f32.mxu0 0.0
      %5658 = vmatmul.mubr.f32.gmra.mxu0 %v5540
      %v5659 = vpop.f32.mrf.mxu0
      %v5660 = vadd.f32 0.0, %v5659
      %v5661 = vpop.f32.mrf.mxu0
      %5662 = vmatprep.mubr.f32.mxu0 0.0
      %5663 = vmatmul.mubr.f32.gmra.mxu0 %v5543
      %v5664 = vpop.f32.mrf.mxu0
      %v5665 = vadd.f32 0.0, %v5664
      %v5666 = vpop.f32.mrf.mxu0
      %5667 = vmatprep.mubr.f32.mxu0 0.0
      %5668 = vmatmul.mubr.f32.gmra.mxu0 %v5546
      %v5669 = vpop.f32.mrf.mxu0
      %v5670 = vadd.f32 0.0, %v5669
      %v5671 = vpop.f32.mrf.mxu0
      %5672 = vmatprep.mubr.f32.mxu0 0.0
      %5673 = vmatmul.mubr.f32.gmra.mxu0 %v5549
      %v5674 = vpop.f32.mrf.mxu0
      %v5675 = vadd.f32 0.0, %v5674
      %v5676 = vpop.f32.mrf.mxu0
      %5677 = vmatprep.mubr.f32.mxu0 0.0
      %5678 = vmatmul.mubr.f32.gmra.mxu0 %v5552
      %v5679 = vpop.f32.mrf.mxu0
      %v5680 = vadd.f32 0.0, %v5679
      %v5681 = vpop.f32.mrf.mxu0
      %5682 = vmatprep.mubr.f32.mxu0 0.0
      %5683 = vmatmul.mubr.f32.gmra.mxu0 %v5555
      %v5684 = vpop.f32.mrf.mxu0
      %v5685 = vadd.f32 0.0, %v5684
      %v5686 = vpop.f32.mrf.mxu0
      %5687 = vmatprep.mubr.f32.mxu0 0.0
      %5688 = vmatmul.mubr.f32.gmra.mxu0 %v5558
      %v5689 = vpop.f32.mrf.mxu0
      %v5690 = vadd.f32 0.0, %v5689
      %v5691 = vpop.f32.mrf.mxu0
      %5692 = vmatprep.mubr.f32.mxu0 0.0
      %5693 = vmatmul.mubr.f32.gmra.mxu0 %v5561
      %v5694 = vpop.f32.mrf.mxu0
      %v5695 = vadd.f32 0.0, %v5694
      %v5696 = vpop.f32.mrf.mxu0
      %5697 = vmatprep.mubr.f32.mxu0 0.0
      %5698 = vmatmul.mubr.f32.gmra.mxu0 %v5564
      %v5699 = vpop.f32.mrf.mxu0
      %v5700 = vadd.f32 0.0, %v5699
      %v5701 = vpop.f32.mrf.mxu0
      %5702 = vmatprep.mubr.f32.mxu0 0.0
      %5703 = vmatmul.mubr.f32.gmra.mxu0 %v5567
      %v5704 = vpop.f32.mrf.mxu0
      %v5705 = vadd.f32 0.0, %v5704
      %v5706 = vpop.f32.mrf.mxu0
      %5707 = vmatprep.mubr.f32.mxu0 0.0
      %5708 = vmatmul.mubr.f32.gmra.mxu0 %v5570
      %v5709 = vpop.f32.mrf.mxu0
      %v5710 = vadd.f32 0.0, %v5709
      %v5711 = vpop.f32.mrf.mxu0
      %5712 = vmatprep.mubr.f32.mxu0 0.0
      %5713 = vmatmul.mubr.f32.gmra.mxu0 %v5573
      %v5714 = vpop.f32.mrf.mxu0
      %v5715 = vadd.f32 0.0, %v5714
      %v5716 = vpop.f32.mrf.mxu0
      %5717 = vmatprep.mubr.f32.mxu0 0.0
      %5718 = vmatmul.mubr.f32.gmra.mxu0 %v5576
      %v5719 = vpop.f32.mrf.mxu0
      %v5720 = vadd.f32 0.0, %v5719
      %v5721 = vpop.f32.mrf.mxu0
      %5722 = vdwg.mxu0
      %v5723 = vsel %vm689, %v5645, 0.0
      %5724 = vadd.xlane.f32.xlu0 %v5723
      %v5725 = vpop.xlane.xlu0 %5724
      %v5726 = vsel %vm689, %v5650, 0.0
      %5727 = vadd.xlane.f32.xlu0 %v5726
      %v5728 = vpop.xlane.xlu0 %5727
      %v5729 = vsel %vm689, %v5655, 0.0
      %5730 = vadd.xlane.f32.xlu0 %v5729
      %v5731 = vpop.xlane.xlu0 %5730
      %v5732 = vsel %vm689, %v5660, 0.0
      %5733 = vadd.xlane.f32.xlu0 %v5732
      %v5734 = vpop.xlane.xlu0 %5733
      %v5735 = vsel %vm689, %v5665, 0.0
      %5736 = vadd.xlane.f32.xlu0 %v5735
      %v5737 = vpop.xlane.xlu0 %5736
      %v5738 = vsel %vm689, %v5670, 0.0
      %5739 = vadd.xlane.f32.xlu0 %v5738
      %v5740 = vpop.xlane.xlu0 %5739
      %v5741 = vsel %vm689, %v5675, 0.0
      %5742 = vadd.xlane.f32.xlu0 %v5741
      %v5743 = vpop.xlane.xlu0 %5742
      %v5744 = vsel %vm689, %v5680, 0.0
      %5745 = vadd.xlane.f32.xlu0 %v5744
      %v5746 = vpop.xlane.xlu0 %5745
      %v5747 = vsel %vm689, %v5685, 0.0
      %5748 = vadd.xlane.f32.xlu0 %v5747
      %v5749 = vpop.xlane.xlu0 %5748
      %v5750 = vsel %vm689, %v5690, 0.0
      %5751 = vadd.xlane.f32.xlu0 %v5750
      %v5752 = vpop.xlane.xlu0 %5751
      %v5753 = vsel %vm689, %v5695, 0.0
      %5754 = vadd.xlane.f32.xlu0 %v5753
      %v5755 = vpop.xlane.xlu0 %5754
      %v5756 = vsel %vm689, %v5700, 0.0
      %5757 = vadd.xlane.f32.xlu0 %v5756
      %v5758 = vpop.xlane.xlu0 %5757
      %v5759 = vsel %vm689, %v5705, 0.0
      %5760 = vadd.xlane.f32.xlu0 %v5759
      %v5761 = vpop.xlane.xlu0 %5760
      %v5762 = vsel %vm689, %v5710, 0.0
      %5763 = vadd.xlane.f32.xlu0 %v5762
      %v5764 = vpop.xlane.xlu0 %5763
      %v5765 = vsel %vm689, %v5715, 0.0
      %5766 = vadd.xlane.f32.xlu0 %v5765
      %v5767 = vpop.xlane.xlu0 %5766
      %v5768 = vsel %vm689, %v5720, 0.0
      %5769 = vadd.xlane.f32.xlu0 %v5768
      %v5770 = vpop.xlane.xlu0 %5769
      %v5771 = vmul.f32 %v5725, %v2366
      %v5772 = vmul.f32 %v5728, %v2366
      %v5773 = vmul.f32 %v5731, %v2366
      %v5774 = vmul.f32 %v5734, %v2366
      %v5775 = vmul.f32 %v5737, %v2366
      %v5776 = vmul.f32 %v5740, %v2366
      %v5777 = vmul.f32 %v5743, %v2366
      %v5778 = vmul.f32 %v5746, %v2366
      %v5779 = vmul.f32 %v5749, %v2366
      %v5780 = vmul.f32 %v5752, %v2366
      %v5781 = vmul.f32 %v5755, %v2366
      %v5782 = vmul.f32 %v5758, %v2366
      %v5783 = vmul.f32 %v5761, %v2366
      %v5784 = vmul.f32 %v5764, %v2366
      %v5785 = vmul.f32 %v5767, %v2366
      %v5786 = vmul.f32 %v5770, %v2366
      %v5787 = vsub.f32 %v5645, %v5771
      %v5788 = vsub.f32 %v5650, %v5772
      %v5789 = vsub.f32 %v5655, %v5773
      %v5790 = vsub.f32 %v5660, %v5774
      %v5791 = vsub.f32 %v5665, %v5775
      %v5792 = vsub.f32 %v5670, %v5776
      %v5793 = vsub.f32 %v5675, %v5777
      %v5794 = vsub.f32 %v5680, %v5778
      %v5795 = vsub.f32 %v5685, %v5779
      %v5796 = vsub.f32 %v5690, %v5780
      %v5797 = vsub.f32 %v5695, %v5781
      %v5798 = vsub.f32 %v5700, %v5782
      %v5799 = vsub.f32 %v5705, %v5783
      %v5800 = vsub.f32 %v5710, %v5784
      %v5801 = vsub.f32 %v5715, %v5785
      %v5802 = vsub.f32 %v5720, %v5786
      %v5803 = vmul.f32 %v5787, %v5787
      %v5804 = vmul.f32 %v5788, %v5788
      %v5805 = vmul.f32 %v5789, %v5789
      %v5806 = vmul.f32 %v5790, %v5790
      %v5807 = vmul.f32 %v5791, %v5791
      %v5808 = vmul.f32 %v5792, %v5792
      %v5809 = vmul.f32 %v5793, %v5793
      %v5810 = vmul.f32 %v5794, %v5794
      %v5811 = vmul.f32 %v5795, %v5795
      %v5812 = vmul.f32 %v5796, %v5796
      %v5813 = vmul.f32 %v5797, %v5797
      %v5814 = vmul.f32 %v5798, %v5798
      %v5815 = vmul.f32 %v5799, %v5799
      %v5816 = vmul.f32 %v5800, %v5800
      %v5817 = vmul.f32 %v5801, %v5801
      %v5818 = vmul.f32 %v5802, %v5802
      %v5819 = vsel %vm689, %v5803, 0.0
      %5820 = vadd.xlane.f32.xlu0 %v5819
      %v5821 = vpop.xlane.xlu0 %5820
      %v5822 = vsel %vm689, %v5804, 0.0
      %5823 = vadd.xlane.f32.xlu0 %v5822
      %v5824 = vpop.xlane.xlu0 %5823
      %v5825 = vsel %vm689, %v5805, 0.0
      %5826 = vadd.xlane.f32.xlu0 %v5825
      %v5827 = vpop.xlane.xlu0 %5826
      %v5828 = vsel %vm689, %v5806, 0.0
      %5829 = vadd.xlane.f32.xlu0 %v5828
      %v5830 = vpop.xlane.xlu0 %5829
      %v5831 = vsel %vm689, %v5807, 0.0
      %5832 = vadd.xlane.f32.xlu0 %v5831
      %v5833 = vpop.xlane.xlu0 %5832
      %v5834 = vsel %vm689, %v5808, 0.0
      %5835 = vadd.xlane.f32.xlu0 %v5834
      %v5836 = vpop.xlane.xlu0 %5835
      %v5837 = vsel %vm689, %v5809, 0.0
      %5838 = vadd.xlane.f32.xlu0 %v5837
      %v5839 = vpop.xlane.xlu0 %5838
      %v5840 = vsel %vm689, %v5810, 0.0
      %5841 = vadd.xlane.f32.xlu0 %v5840
      %v5842 = vpop.xlane.xlu0 %5841
      %v5843 = vsel %vm689, %v5811, 0.0
      %5844 = vadd.xlane.f32.xlu0 %v5843
      %v5845 = vpop.xlane.xlu0 %5844
      %v5846 = vsel %vm689, %v5812, 0.0
      %5847 = vadd.xlane.f32.xlu0 %v5846
      %v5848 = vpop.xlane.xlu0 %5847
      %v5849 = vsel %vm689, %v5813, 0.0
      %5850 = vadd.xlane.f32.xlu0 %v5849
      %v5851 = vpop.xlane.xlu0 %5850
      %v5852 = vsel %vm689, %v5814, 0.0
      %5853 = vadd.xlane.f32.xlu0 %v5852
      %v5854 = vpop.xlane.xlu0 %5853
      %v5855 = vsel %vm689, %v5815, 0.0
      %5856 = vadd.xlane.f32.xlu0 %v5855
      %v5857 = vpop.xlane.xlu0 %5856
      %v5858 = vsel %vm689, %v5816, 0.0
      %5859 = vadd.xlane.f32.xlu0 %v5858
      %v5860 = vpop.xlane.xlu0 %5859
      %v5861 = vsel %vm689, %v5817, 0.0
      %5862 = vadd.xlane.f32.xlu0 %v5861
      %v5863 = vpop.xlane.xlu0 %5862
      %v5864 = vsel %vm689, %v5818, 0.0
      %5865 = vadd.xlane.f32.xlu0 %v5864
      %v5866 = vpop.xlane.xlu0 %5865
      %v5867 = vmul.f32 %v5821, %v2366
      %v5868 = vmul.f32 %v5824, %v2366
      %v5869 = vmul.f32 %v5827, %v2366
      %v5870 = vmul.f32 %v5830, %v2366
      %v5871 = vmul.f32 %v5833, %v2366
      %v5872 = vmul.f32 %v5836, %v2366
      %v5873 = vmul.f32 %v5839, %v2366
      %v5874 = vmul.f32 %v5842, %v2366
      %v5875 = vmul.f32 %v5845, %v2366
      %v5876 = vmul.f32 %v5848, %v2366
      %v5877 = vmul.f32 %v5851, %v2366
      %v5878 = vmul.f32 %v5854, %v2366
      %v5879 = vmul.f32 %v5857, %v2366
      %v5880 = vmul.f32 %v5860, %v2366
      %v5881 = vmul.f32 %v5863, %v2366
      %v5882 = vmul.f32 %v5866, %v2366
      %v5883 = vadd.f32 %v5867, 1e-05
      %v5884 = vadd.f32 %v5868, 1e-05
      %v5885 = vadd.f32 %v5869, 1e-05
      %v5886 = vadd.f32 %v5870, 1e-05
      %v5887 = vadd.f32 %v5871, 1e-05
      %v5888 = vadd.f32 %v5872, 1e-05
      %v5889 = vadd.f32 %v5873, 1e-05
      %v5890 = vadd.f32 %v5874, 1e-05
      %v5891 = vadd.f32 %v5875, 1e-05
      %v5892 = vadd.f32 %v5876, 1e-05
      %v5893 = vadd.f32 %v5877, 1e-05
      %v5894 = vadd.f32 %v5878, 1e-05
      %v5895 = vadd.f32 %v5879, 1e-05
      %v5896 = vadd.f32 %v5880, 1e-05
      %v5897 = vadd.f32 %v5881, 1e-05
      %v5898 = vadd.f32 %v5882, 1e-05
      %v5899 = vrsqrt.pop %v5883
      %v5900 = vrsqrt.pop %v5884
      %v5901 = vrsqrt.pop %v5885
      %v5902 = vrsqrt.pop %v5886
      %v5903 = vrsqrt.pop %v5887
      %v5904 = vrsqrt.pop %v5888
      %v5905 = vrsqrt.pop %v5889
      %v5906 = vrsqrt.pop %v5890
      %v5907 = vrsqrt.pop %v5891
      %v5908 = vrsqrt.pop %v5892
      %v5909 = vrsqrt.pop %v5893
      %v5910 = vrsqrt.pop %v5894
      %v5911 = vrsqrt.pop %v5895
      %v5912 = vrsqrt.pop %v5896
      %v5913 = vrsqrt.pop %v5897
      %v5914 = vrsqrt.pop %v5898
      %v5915 = vmul.f32 %v5787, %v5899
      %v5916 = vmul.f32 %v5788, %v5900
      %v5917 = vmul.f32 %v5789, %v5901
      %v5918 = vmul.f32 %v5790, %v5902
      %v5919 = vmul.f32 %v5791, %v5903
      %v5920 = vmul.f32 %v5792, %v5904
      %v5921 = vmul.f32 %v5793, %v5905
      %v5922 = vmul.f32 %v5794, %v5906
      %v5923 = vmul.f32 %v5795, %v5907
      %v5924 = vmul.f32 %v5796, %v5908
      %v5925 = vmul.f32 %v5797, %v5909
      %v5926 = vmul.f32 %v5798, %v5910
      %v5927 = vmul.f32 %v5799, %v5911
      %v5928 = vmul.f32 %v5800, %v5912
      %v5929 = vmul.f32 %v5801, %v5913
      %v5930 = vmul.f32 %v5802, %v5914
      %v5932 = vlaneseq
      %v5933 = vshrl.u32 %v5932, 7
      %v5934 = vsub.s32 0, %v5933
      %v5935 = vrot.slane %v3359, %v5934
      %v5937 = vmul.f32 %v5915, %v5935
      %v5938 = vmul.f32 %v5916, %v5935
      %v5939 = vmul.f32 %v5917, %v5935
      %v5940 = vmul.f32 %v5918, %v5935
      %v5941 = vmul.f32 %v5919, %v5935
      %v5942 = vmul.f32 %v5920, %v5935
      %v5943 = vmul.f32 %v5921, %v5935
      %v5944 = vmul.f32 %v5922, %v5935
      %v5945 = vmul.f32 %v5923, %v5935
      %v5946 = vmul.f32 %v5924, %v5935
      %v5947 = vmul.f32 %v5925, %v5935
      %v5948 = vmul.f32 %v5926, %v5935
      %v5949 = vmul.f32 %v5927, %v5935
      %v5950 = vmul.f32 %v5928, %v5935
      %v5951 = vmul.f32 %v5929, %v5935
      %v5952 = vmul.f32 %v5930, %v5935
      %v5954 = vlaneseq
      %v5955 = vshrl.u32 %v5954, 7
      %v5956 = vsub.s32 0, %v5955
      %v5957 = vrot.slane %v3361, %v5956
      %v5959 = vadd.f32 %v5937, %v5957
      %v5960 = vadd.f32 %v5938, %v5957
      %v5961 = vadd.f32 %v5939, %v5957
      %v5962 = vadd.f32 %v5940, %v5957
      %v5963 = vadd.f32 %v5941, %v5957
      %v5964 = vadd.f32 %v5942, %v5957
      %v5965 = vadd.f32 %v5943, %v5957
      %v5966 = vadd.f32 %v5944, %v5957
      %v5967 = vadd.f32 %v5945, %v5957
      %v5968 = vadd.f32 %v5946, %v5957
      %v5969 = vadd.f32 %v5947, %v5957
      %v5970 = vadd.f32 %v5948, %v5957
      %v5971 = vadd.f32 %v5949, %v5957
      %v5972 = vadd.f32 %v5950, %v5957
      %v5973 = vadd.f32 %v5951, %v5957
      %v5974 = vadd.f32 %v5952, %v5957
      %v5975 = vadd.f32 %v3305, %v5959
      %v5976 = vadd.f32 %v3306, %v5960
      %v5977 = vadd.f32 %v3307, %v5961
      %v5978 = vadd.f32 %v3308, %v5962
      %v5979 = vadd.f32 %v3309, %v5963
      %v5980 = vadd.f32 %v3310, %v5964
      %v5981 = vadd.f32 %v3311, %v5965
      %v5982 = vadd.f32 %v3312, %v5966
      %v5983 = vadd.f32 %v3313, %v5967
      %v5984 = vadd.f32 %v3314, %v5968
      %v5985 = vadd.f32 %v3315, %v5969
      %v5986 = vadd.f32 %v3316, %v5970
      %v5987 = vadd.f32 %v3317, %v5971
      %v5988 = vadd.f32 %v3318, %v5972
      %v5989 = vadd.f32 %v3319, %v5973
      %v5990 = vadd.f32 %v3320, %v5974
      %5991 = vst.msk [vmem:[%s599] sm:$0xff] %vm689, %v5975
      %5992 = vst.msk [vmem:[%s599 + $0x8] sm:$0xff] %vm689, %v5976
      %5993 = vst.msk [vmem:[%s599 + $0x10] sm:$0xff] %vm689, %v5977
      %5994 = vst.msk [vmem:[%s599 + $0x18] sm:$0xff] %vm689, %v5978
      %5995 = vst.msk [vmem:[%s599 + $0x20] sm:$0xff] %vm689, %v5979
      %5996 = vst.msk [vmem:[%s599 + $0x28] sm:$0xff] %vm689, %v5980
      %5997 = vst.msk [vmem:[%s599 + $0x30] sm:$0xff] %vm689, %v5981
      %5998 = vst.msk [vmem:[%s599 + $0x38] sm:$0xff] %vm689, %v5982
      %5999 = vst.msk [vmem:[%s599 + $0x40] sm:$0xff] %vm689, %v5983
      %6000 = vst.msk [vmem:[%s599 + $0x48] sm:$0xff] %vm689, %v5984
      %6001 = vst.msk [vmem:[%s599 + $0x50] sm:$0xff] %vm689, %v5985
      %6002 = vst.msk [vmem:[%s599 + $0x58] sm:$0xff] %vm689, %v5986
      %6003 = vst.msk [vmem:[%s599 + $0x60] sm:$0xff] %vm689, %v5987
      %6004 = vst.msk [vmem:[%s599 + $0x68] sm:$0xff] %vm689, %v5988
      %6005 = vst.msk [vmem:[%s599 + $0x70] sm:$0xff] %vm689, %v5989
      %6006 = vst.msk [vmem:[%s599 + $0x78] sm:$0xff] %vm689, %v5990
      %p6007 = scmp.lt.s32.totalorder %s26, 1
      %s6008 = scalar_select %p6007, %s26, 1
      %s6009 = smul.addr %s6008, 16
      %s6010 = smul.addr %s6009, 8
      %s6011 = scalar_lea.vmem %s11, %s6010
      // Predicated region
      $region69: #{tpu_custom_call.1} parent=63 // pred_check
        %p6012 = pneg %p333
      $region70: #{tpu_custom_call.1} parent=63 // pred_check_branch
        %6014 = sbr.rel (%p6012) target = $region72
      $region71: #{tpu_custom_call.1} parent=63 // pred_region
        _
      $region72: #{tpu_custom_call.1} parent=63 // pred_fallthru
        _
    $region64: #{tpu_custom_call.1} parent=5 // pred_fallthru
      _
    %p6015 = scmp.le.s32.totalorder 2, %s17
    // Predicated region
    $region73: #{tpu_custom_call.1} parent=5 // pred_check
      %p6016 = pneg %p6015
    $region74: #{tpu_custom_call.1} parent=5 // pred_check_branch
      %6018 = sbr.rel (%p6016) target = $region76
    $region75: #{tpu_custom_call.1} parent=5 // pred_region
      %s6019 = ssub.s32 %s17, 2
      // Predicated region
      $region77: #{tpu_custom_call.1} parent=75 // pred_check
        %p6020 = pneg %p339
      $region78: #{tpu_custom_call.1} parent=75 // pred_check_branch
        %6022 = sbr.rel (%p6020) target = $region80
      $region79: #{tpu_custom_call.1} parent=75 // pred_region
        %p6023 = scmp.lt.s32.totalorder %s28, 1
        %s6024 = scalar_select %p6023, %s28, 1
        %s6025 = smul.addr %s6024, 16
        %s6026 = smul.addr %s6025, 8
        %s6027 = scalar_lea.vmem %s11, %s6026
      $region80: #{tpu_custom_call.1} parent=75 // pred_fallthru
        _
    $region76: #{tpu_custom_call.1} parent=5 // pred_fallthru
      _
  $region6: #{tpu_custom_call.1} parent=0 // loop_footer
    %s21 = sadd.s32 1, %s17
  $region7: #{tpu_custom_call.1} parent=0 // loop_footer_branch
    %16 = sbr.rel target = $region3
  $region8: #{tpu_custom_call.1} parent=0 // loop_exit
    _

</llo_original>
